<compile_context>
chip_gen: v6e
topology: v6e:2x2x1
jax: 0.10.0
libtpu: 0.0.40
codegen_flags: <defaults>
</compile_context>

<pallas_src>
import functools

import jax
import jax.numpy as jnp
from jax.experimental import pallas as pl
from jax.experimental.pallas import tpu as pltpu

# ---------------- small (but structurally faithful) config -----------------
IMG = 32          # image size (ViT uses 224; scaled down)
PATCH = 16        # patch_size=16 as in the module
IN_CHANS = 3
EMBED_DIM = 64    # embed_dim (768 in module; scaled down)
DEPTH = 2         # depth (12 in module; scaled down)
NUM_HEADS = 4     # num_heads (12 in module; scaled down)
HEAD_DIM = EMBED_DIM // NUM_HEADS
MLP_HIDDEN = int(EMBED_DIM * 4.0)   # mlp_ratio=4.0
CLASS_NUM = 10                      # cifar100 -> 10 classes per session
TOTAL_SESSIONS = 2
PROMPT_LENGTH = 8
LN_EPS = 1e-6                       # timm ViT default LayerNorm eps

NUM_PATCHES = (IMG // PATCH) ** 2
SEQ = NUM_PATCHES + 1               # cls + patches = 5
SEQ_PAD = ((SEQ + 7) // 8) * 8      # pad sequence to a multiple of 8 sublanes
CLS_PAD = 128                       # lane-dense classifier output (sliced to 10)

_BLOCK_PARAM_ORDER = ("ln1_g", "ln1_b", "qkv_w", "qkv_b", "proj_w", "proj_b",
                      "ln2_g", "ln2_b", "fc1_w", "fc1_b", "fc2_w", "fc2_b")


# ------------------------------ in-kernel math ------------------------------
def _layernorm(x, g, b):
    """Row-wise LayerNorm over the last dim (f32 math)."""
    mu = jnp.mean(x, axis=-1, keepdims=True)
    xc = x - mu
    var = jnp.mean(xc * xc, axis=-1, keepdims=True)
    return xc * jax.lax.rsqrt(var + LN_EPS) * g + b


def _erf(x):
    # Abramowitz & Stegun 7.1.26 (max abs err ~1.5e-7): keeps nn.GELU()'s exact
    # erf semantics within f32 noise while only using Mosaic-friendly ops (exp).
    a1, a2, a3, a4, a5 = 0.254829592, -0.284496736, 1.421413741, -1.453152027, 1.061405429
    p = 0.3275911
    sign = jnp.where(x >= 0.0, 1.0, -1.0)
    ax = jnp.abs(x)
    t = 1.0 / (1.0 + p * ax)
    poly = ((((a5 * t + a4) * t + a3) * t + a2) * t + a1) * t
    return sign * (1.0 - poly * jnp.exp(-ax * ax))


def _gelu_exact(x):
    return 0.5 * x * (1.0 + _erf(x * 0.7071067811865476))


# ------------------------------ fused kernel ------------------------------
def _sinet_fused_kernel(patches_ref, patch_w_ref, patch_b_ref, cls_ref, pos_ref,
                        *rest, batch):
    """Whole SiNet forward on one VMEM-resident activation tile.

    rest = [DEPTH*12 block param refs, norm_g, norm_b, cls_w(pad), cls_b(pad),
            x_out_ref, logits_out_ref, tok_scratch, attn_scratch]
    """
    f32 = jnp.float32
    D = EMBED_DIM
    nbp = len(_BLOCK_PARAM_ORDER)
    n_blk = DEPTH * nbp

    blk_refs = rest[:n_blk]
    norm_g_ref, norm_b_ref, clsw_ref, clsb_ref = rest[n_blk:n_blk + 4]
    x_out_ref, logits_out_ref, tok_ref, attn_ref = rest[n_blk + 4:]

    # ---- patch_embed: conv(k=16, s=16) as one MXU matmul ----
    pemb = jnp.dot(patches_ref[...], patch_w_ref[...],
                   preferred_element_type=f32) + patch_b_ref[...]      # [B*Np, D]

    # ---- token assembly + positional embedding ----
    # Reference: x = cat(cls, patches); x += pos_embed[:, :S]; x = pos_drop(x);
    #            x += pos_embed   <- pos_embed really is added TWICE in
    #            ViT_Prompts.forward, so we add 2*pos here.  Padded rows
    #            (SEQ..SEQ_PAD-1) are zeros and get masked out in attention.
    pos2 = pos_ref[...] + pos_ref[...]
    cls = cls_ref[...]
    for b in range(batch):
        r0 = b * SEQ_PAD
        tok_ref[r0:r0 + 1, :] = cls + pos2[0:1, :]
        tok_ref[r0 + 1:r0 + 1 + NUM_PATCHES, :] = (
            pemb[b * NUM_PATCHES:(b + 1) * NUM_PATCHES, :] + pos2[1:1 + NUM_PATCHES, :])
        tok_ref[r0 + 1 + NUM_PATCHES:r0 + SEQ_PAD, :] = jnp.zeros(
            (SEQ_PAD - 1 - NUM_PATCHES, D), f32)
    x = tok_ref[...]                                                   # [B*S_pad, D]

    # key-padding mask (hoisted once): padded tokens must not be attended to.
    kidx = jax.lax.broadcasted_iota(jnp.int32, (SEQ_PAD, SEQ_PAD), 1)
    key_valid = kidx < SEQ

    scale = HEAD_DIM ** -0.5

    # ---- transformer blocks (pre-norm MHSA + MLP), fully fused ----
    for blk in range(DEPTH):
        (ln1_g, ln1_b, qkv_w, qkv_b, proj_w, proj_b,
         ln2_g, ln2_b, fc1_w, fc1_b, fc2_w, fc2_b) = tuple(
            r[...] for r in blk_refs[blk * nbp:(blk + 1) * nbp])

        # --- MHSA ---
        h = _layernorm(x, ln1_g, ln1_b)
        qkv = jnp.dot(h, qkv_w, preferred_element_type=f32) + qkv_b    # [M, 3D]
        for b in range(batch):
            r0 = b * SEQ_PAD
            q_b = qkv[r0:r0 + SEQ_PAD, 0:D] * scale                    # scale folded once
            k_b = qkv[r0:r0 + SEQ_PAD, D:2 * D]
            v_b = qkv[r0:r0 + SEQ_PAD, 2 * D:3 * D]
            for hh in range(NUM_HEADS):
                c0 = hh * HEAD_DIM
                q_h = q_b[:, c0:c0 + HEAD_DIM]
                k_h = k_b[:, c0:c0 + HEAD_DIM]
                v_h = v_b[:, c0:c0 + HEAD_DIM]
                s = jax.lax.dot_general(q_h, k_h, (((1,), (1,)), ((), ())),
                                        preferred_element_type=f32)    # [S_pad, S_pad]
                s = jnp.where(key_valid, s, -1e30)
                s = s - jnp.max(s, axis=-1, keepdims=True)
                p = jnp.exp(s)
                p = p / jnp.sum(p, axis=-1, keepdims=True)
                attn_ref[r0:r0 + SEQ_PAD, c0:c0 + HEAD_DIM] = jnp.dot(
                    p, v_h, preferred_element_type=f32)
        o = jnp.dot(attn_ref[...], proj_w, preferred_element_type=f32) + proj_b
        x = x + o

        # --- MLP (GELU fused in, EUP slot) ---
        h = _layernorm(x, ln2_g, ln2_b)
        h = jnp.dot(h, fc1_w, preferred_element_type=f32) + fc1_b
        h = _gelu_exact(h)
        h = jnp.dot(h, fc2_w, preferred_element_type=f32) + fc2_b
        x = x + h

    # ---- final LayerNorm + current-task classifier head ----
    xf = _layernorm(x, norm_g_ref[...], norm_b_ref[...])
    x_out_ref[...] = xf
    logits_out_ref[...] = jnp.dot(xf, clsw_ref[...],
                                  preferred_element_type=f32) + clsb_ref[...]


def _fs(shape):
    nd = len(shape)
    return pl.BlockSpec(shape, lambda i, _nd=nd: (0,) * _nd)


# ------------------------------ parameter init ------------------------------
def _normal(key, shape, scale=0.02):
    return scale * jax.random.normal(key, shape, dtype=jnp.float32)


def init_params(key):
    keys = iter(jax.random.split(key, 64))
    patch_in = IN_CHANS * PATCH * PATCH

    def block_params():
        return dict(
            ln1_g=jnp.ones((1, EMBED_DIM), jnp.float32),
            ln1_b=jnp.zeros((1, EMBED_DIM), jnp.float32),
            qkv_w=_normal(next(keys), (EMBED_DIM, 3 * EMBED_DIM)),
            qkv_b=jnp.zeros((1, 3 * EMBED_DIM), jnp.float32),
            proj_w=_normal(next(keys), (EMBED_DIM, EMBED_DIM)),
            proj_b=jnp.zeros((1, EMBED_DIM), jnp.float32),
            ln2_g=jnp.ones((1, EMBED_DIM), jnp.float32),
            ln2_b=jnp.zeros((1, EMBED_DIM), jnp.float32),
            fc1_w=_normal(next(keys), (EMBED_DIM, MLP_HIDDEN)),
            fc1_b=jnp.zeros((1, MLP_HIDDEN), jnp.float32),
            fc2_w=_normal(next(keys), (MLP_HIDDEN, EMBED_DIM)),
            fc2_b=jnp.zeros((1, EMBED_DIM), jnp.float32),
        )

    vit = dict(
        patch_w=_normal(next(keys), (patch_in, EMBED_DIM)),   # conv16x16 as matmul
        patch_b=jnp.zeros((1, EMBED_DIM), jnp.float32),
        cls_token=_normal(next(keys), (1, 1, EMBED_DIM)),
        pos_embed=_normal(next(keys), (1, SEQ, EMBED_DIM)),
        blocks=[block_params() for _ in range(DEPTH)],
        norm_g=jnp.ones((1, EMBED_DIM), jnp.float32),
        norm_b=jnp.zeros((1, EMBED_DIM), jnp.float32),
    )
    params = dict(
        vit=vit,
        # classifier_pool: Linear(embd_dim, class_num) per session
        cls_w=[_normal(next(keys), (EMBED_DIM, CLASS_NUM)) for _ in range(TOTAL_SESSIONS)],
        cls_b=[jnp.zeros((1, CLASS_NUM), jnp.float32) for _ in range(TOTAL_SESSIONS)],
        # prompt_pool: Linear(embd_dim, prompt_length, bias=False) per session
        # (its weight is the "register_blk" positional arg in the reference; unused here)
        prompt_pool=[_normal(next(keys), (PROMPT_LENGTH, EMBED_DIM)) for _ in range(TOTAL_SESSIONS)],
    )
    return params


# ------------------------------ model forward ------------------------------
@functools.partial(jax.jit, static_argnames=("numtask",))
def sinet_forward(params, image, numtask=1):
    """SiNet.forward: features = cls-token embedding, logits = current-task head."""
    vp = params["vit"]
    B, C, H, W = image.shape
    Hp, Wp = H // PATCH, W // PATCH
    assert Hp * Wp == NUM_PATCHES
    M = B * SEQ_PAD

    # im2col for the stride-16 patch conv (pure layout glue, runs once per call)
    patches = (image.reshape(B, C, Hp, PATCH, Wp, PATCH)
                    .transpose(0, 2, 4, 1, 3, 5)
                    .reshape(B * NUM_PATCHES, C * PATCH * PATCH))

    cls2d = vp["cls_token"].reshape(1, EMBED_DIM)
    pos = vp["pos_embed"].reshape(SEQ, EMBED_DIM)
    pos_pad = jnp.pad(pos, ((0, SEQ_PAD - SEQ), (0, 0)))      # pad rows -> 8

    # pad classifier head to a lane-dense N=128 output; slice back after the call
    cls_w_pad = jnp.pad(params["cls_w"][numtask - 1], ((0, 0), (0, CLS_PAD - CLASS_NUM)))
    cls_b_pad = jnp.pad(params["cls_b"][numtask - 1], ((0, 0), (0, CLS_PAD - CLASS_NUM)))

    inputs = [patches, vp["patch_w"], vp["patch_b"], cls2d, pos_pad]
    for bp in vp["blocks"]:
        inputs += [bp[k] for k in _BLOCK_PARAM_ORDER]
    inputs += [vp["norm_g"], vp["norm_b"], cls_w_pad, cls_b_pad]

    kern = functools.partial(_sinet_fused_kernel, batch=B)
    xf, logits_all = pl.pallas_call(
        kern,
        out_shape=(jax.ShapeDtypeStruct((M, EMBED_DIM), jnp.float32),
                   jax.ShapeDtypeStruct((M, CLS_PAD), jnp.float32)),
        grid=(1,),
        in_specs=[_fs(a.shape) for a in inputs],
        out_specs=(_fs((M, EMBED_DIM)), _fs((M, CLS_PAD))),
        scratch_shapes=[pltpu.VMEM((M, EMBED_DIM), jnp.float32),   # token assembly
                        pltpu.VMEM((M, EMBED_DIM), jnp.float32)],  # attention output
    )(*inputs)

    xf = xf.reshape(B, SEQ_PAD, EMBED_DIM)
    features = xf[:, 0, :]                                       # global_pool='token'
    logits = logits_all.reshape(B, SEQ_PAD, CLS_PAD)[:, 0, :CLASS_NUM]
    return {"logits": logits, "features": features}


# ------------------------------------ main ------------------------------------
if __name__ == "__main__":
    key = jax.random.PRNGKey(0)
    k_param, k_img = jax.random.split(key)
    params = init_params(k_param)
    image = jax.random.normal(k_img, (2, IN_CHANS, IMG, IMG), dtype=jnp.float32)

    out = sinet_forward(params, image, numtask=1)
    jax.block_until_ready(out)

    assert out["logits"].shape == (2, CLASS_NUM)
    assert out["features"].shape == (2, EMBED_DIM)
    assert bool(jnp.all(jnp.isfinite(out["logits"])))
    assert bool(jnp.all(jnp.isfinite(out["features"])))
    print("KERNEL_OK")
</pallas_src>

<mosaic_0001>
module attributes {stable_mosaic.version = 11 : i64} {
  func.func @_sinet_fused_kernel(%arg0: i32, %arg1: memref<8x768xf32, #tpu.memory_space<vmem>>, %arg2: memref<768x64xf32, #tpu.memory_space<vmem>>, %arg3: memref<1x64xf32, #tpu.memory_space<vmem>>, %arg4: memref<1x64xf32, #tpu.memory_space<vmem>>, %arg5: memref<8x64xf32, #tpu.memory_space<vmem>>, %arg6: memref<1x64xf32, #tpu.memory_space<vmem>>, %arg7: memref<1x64xf32, #tpu.memory_space<vmem>>, %arg8: memref<64x192xf32, #tpu.memory_space<vmem>>, %arg9: memref<1x192xf32, #tpu.memory_space<vmem>>, %arg10: memref<64x64xf32, #tpu.memory_space<vmem>>, %arg11: memref<1x64xf32, #tpu.memory_space<vmem>>, %arg12: memref<1x64xf32, #tpu.memory_space<vmem>>, %arg13: memref<1x64xf32, #tpu.memory_space<vmem>>, %arg14: memref<64x256xf32, #tpu.memory_space<vmem>>, %arg15: memref<1x256xf32, #tpu.memory_space<vmem>>, %arg16: memref<256x64xf32, #tpu.memory_space<vmem>>, %arg17: memref<1x64xf32, #tpu.memory_space<vmem>>, %arg18: memref<1x64xf32, #tpu.memory_space<vmem>>, %arg19: memref<1x64xf32, #tpu.memory_space<vmem>>, %arg20: memref<64x192xf32, #tpu.memory_space<vmem>>, %arg21: memref<1x192xf32, #tpu.memory_space<vmem>>, %arg22: memref<64x64xf32, #tpu.memory_space<vmem>>, %arg23: memref<1x64xf32, #tpu.memory_space<vmem>>, %arg24: memref<1x64xf32, #tpu.memory_space<vmem>>, %arg25: memref<1x64xf32, #tpu.memory_space<vmem>>, %arg26: memref<64x256xf32, #tpu.memory_space<vmem>>, %arg27: memref<1x256xf32, #tpu.memory_space<vmem>>, %arg28: memref<256x64xf32, #tpu.memory_space<vmem>>, %arg29: memref<1x64xf32, #tpu.memory_space<vmem>>, %arg30: memref<1x64xf32, #tpu.memory_space<vmem>>, %arg31: memref<1x64xf32, #tpu.memory_space<vmem>>, %arg32: memref<64x128xf32, #tpu.memory_space<vmem>>, %arg33: memref<1x128xf32, #tpu.memory_space<vmem>>, %arg34: memref<16x64xf32, #tpu.memory_space<vmem>>, %arg35: memref<16x128xf32, #tpu.memory_space<vmem>>, %arg36: memref<16x64xf32, #tpu.memory_space<vmem>>, %arg37: memref<16x64xf32, #tpu.memory_space<vmem>>) attributes {dimension_semantics = [#tpu.dimension_semantics<arbitrary>], iteration_bounds = array<i64: 1>, scalar_prefetch = 0 : i64, scratch_operands = 2 : i64, tpu.core_type = #tpu.core_type<tc>, window_params = [{pipeline_mode = #tpu.pipeline_mode<synchronous>, transform_indices = @transform_0, window_bounds = array<i64: 8, 768>}, {pipeline_mode = #tpu.pipeline_mode<synchronous>, transform_indices = @transform_1, window_bounds = array<i64: 768, 64>}, {pipeline_mode = #tpu.pipeline_mode<synchronous>, transform_indices = @transform_2, window_bounds = array<i64: 1, 64>}, {pipeline_mode = #tpu.pipeline_mode<synchronous>, transform_indices = @transform_3, window_bounds = array<i64: 1, 64>}, {pipeline_mode = #tpu.pipeline_mode<synchronous>, transform_indices = @transform_4, window_bounds = array<i64: 8, 64>}, {pipeline_mode = #tpu.pipeline_mode<synchronous>, transform_indices = @transform_5, window_bounds = array<i64: 1, 64>}, {pipeline_mode = #tpu.pipeline_mode<synchronous>, transform_indices = @transform_6, window_bounds = array<i64: 1, 64>}, {pipeline_mode = #tpu.pipeline_mode<synchronous>, transform_indices = @transform_7, window_bounds = array<i64: 64, 192>}, {pipeline_mode = #tpu.pipeline_mode<synchronous>, transform_indices = @transform_8, window_bounds = array<i64: 1, 192>}, {pipeline_mode = #tpu.pipeline_mode<synchronous>, transform_indices = @transform_9, window_bounds = array<i64: 64, 64>}, {pipeline_mode = #tpu.pipeline_mode<synchronous>, transform_indices = @transform_10, window_bounds = array<i64: 1, 64>}, {pipeline_mode = #tpu.pipeline_mode<synchronous>, transform_indices = @transform_11, window_bounds = array<i64: 1, 64>}, {pipeline_mode = #tpu.pipeline_mode<synchronous>, transform_indices = @transform_12, window_bounds = array<i64: 1, 64>}, {pipeline_mode = #tpu.pipeline_mode<synchronous>, transform_indices = @transform_13, window_bounds = array<i64: 64, 256>}, {pipeline_mode = #tpu.pipeline_mode<synchronous>, transform_indices = @transform_14, window_bounds = array<i64: 1, 256>}, {pipeline_mode = #tpu.pipeline_mode<synchronous>, transform_indices = @transform_15, window_bounds = array<i64: 256, 64>}, {pipeline_mode = #tpu.pipeline_mode<synchronous>, transform_indices = @transform_16, window_bounds = array<i64: 1, 64>}, {pipeline_mode = #tpu.pipeline_mode<synchronous>, transform_indices = @transform_17, window_bounds = array<i64: 1, 64>}, {pipeline_mode = #tpu.pipeline_mode<synchronous>, transform_indices = @transform_18, window_bounds = array<i64: 1, 64>}, {pipeline_mode = #tpu.pipeline_mode<synchronous>, transform_indices = @transform_19, window_bounds = array<i64: 64, 192>}, {pipeline_mode = #tpu.pipeline_mode<synchronous>, transform_indices = @transform_20, window_bounds = array<i64: 1, 192>}, {pipeline_mode = #tpu.pipeline_mode<synchronous>, transform_indices = @transform_21, window_bounds = array<i64: 64, 64>}, {pipeline_mode = #tpu.pipeline_mode<synchronous>, transform_indices = @transform_22, window_bounds = array<i64: 1, 64>}, {pipeline_mode = #tpu.pipeline_mode<synchronous>, transform_indices = @transform_23, window_bounds = array<i64: 1, 64>}, {pipeline_mode = #tpu.pipeline_mode<synchronous>, transform_indices = @transform_24, window_bounds = array<i64: 1, 64>}, {pipeline_mode = #tpu.pipeline_mode<synchronous>, transform_indices = @transform_25, window_bounds = array<i64: 64, 256>}, {pipeline_mode = #tpu.pipeline_mode<synchronous>, transform_indices = @transform_26, window_bounds = array<i64: 1, 256>}, {pipeline_mode = #tpu.pipeline_mode<synchronous>, transform_indices = @transform_27, window_bounds = array<i64: 256, 64>}, {pipeline_mode = #tpu.pipeline_mode<synchronous>, transform_indices = @transform_28, window_bounds = array<i64: 1, 64>}, {pipeline_mode = #tpu.pipeline_mode<synchronous>, transform_indices = @transform_29, window_bounds = array<i64: 1, 64>}, {pipeline_mode = #tpu.pipeline_mode<synchronous>, transform_indices = @transform_30, window_bounds = array<i64: 1, 64>}, {pipeline_mode = #tpu.pipeline_mode<synchronous>, transform_indices = @transform_31, window_bounds = array<i64: 64, 128>}, {pipeline_mode = #tpu.pipeline_mode<synchronous>, transform_indices = @transform_32, window_bounds = array<i64: 1, 128>}, {pipeline_mode = #tpu.pipeline_mode<synchronous>, transform_indices = @transform_33, window_bounds = array<i64: 16, 64>}, {pipeline_mode = #tpu.pipeline_mode<synchronous>, transform_indices = @transform_34, window_bounds = array<i64: 16, 128>}]} {
    %c0 = arith.constant 0 : index
    %c0_0 = arith.constant 0 : index
    %0 = vector.load %arg1[%c0, %c0_0] : memref<8x768xf32, #tpu.memory_space<vmem>>, vector<8x768xf32>
    %c0_1 = arith.constant 0 : index
    %c0_2 = arith.constant 0 : index
    %1 = vector.load %arg2[%c0_1, %c0_2] : memref<768x64xf32, #tpu.memory_space<vmem>>, vector<768x64xf32>
    %cst = arith.constant dense<0.000000e+00> : vector<8x64xf32>
    %2 = tpu.matmul %0, %1, %cst {dimension_numbers = #tpu.dot_dimension_numbers<[1], [0], [0], [1], [0, 0, 1, 1], [], []>} : vector<8x768xf32>, vector<768x64xf32>, vector<8x64xf32> -> vector<8x64xf32>
    %c0_3 = arith.constant 0 : index
    %c0_4 = arith.constant 0 : index
    %3 = vector.load %arg3[%c0_3, %c0_4] : memref<1x64xf32, #tpu.memory_space<vmem>>, vector<1x64xf32>
    %4 = vector.broadcast %3 : vector<1x64xf32> to vector<8x64xf32>
    %5 = arith.addf %2, %4 : vector<8x64xf32>
    %c0_5 = arith.constant 0 : index
    %c0_6 = arith.constant 0 : index
    %6 = vector.load %arg5[%c0_5, %c0_6] : memref<8x64xf32, #tpu.memory_space<vmem>>, vector<8x64xf32>
    %c0_7 = arith.constant 0 : index
    %c0_8 = arith.constant 0 : index
    %7 = vector.load %arg5[%c0_7, %c0_8] : memref<8x64xf32, #tpu.memory_space<vmem>>, vector<8x64xf32>
    %8 = arith.addf %6, %7 : vector<8x64xf32>
    %c0_9 = arith.constant 0 : index
    %c0_10 = arith.constant 0 : index
    %9 = vector.load %arg4[%c0_9, %c0_10] : memref<1x64xf32, #tpu.memory_space<vmem>>, vector<1x64xf32>
    %10 = vector.extract_strided_slice %8 {offsets = [0, 0], sizes = [1, 64], strides = [1, 1]} : vector<8x64xf32> to vector<1x64xf32>
    %11 = arith.addf %9, %10 : vector<1x64xf32>
    %c0_11 = arith.constant 0 : index
    %c0_12 = arith.constant 0 : index
    %12 = vector.load %arg36[%c0_11, %c0_12] : memref<16x64xf32, #tpu.memory_space<vmem>>, vector<1x64xf32>
    tpu.vector_store %arg36[%c0_11, %c0_12], %11 {strides = array<i32>} : memref<16x64xf32, #tpu.memory_space<vmem>>, vector<1x64xf32>,
    %13 = vector.extract_strided_slice %5 {offsets = [0, 0], sizes = [4, 64], strides = [1, 1]} : vector<8x64xf32> to vector<4x64xf32>
    %14 = vector.extract_strided_slice %8 {offsets = [1, 0], sizes = [4, 64], strides = [1, 1]} : vector<8x64xf32> to vector<4x64xf32>
    %15 = arith.addf %13, %14 : vector<4x64xf32>
    %c1 = arith.constant 1 : index
    %c0_13 = arith.constant 0 : index
    %16 = vector.load %arg36[%c1, %c0_13] : memref<16x64xf32, #tpu.memory_space<vmem>>, vector<4x64xf32>
    tpu.vector_store %arg36[%c1, %c0_13], %15 {strides = array<i32>} : memref<16x64xf32, #tpu.memory_space<vmem>>, vector<4x64xf32>,
    %cst_14 = arith.constant 0.000000e+00 : f32
    %17 = vector.broadcast %cst_14 : f32 to vector<3x64xf32>
    %c5 = arith.constant 5 : index
    %c0_15 = arith.constant 0 : index
    %18 = vector.load %arg36[%c5, %c0_15] : memref<16x64xf32, #tpu.memory_space<vmem>>, vector<3x64xf32>
    tpu.vector_store %arg36[%c5, %c0_15], %17 {strides = array<i32>} : memref<16x64xf32, #tpu.memory_space<vmem>>, vector<3x64xf32>,
    %19 = vector.extract_strided_slice %8 {offsets = [0, 0], sizes = [1, 64], strides = [1, 1]} : vector<8x64xf32> to vector<1x64xf32>
    %20 = arith.addf %9, %19 : vector<1x64xf32>
    %c8 = arith.constant 8 : index
    %c0_16 = arith.constant 0 : index
    %21 = vector.load %arg36[%c8, %c0_16] : memref<16x64xf32, #tpu.memory_space<vmem>>, vector<1x64xf32>
    tpu.vector_store %arg36[%c8, %c0_16], %20 {strides = array<i32>} : memref<16x64xf32, #tpu.memory_space<vmem>>, vector<1x64xf32>,
    %22 = vector.extract_strided_slice %5 {offsets = [4, 0], sizes = [4, 64], strides = [1, 1]} : vector<8x64xf32> to vector<4x64xf32>
    %23 = vector.extract_strided_slice %8 {offsets = [1, 0], sizes = [4, 64], strides = [1, 1]} : vector<8x64xf32> to vector<4x64xf32>
    %24 = arith.addf %22, %23 : vector<4x64xf32>
    %c9 = arith.constant 9 : index
    %c0_17 = arith.constant 0 : index
    %25 = vector.load %arg36[%c9, %c0_17] : memref<16x64xf32, #tpu.memory_space<vmem>>, vector<4x64xf32>
    tpu.vector_store %arg36[%c9, %c0_17], %24 {strides = array<i32>} : memref<16x64xf32, #tpu.memory_space<vmem>>, vector<4x64xf32>,
    %cst_18 = arith.constant 0.000000e+00 : f32
    %26 = vector.broadcast %cst_18 : f32 to vector<3x64xf32>
    %c13 = arith.constant 13 : index
    %c0_19 = arith.constant 0 : index
    %27 = vector.load %arg36[%c13, %c0_19] : memref<16x64xf32, #tpu.memory_space<vmem>>, vector<3x64xf32>
    tpu.vector_store %arg36[%c13, %c0_19], %26 {strides = array<i32>} : memref<16x64xf32, #tpu.memory_space<vmem>>, vector<3x64xf32>,
    %c0_20 = arith.constant 0 : index
    %c0_21 = arith.constant 0 : index
    %28 = vector.load %arg36[%c0_20, %c0_21] : memref<16x64xf32, #tpu.memory_space<vmem>>, vector<16x64xf32>
    %29 = tpu.iota {dimensions = array<i32: 1>} : vector<8x8xi32>
    %c5_i32 = arith.constant 5 : i32
    %30 = vector.broadcast %c5_i32 : i32 to vector<8x8xi32>
    %31 = arith.cmpi slt, %29, %30 : vector<8x8xi32>
    %c0_22 = arith.constant 0 : index
    %c0_23 = arith.constant 0 : index
    %32 = vector.load %arg6[%c0_22, %c0_23] : memref<1x64xf32, #tpu.memory_space<vmem>>, vector<1x64xf32>
    %c0_24 = arith.constant 0 : index
    %c0_25 = arith.constant 0 : index
    %33 = vector.load %arg7[%c0_24, %c0_25] : memref<1x64xf32, #tpu.memory_space<vmem>>, vector<1x64xf32>
    %c0_26 = arith.constant 0 : index
    %c0_27 = arith.constant 0 : index
    %34 = vector.load %arg8[%c0_26, %c0_27] : memref<64x192xf32, #tpu.memory_space<vmem>>, vector<64x192xf32>
    %c0_28 = arith.constant 0 : index
    %c0_29 = arith.constant 0 : index
    %35 = vector.load %arg9[%c0_28, %c0_29] : memref<1x192xf32, #tpu.memory_space<vmem>>, vector<1x192xf32>
    %c0_30 = arith.constant 0 : index
    %c0_31 = arith.constant 0 : index
    %36 = vector.load %arg10[%c0_30, %c0_31] : memref<64x64xf32, #tpu.memory_space<vmem>>, vector<64x64xf32>
    %c0_32 = arith.constant 0 : index
    %c0_33 = arith.constant 0 : index
    %37 = vector.load %arg11[%c0_32, %c0_33] : memref<1x64xf32, #tpu.memory_space<vmem>>, vector<1x64xf32>
    %c0_34 = arith.constant 0 : index
    %c0_35 = arith.constant 0 : index
    %38 = vector.load %arg12[%c0_34, %c0_35] : memref<1x64xf32, #tpu.memory_space<vmem>>, vector<1x64xf32>
    %c0_36 = arith.constant 0 : index
    %c0_37 = arith.constant 0 : index
    %39 = vector.load %arg13[%c0_36, %c0_37] : memref<1x64xf32, #tpu.memory_space<vmem>>, vector<1x64xf32>
    %c0_38 = arith.constant 0 : index
    %c0_39 = arith.constant 0 : index
    %40 = vector.load %arg14[%c0_38, %c0_39] : memref<64x256xf32, #tpu.memory_space<vmem>>, vector<64x256xf32>
    %c0_40 = arith.constant 0 : index
    %c0_41 = arith.constant 0 : index
    %41 = vector.load %arg15[%c0_40, %c0_41] : memref<1x256xf32, #tpu.memory_space<vmem>>, vector<1x256xf32>
    %c0_42 = arith.constant 0 : index
    %c0_43 = arith.constant 0 : index
    %42 = vector.load %arg16[%c0_42, %c0_43] : memref<256x64xf32, #tpu.memory_space<vmem>>, vector<256x64xf32>
    %c0_44 = arith.constant 0 : index
    %c0_45 = arith.constant 0 : index
    %43 = vector.load %arg17[%c0_44, %c0_45] : memref<1x64xf32, #tpu.memory_space<vmem>>, vector<1x64xf32>
    %cst_46 = arith.constant dense<0.000000e+00> : vector<16xf32>
    %44 = vector.multi_reduction <add>, %28, %cst_46 [1] : vector<16x64xf32> to vector<16xf32>
    %45 = vector.shape_cast %44 : vector<16xf32> to vector<16x1xf32>
    %cst_47 = arith.constant 6.400000e+01 : f32
    %46 = vector.broadcast %cst_47 : f32 to vector<16x1xf32>
    %47 = arith.divf %45, %46 : vector<16x1xf32>
    %48 = vector.broadcast %47 : vector<16x1xf32> to vector<16x64xf32>
    %49 = arith.subf %28, %48 : vector<16x64xf32>
    %50 = arith.mulf %49, %49 : vector<16x64xf32>
    %cst_48 = arith.constant dense<0.000000e+00> : vector<16xf32>
    %51 = vector.multi_reduction <add>, %50, %cst_48 [1] : vector<16x64xf32> to vector<16xf32>
    %52 = vector.shape_cast %51 : vector<16xf32> to vector<16x1xf32>
    %cst_49 = arith.constant 6.400000e+01 : f32
    %53 = vector.broadcast %cst_49 : f32 to vector<16x1xf32>
    %54 = arith.divf %52, %53 : vector<16x1xf32>
    %cst_50 = arith.constant 9.99999997E-7 : f32
    %55 = vector.broadcast %cst_50 : f32 to vector<16x1xf32>
    %56 = arith.addf %54, %55 : vector<16x1xf32>
    %57 = math.rsqrt %56 : vector<16x1xf32>
    %58 = vector.broadcast %57 : vector<16x1xf32> to vector<16x64xf32>
    %59 = arith.mulf %49, %58 : vector<16x64xf32>
    %60 = vector.broadcast %32 : vector<1x64xf32> to vector<16x64xf32>
    %61 = arith.mulf %59, %60 : vector<16x64xf32>
    %62 = vector.broadcast %33 : vector<1x64xf32> to vector<16x64xf32>
    %63 = arith.addf %61, %62 : vector<16x64xf32>
    %cst_51 = arith.constant dense<0.000000e+00> : vector<16x192xf32>
    %64 = tpu.matmul %63, %34, %cst_51 {dimension_numbers = #tpu.dot_dimension_numbers<[1], [0], [0], [1], [0, 0, 1, 1], [], []>} : vector<16x64xf32>, vector<64x192xf32>, vector<16x192xf32> -> vector<16x192xf32>
    %65 = vector.broadcast %35 : vector<1x192xf32> to vector<16x192xf32>
    %66 = arith.addf %64, %65 : vector<16x192xf32>
    %67 = vector.extract_strided_slice %66 {offsets = [0, 0], sizes = [8, 64], strides = [1, 1]} : vector<16x192xf32> to vector<8x64xf32>
    %cst_52 = arith.constant 2.500000e-01 : f32
    %68 = vector.broadcast %cst_52 : f32 to vector<8x64xf32>
    %69 = arith.mulf %67, %68 : vector<8x64xf32>
    %70 = vector.extract_strided_slice %66 {offsets = [0, 64], sizes = [8, 64], strides = [1, 1]} : vector<16x192xf32> to vector<8x64xf32>
    %71 = vector.extract_strided_slice %66 {offsets = [0, 128], sizes = [8, 64], strides = [1, 1]} : vector<16x192xf32> to vector<8x64xf32>
    %72 = vector.extract_strided_slice %69 {offsets = [0, 0], sizes = [8, 16], strides = [1, 1]} : vector<8x64xf32> to vector<8x16xf32>
    %73 = vector.extract_strided_slice %70 {offsets = [0, 0], sizes = [8, 16], strides = [1, 1]} : vector<8x64xf32> to vector<8x16xf32>
    %74 = vector.extract_strided_slice %71 {offsets = [0, 0], sizes = [8, 16], strides = [1, 1]} : vector<8x64xf32> to vector<8x16xf32>
    %cst_53 = arith.constant dense<0.000000e+00> : vector<8x8xf32>
    %75 = tpu.matmul %72, %73, %cst_53 {dimension_numbers = #tpu.dot_dimension_numbers<[1], [1], [0], [0], [0, 0, 1, 0], [], []>} : vector<8x16xf32>, vector<8x16xf32>, vector<8x8xf32> -> vector<8x8xf32>
    %cst_54 = arith.constant -1.000000e+30 : f32
    %76 = vector.broadcast %cst_54 : f32 to vector<8x8xf32>
    %77 = arith.select %31, %75, %76 : vector<8x8xi1>, vector<8x8xf32>
    %cst_55 = arith.constant dense<0xFF800000> : vector<8xf32>
    %78 = vector.multi_reduction <maximumf>, %77, %cst_55 [1] : vector<8x8xf32> to vector<8xf32>
    %79 = vector.shape_cast %78 : vector<8xf32> to vector<8x1xf32>
    %80 = vector.broadcast %79 : vector<8x1xf32> to vector<8x8xf32>
    %81 = arith.subf %77, %80 : vector<8x8xf32>
    %82 = math.exp %81 : vector<8x8xf32>
    %cst_56 = arith.constant dense<0.000000e+00> : vector<8xf32>
    %83 = vector.multi_reduction <add>, %82, %cst_56 [1] : vector<8x8xf32> to vector<8xf32>
    %84 = vector.shape_cast %83 : vector<8xf32> to vector<8x1xf32>
    %85 = vector.broadcast %84 : vector<8x1xf32> to vector<8x8xf32>
    %86 = arith.divf %82, %85 : vector<8x8xf32>
    %cst_57 = arith.constant dense<0.000000e+00> : vector<8x16xf32>
    %87 = tpu.matmul %86, %74, %cst_57 {dimension_numbers = #tpu.dot_dimension_numbers<[1], [0], [0], [1], [0, 0, 1, 1], [], []>} : vector<8x8xf32>, vector<8x16xf32>, vector<8x16xf32> -> vector<8x16xf32>
    %c0_58 = arith.constant 0 : index
    %c0_59 = arith.constant 0 : index
    %88 = vector.load %arg37[%c0_58, %c0_59] : memref<16x64xf32, #tpu.memory_space<vmem>>, vector<8x16xf32>
    tpu.vector_store %arg37[%c0_58, %c0_59], %87 {strides = array<i32>} : memref<16x64xf32, #tpu.memory_space<vmem>>, vector<8x16xf32>,
    %89 = vector.extract_strided_slice %69 {offsets = [0, 16], sizes = [8, 16], strides = [1, 1]} : vector<8x64xf32> to vector<8x16xf32>
    %90 = vector.extract_strided_slice %70 {offsets = [0, 16], sizes = [8, 16], strides = [1, 1]} : vector<8x64xf32> to vector<8x16xf32>
    %91 = vector.extract_strided_slice %71 {offsets = [0, 16], sizes = [8, 16], strides = [1, 1]} : vector<8x64xf32> to vector<8x16xf32>
    %cst_60 = arith.constant dense<0.000000e+00> : vector<8x8xf32>
    %92 = tpu.matmul %89, %90, %cst_60 {dimension_numbers = #tpu.dot_dimension_numbers<[1], [1], [0], [0], [0, 0, 1, 0], [], []>} : vector<8x16xf32>, vector<8x16xf32>, vector<8x8xf32> -> vector<8x8xf32>
    %cst_61 = arith.constant -1.000000e+30 : f32
    %93 = vector.broadcast %cst_61 : f32 to vector<8x8xf32>
    %94 = arith.select %31, %92, %93 : vector<8x8xi1>, vector<8x8xf32>
    %cst_62 = arith.constant dense<0xFF800000> : vector<8xf32>
    %95 = vector.multi_reduction <maximumf>, %94, %cst_62 [1] : vector<8x8xf32> to vector<8xf32>
    %96 = vector.shape_cast %95 : vector<8xf32> to vector<8x1xf32>
    %97 = vector.broadcast %96 : vector<8x1xf32> to vector<8x8xf32>
    %98 = arith.subf %94, %97 : vector<8x8xf32>
    %99 = math.exp %98 : vector<8x8xf32>
    %cst_63 = arith.constant dense<0.000000e+00> : vector<8xf32>
    %100 = vector.multi_reduction <add>, %99, %cst_63 [1] : vector<8x8xf32> to vector<8xf32>
    %101 = vector.shape_cast %100 : vector<8xf32> to vector<8x1xf32>
    %102 = vector.broadcast %101 : vector<8x1xf32> to vector<8x8xf32>
    %103 = arith.divf %99, %102 : vector<8x8xf32>
    %cst_64 = arith.constant dense<0.000000e+00> : vector<8x16xf32>
    %104 = tpu.matmul %103, %91, %cst_64 {dimension_numbers = #tpu.dot_dimension_numbers<[1], [0], [0], [1], [0, 0, 1, 1], [], []>} : vector<8x8xf32>, vector<8x16xf32>, vector<8x16xf32> -> vector<8x16xf32>
    %c0_65 = arith.constant 0 : index
    %c16 = arith.constant 16 : index
    %105 = vector.load %arg37[%c0_65, %c16] : memref<16x64xf32, #tpu.memory_space<vmem>>, vector<8x16xf32>
    tpu.vector_store %arg37[%c0_65, %c16], %104 {strides = array<i32>} : memref<16x64xf32, #tpu.memory_space<vmem>>, vector<8x16xf32>,
    %106 = vector.extract_strided_slice %69 {offsets = [0, 32], sizes = [8, 16], strides = [1, 1]} : vector<8x64xf32> to vector<8x16xf32>
    %107 = vector.extract_strided_slice %70 {offsets = [0, 32], sizes = [8, 16], strides = [1, 1]} : vector<8x64xf32> to vector<8x16xf32>
    %108 = vector.extract_strided_slice %71 {offsets = [0, 32], sizes = [8, 16], strides = [1, 1]} : vector<8x64xf32> to vector<8x16xf32>
    %cst_66 = arith.constant dense<0.000000e+00> : vector<8x8xf32>
    %109 = tpu.matmul %106, %107, %cst_66 {dimension_numbers = #tpu.dot_dimension_numbers<[1], [1], [0], [0], [0, 0, 1, 0], [], []>} : vector<8x16xf32>, vector<8x16xf32>, vector<8x8xf32> -> vector<8x8xf32>
    %cst_67 = arith.constant -1.000000e+30 : f32
    %110 = vector.broadcast %cst_67 : f32 to vector<8x8xf32>
    %111 = arith.select %31, %109, %110 : vector<8x8xi1>, vector<8x8xf32>
    %cst_68 = arith.constant dense<0xFF800000> : vector<8xf32>
    %112 = vector.multi_reduction <maximumf>, %111, %cst_68 [1] : vector<8x8xf32> to vector<8xf32>
    %113 = vector.shape_cast %112 : vector<8xf32> to vector<8x1xf32>
    %114 = vector.broadcast %113 : vector<8x1xf32> to vector<8x8xf32>
    %115 = arith.subf %111, %114 : vector<8x8xf32>
    %116 = math.exp %115 : vector<8x8xf32>
    %cst_69 = arith.constant dense<0.000000e+00> : vector<8xf32>
    %117 = vector.multi_reduction <add>, %116, %cst_69 [1] : vector<8x8xf32> to vector<8xf32>
    %118 = vector.shape_cast %117 : vector<8xf32> to vector<8x1xf32>
    %119 = vector.broadcast %118 : vector<8x1xf32> to vector<8x8xf32>
    %120 = arith.divf %116, %119 : vector<8x8xf32>
    %cst_70 = arith.constant dense<0.000000e+00> : vector<8x16xf32>
    %121 = tpu.matmul %120, %108, %cst_70 {dimension_numbers = #tpu.dot_dimension_numbers<[1], [0], [0], [1], [0, 0, 1, 1], [], []>} : vector<8x8xf32>, vector<8x16xf32>, vector<8x16xf32> -> vector<8x16xf32>
    %c0_71 = arith.constant 0 : index
    %c32 = arith.constant 32 : index
    %122 = vector.load %arg37[%c0_71, %c32] : memref<16x64xf32, #tpu.memory_space<vmem>>, vector<8x16xf32>
    tpu.vector_store %arg37[%c0_71, %c32], %121 {strides = array<i32>} : memref<16x64xf32, #tpu.memory_space<vmem>>, vector<8x16xf32>,
    %123 = vector.extract_strided_slice %69 {offsets = [0, 48], sizes = [8, 16], strides = [1, 1]} : vector<8x64xf32> to vector<8x16xf32>
    %124 = vector.extract_strided_slice %70 {offsets = [0, 48], sizes = [8, 16], strides = [1, 1]} : vector<8x64xf32> to vector<8x16xf32>
    %125 = vector.extract_strided_slice %71 {offsets = [0, 48], sizes = [8, 16], strides = [1, 1]} : vector<8x64xf32> to vector<8x16xf32>
    %cst_72 = arith.constant dense<0.000000e+00> : vector<8x8xf32>
    %126 = tpu.matmul %123, %124, %cst_72 {dimension_numbers = #tpu.dot_dimension_numbers<[1], [1], [0], [0], [0, 0, 1, 0], [], []>} : vector<8x16xf32>, vector<8x16xf32>, vector<8x8xf32> -> vector<8x8xf32>
    %cst_73 = arith.constant -1.000000e+30 : f32
    %127 = vector.broadcast %cst_73 : f32 to vector<8x8xf32>
    %128 = arith.select %31, %126, %127 : vector<8x8xi1>, vector<8x8xf32>
    %cst_74 = arith.constant dense<0xFF800000> : vector<8xf32>
    %129 = vector.multi_reduction <maximumf>, %128, %cst_74 [1] : vector<8x8xf32> to vector<8xf32>
    %130 = vector.shape_cast %129 : vector<8xf32> to vector<8x1xf32>
    %131 = vector.broadcast %130 : vector<8x1xf32> to vector<8x8xf32>
    %132 = arith.subf %128, %131 : vector<8x8xf32>
    %133 = math.exp %132 : vector<8x8xf32>
    %cst_75 = arith.constant dense<0.000000e+00> : vector<8xf32>
    %134 = vector.multi_reduction <add>, %133, %cst_75 [1] : vector<8x8xf32> to vector<8xf32>
    %135 = vector.shape_cast %134 : vector<8xf32> to vector<8x1xf32>
    %136 = vector.broadcast %135 : vector<8x1xf32> to vector<8x8xf32>
    %137 = arith.divf %133, %136 : vector<8x8xf32>
    %cst_76 = arith.constant dense<0.000000e+00> : vector<8x16xf32>
    %138 = tpu.matmul %137, %125, %cst_76 {dimension_numbers = #tpu.dot_dimension_numbers<[1], [0], [0], [1], [0, 0, 1, 1], [], []>} : vector<8x8xf32>, vector<8x16xf32>, vector<8x16xf32> -> vector<8x16xf32>
    %c0_77 = arith.constant 0 : index
    %c48 = arith.constant 48 : index
    %139 = vector.load %arg37[%c0_77, %c48] : memref<16x64xf32, #tpu.memory_space<vmem>>, vector<8x16xf32>
    tpu.vector_store %arg37[%c0_77, %c48], %138 {strides = array<i32>} : memref<16x64xf32, #tpu.memory_space<vmem>>, vector<8x16xf32>,
    %140 = vector.extract_strided_slice %66 {offsets = [8, 0], sizes = [8, 64], strides = [1, 1]} : vector<16x192xf32> to vector<8x64xf32>
    %cst_78 = arith.constant 2.500000e-01 : f32
    %141 = vector.broadcast %cst_78 : f32 to vector<8x64xf32>
    %142 = arith.mulf %140, %141 : vector<8x64xf32>
    %143 = vector.extract_strided_slice %66 {offsets = [8, 64], sizes = [8, 64], strides = [1, 1]} : vector<16x192xf32> to vector<8x64xf32>
    %144 = vector.extract_strided_slice %66 {offsets = [8, 128], sizes = [8, 64], strides = [1, 1]} : vector<16x192xf32> to vector<8x64xf32>
    %145 = vector.extract_strided_slice %142 {offsets = [0, 0], sizes = [8, 16], strides = [1, 1]} : vector<8x64xf32> to vector<8x16xf32>
    %146 = vector.extract_strided_slice %143 {offsets = [0, 0], sizes = [8, 16], strides = [1, 1]} : vector<8x64xf32> to vector<8x16xf32>
    %147 = vector.extract_strided_slice %144 {offsets = [0, 0], sizes = [8, 16], strides = [1, 1]} : vector<8x64xf32> to vector<8x16xf32>
    %cst_79 = arith.constant dense<0.000000e+00> : vector<8x8xf32>
    %148 = tpu.matmul %145, %146, %cst_79 {dimension_numbers = #tpu.dot_dimension_numbers<[1], [1], [0], [0], [0, 0, 1, 0], [], []>} : vector<8x16xf32>, vector<8x16xf32>, vector<8x8xf32> -> vector<8x8xf32>
    %cst_80 = arith.constant -1.000000e+30 : f32
    %149 = vector.broadcast %cst_80 : f32 to vector<8x8xf32>
    %150 = arith.select %31, %148, %149 : vector<8x8xi1>, vector<8x8xf32>
    %cst_81 = arith.constant dense<0xFF800000> : vector<8xf32>
    %151 = vector.multi_reduction <maximumf>, %150, %cst_81 [1] : vector<8x8xf32> to vector<8xf32>
    %152 = vector.shape_cast %151 : vector<8xf32> to vector<8x1xf32>
    %153 = vector.broadcast %152 : vector<8x1xf32> to vector<8x8xf32>
    %154 = arith.subf %150, %153 : vector<8x8xf32>
    %155 = math.exp %154 : vector<8x8xf32>
    %cst_82 = arith.constant dense<0.000000e+00> : vector<8xf32>
    %156 = vector.multi_reduction <add>, %155, %cst_82 [1] : vector<8x8xf32> to vector<8xf32>
    %157 = vector.shape_cast %156 : vector<8xf32> to vector<8x1xf32>
    %158 = vector.broadcast %157 : vector<8x1xf32> to vector<8x8xf32>
    %159 = arith.divf %155, %158 : vector<8x8xf32>
    %cst_83 = arith.constant dense<0.000000e+00> : vector<8x16xf32>
    %160 = tpu.matmul %159, %147, %cst_83 {dimension_numbers = #tpu.dot_dimension_numbers<[1], [0], [0], [1], [0, 0, 1, 1], [], []>} : vector<8x8xf32>, vector<8x16xf32>, vector<8x16xf32> -> vector<8x16xf32>
    %c8_84 = arith.constant 8 : index
    %c0_85 = arith.constant 0 : index
    %161 = vector.load %arg37[%c8_84, %c0_85] : memref<16x64xf32, #tpu.memory_space<vmem>>, vector<8x16xf32>
    tpu.vector_store %arg37[%c8_84, %c0_85], %160 {strides = array<i32>} : memref<16x64xf32, #tpu.memory_space<vmem>>, vector<8x16xf32>,
    %162 = vector.extract_strided_slice %142 {offsets = [0, 16], sizes = [8, 16], strides = [1, 1]} : vector<8x64xf32> to vector<8x16xf32>
    %163 = vector.extract_strided_slice %143 {offsets = [0, 16], sizes = [8, 16], strides = [1, 1]} : vector<8x64xf32> to vector<8x16xf32>
    %164 = vector.extract_strided_slice %144 {offsets = [0, 16], sizes = [8, 16], strides = [1, 1]} : vector<8x64xf32> to vector<8x16xf32>
    %cst_86 = arith.constant dense<0.000000e+00> : vector<8x8xf32>
    %165 = tpu.matmul %162, %163, %cst_86 {dimension_numbers = #tpu.dot_dimension_numbers<[1], [1], [0], [0], [0, 0, 1, 0], [], []>} : vector<8x16xf32>, vector<8x16xf32>, vector<8x8xf32> -> vector<8x8xf32>
    %cst_87 = arith.constant -1.000000e+30 : f32
    %166 = vector.broadcast %cst_87 : f32 to vector<8x8xf32>
    %167 = arith.select %31, %165, %166 : vector<8x8xi1>, vector<8x8xf32>
    %cst_88 = arith.constant dense<0xFF800000> : vector<8xf32>
    %168 = vector.multi_reduction <maximumf>, %167, %cst_88 [1] : vector<8x8xf32> to vector<8xf32>
    %169 = vector.shape_cast %168 : vector<8xf32> to vector<8x1xf32>
    %170 = vector.broadcast %169 : vector<8x1xf32> to vector<8x8xf32>
    %171 = arith.subf %167, %170 : vector<8x8xf32>
    %172 = math.exp %171 : vector<8x8xf32>
    %cst_89 = arith.constant dense<0.000000e+00> : vector<8xf32>
    %173 = vector.multi_reduction <add>, %172, %cst_89 [1] : vector<8x8xf32> to vector<8xf32>
    %174 = vector.shape_cast %173 : vector<8xf32> to vector<8x1xf32>
    %175 = vector.broadcast %174 : vector<8x1xf32> to vector<8x8xf32>
    %176 = arith.divf %172, %175 : vector<8x8xf32>
    %cst_90 = arith.constant dense<0.000000e+00> : vector<8x16xf32>
    %177 = tpu.matmul %176, %164, %cst_90 {dimension_numbers = #tpu.dot_dimension_numbers<[1], [0], [0], [1], [0, 0, 1, 1], [], []>} : vector<8x8xf32>, vector<8x16xf32>, vector<8x16xf32> -> vector<8x16xf32>
    %c8_91 = arith.constant 8 : index
    %c16_92 = arith.constant 16 : index
    %178 = vector.load %arg37[%c8_91, %c16_92] : memref<16x64xf32, #tpu.memory_space<vmem>>, vector<8x16xf32>
    tpu.vector_store %arg37[%c8_91, %c16_92], %177 {strides = array<i32>} : memref<16x64xf32, #tpu.memory_space<vmem>>, vector<8x16xf32>,
    %179 = vector.extract_strided_slice %142 {offsets = [0, 32], sizes = [8, 16], strides = [1, 1]} : vector<8x64xf32> to vector<8x16xf32>
    %180 = vector.extract_strided_slice %143 {offsets = [0, 32], sizes = [8, 16], strides = [1, 1]} : vector<8x64xf32> to vector<8x16xf32>
    %181 = vector.extract_strided_slice %144 {offsets = [0, 32], sizes = [8, 16], strides = [1, 1]} : vector<8x64xf32> to vector<8x16xf32>
    %cst_93 = arith.constant dense<0.000000e+00> : vector<8x8xf32>
    %182 = tpu.matmul %179, %180, %cst_93 {dimension_numbers = #tpu.dot_dimension_numbers<[1], [1], [0], [0], [0, 0, 1, 0], [], []>} : vector<8x16xf32>, vector<8x16xf32>, vector<8x8xf32> -> vector<8x8xf32>
    %cst_94 = arith.constant -1.000000e+30 : f32
    %183 = vector.broadcast %cst_94 : f32 to vector<8x8xf32>
    %184 = arith.select %31, %182, %183 : vector<8x8xi1>, vector<8x8xf32>
    %cst_95 = arith.constant dense<0xFF800000> : vector<8xf32>
    %185 = vector.multi_reduction <maximumf>, %184, %cst_95 [1] : vector<8x8xf32> to vector<8xf32>
    %186 = vector.shape_cast %185 : vector<8xf32> to vector<8x1xf32>
    %187 = vector.broadcast %186 : vector<8x1xf32> to vector<8x8xf32>
    %188 = arith.subf %184, %187 : vector<8x8xf32>
    %189 = math.exp %188 : vector<8x8xf32>
    %cst_96 = arith.constant dense<0.000000e+00> : vector<8xf32>
    %190 = vector.multi_reduction <add>, %189, %cst_96 [1] : vector<8x8xf32> to vector<8xf32>
    %191 = vector.shape_cast %190 : vector<8xf32> to vector<8x1xf32>
    %192 = vector.broadcast %191 : vector<8x1xf32> to vector<8x8xf32>
    %193 = arith.divf %189, %192 : vector<8x8xf32>
    %cst_97 = arith.constant dense<0.000000e+00> : vector<8x16xf32>
    %194 = tpu.matmul %193, %181, %cst_97 {dimension_numbers = #tpu.dot_dimension_numbers<[1], [0], [0], [1], [0, 0, 1, 1], [], []>} : vector<8x8xf32>, vector<8x16xf32>, vector<8x16xf32> -> vector<8x16xf32>
    %c8_98 = arith.constant 8 : index
    %c32_99 = arith.constant 32 : index
    %195 = vector.load %arg37[%c8_98, %c32_99] : memref<16x64xf32, #tpu.memory_space<vmem>>, vector<8x16xf32>
    tpu.vector_store %arg37[%c8_98, %c32_99], %194 {strides = array<i32>} : memref<16x64xf32, #tpu.memory_space<vmem>>, vector<8x16xf32>,
    %196 = vector.extract_strided_slice %142 {offsets = [0, 48], sizes = [8, 16], strides = [1, 1]} : vector<8x64xf32> to vector<8x16xf32>
    %197 = vector.extract_strided_slice %143 {offsets = [0, 48], sizes = [8, 16], strides = [1, 1]} : vector<8x64xf32> to vector<8x16xf32>
    %198 = vector.extract_strided_slice %144 {offsets = [0, 48], sizes = [8, 16], strides = [1, 1]} : vector<8x64xf32> to vector<8x16xf32>
    %cst_100 = arith.constant dense<0.000000e+00> : vector<8x8xf32>
    %199 = tpu.matmul %196, %197, %cst_100 {dimension_numbers = #tpu.dot_dimension_numbers<[1], [1], [0], [0], [0, 0, 1, 0], [], []>} : vector<8x16xf32>, vector<8x16xf32>, vector<8x8xf32> -> vector<8x8xf32>
    %cst_101 = arith.constant -1.000000e+30 : f32
    %200 = vector.broadcast %cst_101 : f32 to vector<8x8xf32>
    %201 = arith.select %31, %199, %200 : vector<8x8xi1>, vector<8x8xf32>
    %cst_102 = arith.constant dense<0xFF800000> : vector<8xf32>
    %202 = vector.multi_reduction <maximumf>, %201, %cst_102 [1] : vector<8x8xf32> to vector<8xf32>
    %203 = vector.shape_cast %202 : vector<8xf32> to vector<8x1xf32>
    %204 = vector.broadcast %203 : vector<8x1xf32> to vector<8x8xf32>
    %205 = arith.subf %201, %204 : vector<8x8xf32>
    %206 = math.exp %205 : vector<8x8xf32>
    %cst_103 = arith.constant dense<0.000000e+00> : vector<8xf32>
    %207 = vector.multi_reduction <add>, %206, %cst_103 [1] : vector<8x8xf32> to vector<8xf32>
    %208 = vector.shape_cast %207 : vector<8xf32> to vector<8x1xf32>
    %209 = vector.broadcast %208 : vector<8x1xf32> to vector<8x8xf32>
    %210 = arith.divf %206, %209 : vector<8x8xf32>
    %cst_104 = arith.constant dense<0.000000e+00> : vector<8x16xf32>
    %211 = tpu.matmul %210, %198, %cst_104 {dimension_numbers = #tpu.dot_dimension_numbers<[1], [0], [0], [1], [0, 0, 1, 1], [], []>} : vector<8x8xf32>, vector<8x16xf32>, vector<8x16xf32> -> vector<8x16xf32>
    %c8_105 = arith.constant 8 : index
    %c48_106 = arith.constant 48 : index
    %212 = vector.load %arg37[%c8_105, %c48_106] : memref<16x64xf32, #tpu.memory_space<vmem>>, vector<8x16xf32>
    tpu.vector_store %arg37[%c8_105, %c48_106], %211 {strides = array<i32>} : memref<16x64xf32, #tpu.memory_space<vmem>>, vector<8x16xf32>,
    %c0_107 = arith.constant 0 : index
    %c0_108 = arith.constant 0 : index
    %213 = vector.load %arg37[%c0_107, %c0_108] : memref<16x64xf32, #tpu.memory_space<vmem>>, vector<16x64xf32>
    %cst_109 = arith.constant dense<0.000000e+00> : vector<16x64xf32>
    %214 = tpu.matmul %213, %36, %cst_109 {dimension_numbers = #tpu.dot_dimension_numbers<[1], [0], [0], [1], [0, 0, 1, 1], [], []>} : vector<16x64xf32>, vector<64x64xf32>, vector<16x64xf32> -> vector<16x64xf32>
    %215 = vector.broadcast %37 : vector<1x64xf32> to vector<16x64xf32>
    %216 = arith.addf %214, %215 : vector<16x64xf32>
    %217 = arith.addf %28, %216 : vector<16x64xf32>
    %cst_110 = arith.constant dense<0.000000e+00> : vector<16xf32>
    %218 = vector.multi_reduction <add>, %217, %cst_110 [1] : vector<16x64xf32> to vector<16xf32>
    %219 = vector.shape_cast %218 : vector<16xf32> to vector<16x1xf32>
    %cst_111 = arith.constant 6.400000e+01 : f32
    %220 = vector.broadcast %cst_111 : f32 to vector<16x1xf32>
    %221 = arith.divf %219, %220 : vector<16x1xf32>
    %222 = vector.broadcast %221 : vector<16x1xf32> to vector<16x64xf32>
    %223 = arith.subf %217, %222 : vector<16x64xf32>
    %224 = arith.mulf %223, %223 : vector<16x64xf32>
    %cst_112 = arith.constant dense<0.000000e+00> : vector<16xf32>
    %225 = vector.multi_reduction <add>, %224, %cst_112 [1] : vector<16x64xf32> to vector<16xf32>
    %226 = vector.shape_cast %225 : vector<16xf32> to vector<16x1xf32>
    %cst_113 = arith.constant 6.400000e+01 : f32
    %227 = vector.broadcast %cst_113 : f32 to vector<16x1xf32>
    %228 = arith.divf %226, %227 : vector<16x1xf32>
    %cst_114 = arith.constant 9.99999997E-7 : f32
    %229 = vector.broadcast %cst_114 : f32 to vector<16x1xf32>
    %230 = arith.addf %228, %229 : vector<16x1xf32>
    %231 = math.rsqrt %230 : vector<16x1xf32>
    %232 = vector.broadcast %231 : vector<16x1xf32> to vector<16x64xf32>
    %233 = arith.mulf %223, %232 : vector<16x64xf32>
    %234 = vector.broadcast %38 : vector<1x64xf32> to vector<16x64xf32>
    %235 = arith.mulf %233, %234 : vector<16x64xf32>
    %236 = vector.broadcast %39 : vector<1x64xf32> to vector<16x64xf32>
    %237 = arith.addf %235, %236 : vector<16x64xf32>
    %cst_115 = arith.constant dense<0.000000e+00> : vector<16x256xf32>
    %238 = tpu.matmul %237, %40, %cst_115 {dimension_numbers = #tpu.dot_dimension_numbers<[1], [0], [0], [1], [0, 0, 1, 1], [], []>} : vector<16x64xf32>, vector<64x256xf32>, vector<16x256xf32> -> vector<16x256xf32>
    %239 = vector.broadcast %41 : vector<1x256xf32> to vector<16x256xf32>
    %240 = arith.addf %238, %239 : vector<16x256xf32>
    %cst_116 = arith.constant 5.000000e-01 : f32
    %241 = vector.broadcast %cst_116 : f32 to vector<16x256xf32>
    %242 = arith.mulf %241, %240 : vector<16x256xf32>
    %cst_117 = arith.constant 0.707106769 : f32
    %243 = vector.broadcast %cst_117 : f32 to vector<16x256xf32>
    %244 = arith.mulf %240, %243 : vector<16x256xf32>
    %cst_118 = arith.constant 0.000000e+00 : f32
    %245 = vector.broadcast %cst_118 : f32 to vector<16x256xf32>
    %246 = arith.cmpf oge, %244, %245 : vector<16x256xf32>
    %cst_119 = arith.constant 1.000000e+00 : f32
    %cst_120 = arith.constant -1.000000e+00 : f32
    %247 = vector.broadcast %cst_119 : f32 to vector<16x256xf32>
    %248 = vector.broadcast %cst_120 : f32 to vector<16x256xf32>
    %249 = arith.select %246, %247, %248 : vector<16x256xi1>, vector<16x256xf32>
    %250 = math.absf %244 : vector<16x256xf32>
    %cst_121 = arith.constant 0.327591091 : f32
    %251 = vector.broadcast %cst_121 : f32 to vector<16x256xf32>
    %252 = arith.mulf %251, %250 : vector<16x256xf32>
    %cst_122 = arith.constant 1.000000e+00 : f32
    %253 = vector.broadcast %cst_122 : f32 to vector<16x256xf32>
    %254 = arith.addf %253, %252 : vector<16x256xf32>
    %cst_123 = arith.constant 1.000000e+00 : f32
    %255 = vector.broadcast %cst_123 : f32 to vector<16x256xf32>
    %256 = arith.divf %255, %254 : vector<16x256xf32>
    %cst_124 = arith.constant 1.06140542 : f32
    %257 = vector.broadcast %cst_124 : f32 to vector<16x256xf32>
    %258 = arith.mulf %257, %256 : vector<16x256xf32>
    %cst_125 = arith.constant -1.45315206 : f32
    %259 = vector.broadcast %cst_125 : f32 to vector<16x256xf32>
    %260 = arith.addf %258, %259 : vector<16x256xf32>
    %261 = arith.mulf %260, %256 : vector<16x256xf32>
    %cst_126 = arith.constant 1.42141378 : f32
    %262 = vector.broadcast %cst_126 : f32 to vector<16x256xf32>
    %263 = arith.addf %261, %262 : vector<16x256xf32>
    %264 = arith.mulf %263, %256 : vector<16x256xf32>
    %cst_127 = arith.constant -0.284496725 : f32
    %265 = vector.broadcast %cst_127 : f32 to vector<16x256xf32>
    %266 = arith.addf %264, %265 : vector<16x256xf32>
    %267 = arith.mulf %266, %256 : vector<16x256xf32>
    %cst_128 = arith.constant 0.254829586 : f32
    %268 = vector.broadcast %cst_128 : f32 to vector<16x256xf32>
    %269 = arith.addf %267, %268 : vector<16x256xf32>
    %270 = arith.mulf %269, %256 : vector<16x256xf32>
    %cst_129 = arith.constant 0.000000e+00 : f32
    %271 = vector.broadcast %cst_129 : f32 to vector<16x256xf32>
    %272 = arith.subf %271, %250 : vector<16x256xf32>
    %273 = arith.mulf %272, %250 : vector<16x256xf32>
    %274 = math.exp %273 : vector<16x256xf32>
    %275 = arith.mulf %270, %274 : vector<16x256xf32>
    %cst_130 = arith.constant 1.000000e+00 : f32
    %276 = vector.broadcast %cst_130 : f32 to vector<16x256xf32>
    %277 = arith.subf %276, %275 : vector<16x256xf32>
    %278 = arith.mulf %249, %277 : vector<16x256xf32>
    %cst_131 = arith.constant 1.000000e+00 : f32
    %279 = vector.broadcast %cst_131 : f32 to vector<16x256xf32>
    %280 = arith.addf %279, %278 : vector<16x256xf32>
    %281 = arith.mulf %242, %280 : vector<16x256xf32>
    %cst_132 = arith.constant dense<0.000000e+00> : vector<16x64xf32>
    %282 = tpu.matmul %281, %42, %cst_132 {dimension_numbers = #tpu.dot_dimension_numbers<[1], [0], [0], [1], [0, 0, 1, 1], [], []>} : vector<16x256xf32>, vector<256x64xf32>, vector<16x64xf32> -> vector<16x64xf32>
    %283 = vector.broadcast %43 : vector<1x64xf32> to vector<16x64xf32>
    %284 = arith.addf %282, %283 : vector<16x64xf32>
    %285 = arith.addf %217, %284 : vector<16x64xf32>
    %c0_133 = arith.constant 0 : index
    %c0_134 = arith.constant 0 : index
    %286 = vector.load %arg18[%c0_133, %c0_134] : memref<1x64xf32, #tpu.memory_space<vmem>>, vector<1x64xf32>
    %c0_135 = arith.constant 0 : index
    %c0_136 = arith.constant 0 : index
    %287 = vector.load %arg19[%c0_135, %c0_136] : memref<1x64xf32, #tpu.memory_space<vmem>>, vector<1x64xf32>
    %c0_137 = arith.constant 0 : index
    %c0_138 = arith.constant 0 : index
    %288 = vector.load %arg20[%c0_137, %c0_138] : memref<64x192xf32, #tpu.memory_space<vmem>>, vector<64x192xf32>
    %c0_139 = arith.constant 0 : index
    %c0_140 = arith.constant 0 : index
    %289 = vector.load %arg21[%c0_139, %c0_140] : memref<1x192xf32, #tpu.memory_space<vmem>>, vector<1x192xf32>
    %c0_141 = arith.constant 0 : index
    %c0_142 = arith.constant 0 : index
    %290 = vector.load %arg22[%c0_141, %c0_142] : memref<64x64xf32, #tpu.memory_space<vmem>>, vector<64x64xf32>
    %c0_143 = arith.constant 0 : index
    %c0_144 = arith.constant 0 : index
    %291 = vector.load %arg23[%c0_143, %c0_144] : memref<1x64xf32, #tpu.memory_space<vmem>>, vector<1x64xf32>
    %c0_145 = arith.constant 0 : index
    %c0_146 = arith.constant 0 : index
    %292 = vector.load %arg24[%c0_145, %c0_146] : memref<1x64xf32, #tpu.memory_space<vmem>>, vector<1x64xf32>
    %c0_147 = arith.constant 0 : index
    %c0_148 = arith.constant 0 : index
    %293 = vector.load %arg25[%c0_147, %c0_148] : memref<1x64xf32, #tpu.memory_space<vmem>>, vector<1x64xf32>
    %c0_149 = arith.constant 0 : index
    %c0_150 = arith.constant 0 : index
    %294 = vector.load %arg26[%c0_149, %c0_150] : memref<64x256xf32, #tpu.memory_space<vmem>>, vector<64x256xf32>
    %c0_151 = arith.constant 0 : index
    %c0_152 = arith.constant 0 : index
    %295 = vector.load %arg27[%c0_151, %c0_152] : memref<1x256xf32, #tpu.memory_space<vmem>>, vector<1x256xf32>
    %c0_153 = arith.constant 0 : index
    %c0_154 = arith.constant 0 : index
    %296 = vector.load %arg28[%c0_153, %c0_154] : memref<256x64xf32, #tpu.memory_space<vmem>>, vector<256x64xf32>
    %c0_155 = arith.constant 0 : index
    %c0_156 = arith.constant 0 : index
    %297 = vector.load %arg29[%c0_155, %c0_156] : memref<1x64xf32, #tpu.memory_space<vmem>>, vector<1x64xf32>
    %cst_157 = arith.constant dense<0.000000e+00> : vector<16xf32>
    %298 = vector.multi_reduction <add>, %285, %cst_157 [1] : vector<16x64xf32> to vector<16xf32>
    %299 = vector.shape_cast %298 : vector<16xf32> to vector<16x1xf32>
    %cst_158 = arith.constant 6.400000e+01 : f32
    %300 = vector.broadcast %cst_158 : f32 to vector<16x1xf32>
    %301 = arith.divf %299, %300 : vector<16x1xf32>
    %302 = vector.broadcast %301 : vector<16x1xf32> to vector<16x64xf32>
    %303 = arith.subf %285, %302 : vector<16x64xf32>
    %304 = arith.mulf %303, %303 : vector<16x64xf32>
    %cst_159 = arith.constant dense<0.000000e+00> : vector<16xf32>
    %305 = vector.multi_reduction <add>, %304, %cst_159 [1] : vector<16x64xf32> to vector<16xf32>
    %306 = vector.shape_cast %305 : vector<16xf32> to vector<16x1xf32>
    %cst_160 = arith.constant 6.400000e+01 : f32
    %307 = vector.broadcast %cst_160 : f32 to vector<16x1xf32>
    %308 = arith.divf %306, %307 : vector<16x1xf32>
    %cst_161 = arith.constant 9.99999997E-7 : f32
    %309 = vector.broadcast %cst_161 : f32 to vector<16x1xf32>
    %310 = arith.addf %308, %309 : vector<16x1xf32>
    %311 = math.rsqrt %310 : vector<16x1xf32>
    %312 = vector.broadcast %311 : vector<16x1xf32> to vector<16x64xf32>
    %313 = arith.mulf %303, %312 : vector<16x64xf32>
    %314 = vector.broadcast %286 : vector<1x64xf32> to vector<16x64xf32>
    %315 = arith.mulf %313, %314 : vector<16x64xf32>
    %316 = vector.broadcast %287 : vector<1x64xf32> to vector<16x64xf32>
    %317 = arith.addf %315, %316 : vector<16x64xf32>
    %cst_162 = arith.constant dense<0.000000e+00> : vector<16x192xf32>
    %318 = tpu.matmul %317, %288, %cst_162 {dimension_numbers = #tpu.dot_dimension_numbers<[1], [0], [0], [1], [0, 0, 1, 1], [], []>} : vector<16x64xf32>, vector<64x192xf32>, vector<16x192xf32> -> vector<16x192xf32>
    %319 = vector.broadcast %289 : vector<1x192xf32> to vector<16x192xf32>
    %320 = arith.addf %318, %319 : vector<16x192xf32>
    %321 = vector.extract_strided_slice %320 {offsets = [0, 0], sizes = [8, 64], strides = [1, 1]} : vector<16x192xf32> to vector<8x64xf32>
    %cst_163 = arith.constant 2.500000e-01 : f32
    %322 = vector.broadcast %cst_163 : f32 to vector<8x64xf32>
    %323 = arith.mulf %321, %322 : vector<8x64xf32>
    %324 = vector.extract_strided_slice %320 {offsets = [0, 64], sizes = [8, 64], strides = [1, 1]} : vector<16x192xf32> to vector<8x64xf32>
    %325 = vector.extract_strided_slice %320 {offsets = [0, 128], sizes = [8, 64], strides = [1, 1]} : vector<16x192xf32> to vector<8x64xf32>
    %326 = vector.extract_strided_slice %323 {offsets = [0, 0], sizes = [8, 16], strides = [1, 1]} : vector<8x64xf32> to vector<8x16xf32>
    %327 = vector.extract_strided_slice %324 {offsets = [0, 0], sizes = [8, 16], strides = [1, 1]} : vector<8x64xf32> to vector<8x16xf32>
    %328 = vector.extract_strided_slice %325 {offsets = [0, 0], sizes = [8, 16], strides = [1, 1]} : vector<8x64xf32> to vector<8x16xf32>
    %cst_164 = arith.constant dense<0.000000e+00> : vector<8x8xf32>
    %329 = tpu.matmul %326, %327, %cst_164 {dimension_numbers = #tpu.dot_dimension_numbers<[1], [1], [0], [0], [0, 0, 1, 0], [], []>} : vector<8x16xf32>, vector<8x16xf32>, vector<8x8xf32> -> vector<8x8xf32>
    %cst_165 = arith.constant -1.000000e+30 : f32
    %330 = vector.broadcast %cst_165 : f32 to vector<8x8xf32>
    %331 = arith.select %31, %329, %330 : vector<8x8xi1>, vector<8x8xf32>
    %cst_166 = arith.constant dense<0xFF800000> : vector<8xf32>
    %332 = vector.multi_reduction <maximumf>, %331, %cst_166 [1] : vector<8x8xf32> to vector<8xf32>
    %333 = vector.shape_cast %332 : vector<8xf32> to vector<8x1xf32>
    %334 = vector.broadcast %333 : vector<8x1xf32> to vector<8x8xf32>
    %335 = arith.subf %331, %334 : vector<8x8xf32>
    %336 = math.exp %335 : vector<8x8xf32>
    %cst_167 = arith.constant dense<0.000000e+00> : vector<8xf32>
    %337 = vector.multi_reduction <add>, %336, %cst_167 [1] : vector<8x8xf32> to vector<8xf32>
    %338 = vector.shape_cast %337 : vector<8xf32> to vector<8x1xf32>
    %339 = vector.broadcast %338 : vector<8x1xf32> to vector<8x8xf32>
    %340 = arith.divf %336, %339 : vector<8x8xf32>
    %cst_168 = arith.constant dense<0.000000e+00> : vector<8x16xf32>
    %341 = tpu.matmul %340, %328, %cst_168 {dimension_numbers = #tpu.dot_dimension_numbers<[1], [0], [0], [1], [0, 0, 1, 1], [], []>} : vector<8x8xf32>, vector<8x16xf32>, vector<8x16xf32> -> vector<8x16xf32>
    %c0_169 = arith.constant 0 : index
    %c0_170 = arith.constant 0 : index
    %342 = vector.load %arg37[%c0_169, %c0_170] : memref<16x64xf32, #tpu.memory_space<vmem>>, vector<8x16xf32>
    tpu.vector_store %arg37[%c0_169, %c0_170], %341 {strides = array<i32>} : memref<16x64xf32, #tpu.memory_space<vmem>>, vector<8x16xf32>,
    %343 = vector.extract_strided_slice %323 {offsets = [0, 16], sizes = [8, 16], strides = [1, 1]} : vector<8x64xf32> to vector<8x16xf32>
    %344 = vector.extract_strided_slice %324 {offsets = [0, 16], sizes = [8, 16], strides = [1, 1]} : vector<8x64xf32> to vector<8x16xf32>
    %345 = vector.extract_strided_slice %325 {offsets = [0, 16], sizes = [8, 16], strides = [1, 1]} : vector<8x64xf32> to vector<8x16xf32>
    %cst_171 = arith.constant dense<0.000000e+00> : vector<8x8xf32>
    %346 = tpu.matmul %343, %344, %cst_171 {dimension_numbers = #tpu.dot_dimension_numbers<[1], [1], [0], [0], [0, 0, 1, 0], [], []>} : vector<8x16xf32>, vector<8x16xf32>, vector<8x8xf32> -> vector<8x8xf32>
    %cst_172 = arith.constant -1.000000e+30 : f32
    %347 = vector.broadcast %cst_172 : f32 to vector<8x8xf32>
    %348 = arith.select %31, %346, %347 : vector<8x8xi1>, vector<8x8xf32>
    %cst_173 = arith.constant dense<0xFF800000> : vector<8xf32>
    %349 = vector.multi_reduction <maximumf>, %348, %cst_173 [1] : vector<8x8xf32> to vector<8xf32>
    %350 = vector.shape_cast %349 : vector<8xf32> to vector<8x1xf32>
    %351 = vector.broadcast %350 : vector<8x1xf32> to vector<8x8xf32>
    %352 = arith.subf %348, %351 : vector<8x8xf32>
    %353 = math.exp %352 : vector<8x8xf32>
    %cst_174 = arith.constant dense<0.000000e+00> : vector<8xf32>
    %354 = vector.multi_reduction <add>, %353, %cst_174 [1] : vector<8x8xf32> to vector<8xf32>
    %355 = vector.shape_cast %354 : vector<8xf32> to vector<8x1xf32>
    %356 = vector.broadcast %355 : vector<8x1xf32> to vector<8x8xf32>
    %357 = arith.divf %353, %356 : vector<8x8xf32>
    %cst_175 = arith.constant dense<0.000000e+00> : vector<8x16xf32>
    %358 = tpu.matmul %357, %345, %cst_175 {dimension_numbers = #tpu.dot_dimension_numbers<[1], [0], [0], [1], [0, 0, 1, 1], [], []>} : vector<8x8xf32>, vector<8x16xf32>, vector<8x16xf32> -> vector<8x16xf32>
    %c0_176 = arith.constant 0 : index
    %c16_177 = arith.constant 16 : index
    %359 = vector.load %arg37[%c0_176, %c16_177] : memref<16x64xf32, #tpu.memory_space<vmem>>, vector<8x16xf32>
    tpu.vector_store %arg37[%c0_176, %c16_177], %358 {strides = array<i32>} : memref<16x64xf32, #tpu.memory_space<vmem>>, vector<8x16xf32>,
    %360 = vector.extract_strided_slice %323 {offsets = [0, 32], sizes = [8, 16], strides = [1, 1]} : vector<8x64xf32> to vector<8x16xf32>
    %361 = vector.extract_strided_slice %324 {offsets = [0, 32], sizes = [8, 16], strides = [1, 1]} : vector<8x64xf32> to vector<8x16xf32>
    %362 = vector.extract_strided_slice %325 {offsets = [0, 32], sizes = [8, 16], strides = [1, 1]} : vector<8x64xf32> to vector<8x16xf32>
    %cst_178 = arith.constant dense<0.000000e+00> : vector<8x8xf32>
    %363 = tpu.matmul %360, %361, %cst_178 {dimension_numbers = #tpu.dot_dimension_numbers<[1], [1], [0], [0], [0, 0, 1, 0], [], []>} : vector<8x16xf32>, vector<8x16xf32>, vector<8x8xf32> -> vector<8x8xf32>
    %cst_179 = arith.constant -1.000000e+30 : f32
    %364 = vector.broadcast %cst_179 : f32 to vector<8x8xf32>
    %365 = arith.select %31, %363, %364 : vector<8x8xi1>, vector<8x8xf32>
    %cst_180 = arith.constant dense<0xFF800000> : vector<8xf32>
    %366 = vector.multi_reduction <maximumf>, %365, %cst_180 [1] : vector<8x8xf32> to vector<8xf32>
    %367 = vector.shape_cast %366 : vector<8xf32> to vector<8x1xf32>
    %368 = vector.broadcast %367 : vector<8x1xf32> to vector<8x8xf32>
    %369 = arith.subf %365, %368 : vector<8x8xf32>
    %370 = math.exp %369 : vector<8x8xf32>
    %cst_181 = arith.constant dense<0.000000e+00> : vector<8xf32>
    %371 = vector.multi_reduction <add>, %370, %cst_181 [1] : vector<8x8xf32> to vector<8xf32>
    %372 = vector.shape_cast %371 : vector<8xf32> to vector<8x1xf32>
    %373 = vector.broadcast %372 : vector<8x1xf32> to vector<8x8xf32>
    %374 = arith.divf %370, %373 : vector<8x8xf32>
    %cst_182 = arith.constant dense<0.000000e+00> : vector<8x16xf32>
    %375 = tpu.matmul %374, %362, %cst_182 {dimension_numbers = #tpu.dot_dimension_numbers<[1], [0], [0], [1], [0, 0, 1, 1], [], []>} : vector<8x8xf32>, vector<8x16xf32>, vector<8x16xf32> -> vector<8x16xf32>
    %c0_183 = arith.constant 0 : index
    %c32_184 = arith.constant 32 : index
    %376 = vector.load %arg37[%c0_183, %c32_184] : memref<16x64xf32, #tpu.memory_space<vmem>>, vector<8x16xf32>
    tpu.vector_store %arg37[%c0_183, %c32_184], %375 {strides = array<i32>} : memref<16x64xf32, #tpu.memory_space<vmem>>, vector<8x16xf32>,
    %377 = vector.extract_strided_slice %323 {offsets = [0, 48], sizes = [8, 16], strides = [1, 1]} : vector<8x64xf32> to vector<8x16xf32>
    %378 = vector.extract_strided_slice %324 {offsets = [0, 48], sizes = [8, 16], strides = [1, 1]} : vector<8x64xf32> to vector<8x16xf32>
    %379 = vector.extract_strided_slice %325 {offsets = [0, 48], sizes = [8, 16], strides = [1, 1]} : vector<8x64xf32> to vector<8x16xf32>
    %cst_185 = arith.constant dense<0.000000e+00> : vector<8x8xf32>
    %380 = tpu.matmul %377, %378, %cst_185 {dimension_numbers = #tpu.dot_dimension_numbers<[1], [1], [0], [0], [0, 0, 1, 0], [], []>} : vector<8x16xf32>, vector<8x16xf32>, vector<8x8xf32> -> vector<8x8xf32>
    %cst_186 = arith.constant -1.000000e+30 : f32
    %381 = vector.broadcast %cst_186 : f32 to vector<8x8xf32>
    %382 = arith.select %31, %380, %381 : vector<8x8xi1>, vector<8x8xf32>
    %cst_187 = arith.constant dense<0xFF800000> : vector<8xf32>
    %383 = vector.multi_reduction <maximumf>, %382, %cst_187 [1] : vector<8x8xf32> to vector<8xf32>
    %384 = vector.shape_cast %383 : vector<8xf32> to vector<8x1xf32>
    %385 = vector.broadcast %384 : vector<8x1xf32> to vector<8x8xf32>
    %386 = arith.subf %382, %385 : vector<8x8xf32>
    %387 = math.exp %386 : vector<8x8xf32>
    %cst_188 = arith.constant dense<0.000000e+00> : vector<8xf32>
    %388 = vector.multi_reduction <add>, %387, %cst_188 [1] : vector<8x8xf32> to vector<8xf32>
    %389 = vector.shape_cast %388 : vector<8xf32> to vector<8x1xf32>
    %390 = vector.broadcast %389 : vector<8x1xf32> to vector<8x8xf32>
    %391 = arith.divf %387, %390 : vector<8x8xf32>
    %cst_189 = arith.constant dense<0.000000e+00> : vector<8x16xf32>
    %392 = tpu.matmul %391, %379, %cst_189 {dimension_numbers = #tpu.dot_dimension_numbers<[1], [0], [0], [1], [0, 0, 1, 1], [], []>} : vector<8x8xf32>, vector<8x16xf32>, vector<8x16xf32> -> vector<8x16xf32>
    %c0_190 = arith.constant 0 : index
    %c48_191 = arith.constant 48 : index
    %393 = vector.load %arg37[%c0_190, %c48_191] : memref<16x64xf32, #tpu.memory_space<vmem>>, vector<8x16xf32>
    tpu.vector_store %arg37[%c0_190, %c48_191], %392 {strides = array<i32>} : memref<16x64xf32, #tpu.memory_space<vmem>>, vector<8x16xf32>,
    %394 = vector.extract_strided_slice %320 {offsets = [8, 0], sizes = [8, 64], strides = [1, 1]} : vector<16x192xf32> to vector<8x64xf32>
    %cst_192 = arith.constant 2.500000e-01 : f32
    %395 = vector.broadcast %cst_192 : f32 to vector<8x64xf32>
    %396 = arith.mulf %394, %395 : vector<8x64xf32>
    %397 = vector.extract_strided_slice %320 {offsets = [8, 64], sizes = [8, 64], strides = [1, 1]} : vector<16x192xf32> to vector<8x64xf32>
    %398 = vector.extract_strided_slice %320 {offsets = [8, 128], sizes = [8, 64], strides = [1, 1]} : vector<16x192xf32> to vector<8x64xf32>
    %399 = vector.extract_strided_slice %396 {offsets = [0, 0], sizes = [8, 16], strides = [1, 1]} : vector<8x64xf32> to vector<8x16xf32>
    %400 = vector.extract_strided_slice %397 {offsets = [0, 0], sizes = [8, 16], strides = [1, 1]} : vector<8x64xf32> to vector<8x16xf32>
    %401 = vector.extract_strided_slice %398 {offsets = [0, 0], sizes = [8, 16], strides = [1, 1]} : vector<8x64xf32> to vector<8x16xf32>
    %cst_193 = arith.constant dense<0.000000e+00> : vector<8x8xf32>
    %402 = tpu.matmul %399, %400, %cst_193 {dimension_numbers = #tpu.dot_dimension_numbers<[1], [1], [0], [0], [0, 0, 1, 0], [], []>} : vector<8x16xf32>, vector<8x16xf32>, vector<8x8xf32> -> vector<8x8xf32>
    %cst_194 = arith.constant -1.000000e+30 : f32
    %403 = vector.broadcast %cst_194 : f32 to vector<8x8xf32>
    %404 = arith.select %31, %402, %403 : vector<8x8xi1>, vector<8x8xf32>
    %cst_195 = arith.constant dense<0xFF800000> : vector<8xf32>
    %405 = vector.multi_reduction <maximumf>, %404, %cst_195 [1] : vector<8x8xf32> to vector<8xf32>
    %406 = vector.shape_cast %405 : vector<8xf32> to vector<8x1xf32>
    %407 = vector.broadcast %406 : vector<8x1xf32> to vector<8x8xf32>
    %408 = arith.subf %404, %407 : vector<8x8xf32>
    %409 = math.exp %408 : vector<8x8xf32>
    %cst_196 = arith.constant dense<0.000000e+00> : vector<8xf32>
    %410 = vector.multi_reduction <add>, %409, %cst_196 [1] : vector<8x8xf32> to vector<8xf32>
    %411 = vector.shape_cast %410 : vector<8xf32> to vector<8x1xf32>
    %412 = vector.broadcast %411 : vector<8x1xf32> to vector<8x8xf32>
    %413 = arith.divf %409, %412 : vector<8x8xf32>
    %cst_197 = arith.constant dense<0.000000e+00> : vector<8x16xf32>
    %414 = tpu.matmul %413, %401, %cst_197 {dimension_numbers = #tpu.dot_dimension_numbers<[1], [0], [0], [1], [0, 0, 1, 1], [], []>} : vector<8x8xf32>, vector<8x16xf32>, vector<8x16xf32> -> vector<8x16xf32>
    %c8_198 = arith.constant 8 : index
    %c0_199 = arith.constant 0 : index
    %415 = vector.load %arg37[%c8_198, %c0_199] : memref<16x64xf32, #tpu.memory_space<vmem>>, vector<8x16xf32>
    tpu.vector_store %arg37[%c8_198, %c0_199], %414 {strides = array<i32>} : memref<16x64xf32, #tpu.memory_space<vmem>>, vector<8x16xf32>,
    %416 = vector.extract_strided_slice %396 {offsets = [0, 16], sizes = [8, 16], strides = [1, 1]} : vector<8x64xf32> to vector<8x16xf32>
    %417 = vector.extract_strided_slice %397 {offsets = [0, 16], sizes = [8, 16], strides = [1, 1]} : vector<8x64xf32> to vector<8x16xf32>
    %418 = vector.extract_strided_slice %398 {offsets = [0, 16], sizes = [8, 16], strides = [1, 1]} : vector<8x64xf32> to vector<8x16xf32>
    %cst_200 = arith.constant dense<0.000000e+00> : vector<8x8xf32>
    %419 = tpu.matmul %416, %417, %cst_200 {dimension_numbers = #tpu.dot_dimension_numbers<[1], [1], [0], [0], [0, 0, 1, 0], [], []>} : vector<8x16xf32>, vector<8x16xf32>, vector<8x8xf32> -> vector<8x8xf32>
    %cst_201 = arith.constant -1.000000e+30 : f32
    %420 = vector.broadcast %cst_201 : f32 to vector<8x8xf32>
    %421 = arith.select %31, %419, %420 : vector<8x8xi1>, vector<8x8xf32>
    %cst_202 = arith.constant dense<0xFF800000> : vector<8xf32>
    %422 = vector.multi_reduction <maximumf>, %421, %cst_202 [1] : vector<8x8xf32> to vector<8xf32>
    %423 = vector.shape_cast %422 : vector<8xf32> to vector<8x1xf32>
    %424 = vector.broadcast %423 : vector<8x1xf32> to vector<8x8xf32>
    %425 = arith.subf %421, %424 : vector<8x8xf32>
    %426 = math.exp %425 : vector<8x8xf32>
    %cst_203 = arith.constant dense<0.000000e+00> : vector<8xf32>
    %427 = vector.multi_reduction <add>, %426, %cst_203 [1] : vector<8x8xf32> to vector<8xf32>
    %428 = vector.shape_cast %427 : vector<8xf32> to vector<8x1xf32>
    %429 = vector.broadcast %428 : vector<8x1xf32> to vector<8x8xf32>
    %430 = arith.divf %426, %429 : vector<8x8xf32>
    %cst_204 = arith.constant dense<0.000000e+00> : vector<8x16xf32>
    %431 = tpu.matmul %430, %418, %cst_204 {dimension_numbers = #tpu.dot_dimension_numbers<[1], [0], [0], [1], [0, 0, 1, 1], [], []>} : vector<8x8xf32>, vector<8x16xf32>, vector<8x16xf32> -> vector<8x16xf32>
    %c8_205 = arith.constant 8 : index
    %c16_206 = arith.constant 16 : index
    %432 = vector.load %arg37[%c8_205, %c16_206] : memref<16x64xf32, #tpu.memory_space<vmem>>, vector<8x16xf32>
    tpu.vector_store %arg37[%c8_205, %c16_206], %431 {strides = array<i32>} : memref<16x64xf32, #tpu.memory_space<vmem>>, vector<8x16xf32>,
    %433 = vector.extract_strided_slice %396 {offsets = [0, 32], sizes = [8, 16], strides = [1, 1]} : vector<8x64xf32> to vector<8x16xf32>
    %434 = vector.extract_strided_slice %397 {offsets = [0, 32], sizes = [8, 16], strides = [1, 1]} : vector<8x64xf32> to vector<8x16xf32>
    %435 = vector.extract_strided_slice %398 {offsets = [0, 32], sizes = [8, 16], strides = [1, 1]} : vector<8x64xf32> to vector<8x16xf32>
    %cst_207 = arith.constant dense<0.000000e+00> : vector<8x8xf32>
    %436 = tpu.matmul %433, %434, %cst_207 {dimension_numbers = #tpu.dot_dimension_numbers<[1], [1], [0], [0], [0, 0, 1, 0], [], []>} : vector<8x16xf32>, vector<8x16xf32>, vector<8x8xf32> -> vector<8x8xf32>
    %cst_208 = arith.constant -1.000000e+30 : f32
    %437 = vector.broadcast %cst_208 : f32 to vector<8x8xf32>
    %438 = arith.select %31, %436, %437 : vector<8x8xi1>, vector<8x8xf32>
    %cst_209 = arith.constant dense<0xFF800000> : vector<8xf32>
    %439 = vector.multi_reduction <maximumf>, %438, %cst_209 [1] : vector<8x8xf32> to vector<8xf32>
    %440 = vector.shape_cast %439 : vector<8xf32> to vector<8x1xf32>
    %441 = vector.broadcast %440 : vector<8x1xf32> to vector<8x8xf32>
    %442 = arith.subf %438, %441 : vector<8x8xf32>
    %443 = math.exp %442 : vector<8x8xf32>
    %cst_210 = arith.constant dense<0.000000e+00> : vector<8xf32>
    %444 = vector.multi_reduction <add>, %443, %cst_210 [1] : vector<8x8xf32> to vector<8xf32>
    %445 = vector.shape_cast %444 : vector<8xf32> to vector<8x1xf32>
    %446 = vector.broadcast %445 : vector<8x1xf32> to vector<8x8xf32>
    %447 = arith.divf %443, %446 : vector<8x8xf32>
    %cst_211 = arith.constant dense<0.000000e+00> : vector<8x16xf32>
    %448 = tpu.matmul %447, %435, %cst_211 {dimension_numbers = #tpu.dot_dimension_numbers<[1], [0], [0], [1], [0, 0, 1, 1], [], []>} : vector<8x8xf32>, vector<8x16xf32>, vector<8x16xf32> -> vector<8x16xf32>
    %c8_212 = arith.constant 8 : index
    %c32_213 = arith.constant 32 : index
    %449 = vector.load %arg37[%c8_212, %c32_213] : memref<16x64xf32, #tpu.memory_space<vmem>>, vector<8x16xf32>
    tpu.vector_store %arg37[%c8_212, %c32_213], %448 {strides = array<i32>} : memref<16x64xf32, #tpu.memory_space<vmem>>, vector<8x16xf32>,
    %450 = vector.extract_strided_slice %396 {offsets = [0, 48], sizes = [8, 16], strides = [1, 1]} : vector<8x64xf32> to vector<8x16xf32>
    %451 = vector.extract_strided_slice %397 {offsets = [0, 48], sizes = [8, 16], strides = [1, 1]} : vector<8x64xf32> to vector<8x16xf32>
    %452 = vector.extract_strided_slice %398 {offsets = [0, 48], sizes = [8, 16], strides = [1, 1]} : vector<8x64xf32> to vector<8x16xf32>
    %cst_214 = arith.constant dense<0.000000e+00> : vector<8x8xf32>
    %453 = tpu.matmul %450, %451, %cst_214 {dimension_numbers = #tpu.dot_dimension_numbers<[1], [1], [0], [0], [0, 0, 1, 0], [], []>} : vector<8x16xf32>, vector<8x16xf32>, vector<8x8xf32> -> vector<8x8xf32>
    %cst_215 = arith.constant -1.000000e+30 : f32
    %454 = vector.broadcast %cst_215 : f32 to vector<8x8xf32>
    %455 = arith.select %31, %453, %454 : vector<8x8xi1>, vector<8x8xf32>
    %cst_216 = arith.constant dense<0xFF800000> : vector<8xf32>
    %456 = vector.multi_reduction <maximumf>, %455, %cst_216 [1] : vector<8x8xf32> to vector<8xf32>
    %457 = vector.shape_cast %456 : vector<8xf32> to vector<8x1xf32>
    %458 = vector.broadcast %457 : vector<8x1xf32> to vector<8x8xf32>
    %459 = arith.subf %455, %458 : vector<8x8xf32>
    %460 = math.exp %459 : vector<8x8xf32>
    %cst_217 = arith.constant dense<0.000000e+00> : vector<8xf32>
    %461 = vector.multi_reduction <add>, %460, %cst_217 [1] : vector<8x8xf32> to vector<8xf32>
    %462 = vector.shape_cast %461 : vector<8xf32> to vector<8x1xf32>
    %463 = vector.broadcast %462 : vector<8x1xf32> to vector<8x8xf32>
    %464 = arith.divf %460, %463 : vector<8x8xf32>
    %cst_218 = arith.constant dense<0.000000e+00> : vector<8x16xf32>
    %465 = tpu.matmul %464, %452, %cst_218 {dimension_numbers = #tpu.dot_dimension_numbers<[1], [0], [0], [1], [0, 0, 1, 1], [], []>} : vector<8x8xf32>, vector<8x16xf32>, vector<8x16xf32> -> vector<8x16xf32>
    %c8_219 = arith.constant 8 : index
    %c48_220 = arith.constant 48 : index
    %466 = vector.load %arg37[%c8_219, %c48_220] : memref<16x64xf32, #tpu.memory_space<vmem>>, vector<8x16xf32>
    tpu.vector_store %arg37[%c8_219, %c48_220], %465 {strides = array<i32>} : memref<16x64xf32, #tpu.memory_space<vmem>>, vector<8x16xf32>,
    %c0_221 = arith.constant 0 : index
    %c0_222 = arith.constant 0 : index
    %467 = vector.load %arg37[%c0_221, %c0_222] : memref<16x64xf32, #tpu.memory_space<vmem>>, vector<16x64xf32>
    %cst_223 = arith.constant dense<0.000000e+00> : vector<16x64xf32>
    %468 = tpu.matmul %467, %290, %cst_223 {dimension_numbers = #tpu.dot_dimension_numbers<[1], [0], [0], [1], [0, 0, 1, 1], [], []>} : vector<16x64xf32>, vector<64x64xf32>, vector<16x64xf32> -> vector<16x64xf32>
    %469 = vector.broadcast %291 : vector<1x64xf32> to vector<16x64xf32>
    %470 = arith.addf %468, %469 : vector<16x64xf32>
    %471 = arith.addf %285, %470 : vector<16x64xf32>
    %cst_224 = arith.constant dense<0.000000e+00> : vector<16xf32>
    %472 = vector.multi_reduction <add>, %471, %cst_224 [1] : vector<16x64xf32> to vector<16xf32>
    %473 = vector.shape_cast %472 : vector<16xf32> to vector<16x1xf32>
    %cst_225 = arith.constant 6.400000e+01 : f32
    %474 = vector.broadcast %cst_225 : f32 to vector<16x1xf32>
    %475 = arith.divf %473, %474 : vector<16x1xf32>
    %476 = vector.broadcast %475 : vector<16x1xf32> to vector<16x64xf32>
    %477 = arith.subf %471, %476 : vector<16x64xf32>
    %478 = arith.mulf %477, %477 : vector<16x64xf32>
    %cst_226 = arith.constant dense<0.000000e+00> : vector<16xf32>
    %479 = vector.multi_reduction <add>, %478, %cst_226 [1] : vector<16x64xf32> to vector<16xf32>
    %480 = vector.shape_cast %479 : vector<16xf32> to vector<16x1xf32>
    %cst_227 = arith.constant 6.400000e+01 : f32
    %481 = vector.broadcast %cst_227 : f32 to vector<16x1xf32>
    %482 = arith.divf %480, %481 : vector<16x1xf32>
    %cst_228 = arith.constant 9.99999997E-7 : f32
    %483 = vector.broadcast %cst_228 : f32 to vector<16x1xf32>
    %484 = arith.addf %482, %483 : vector<16x1xf32>
    %485 = math.rsqrt %484 : vector<16x1xf32>
    %486 = vector.broadcast %485 : vector<16x1xf32> to vector<16x64xf32>
    %487 = arith.mulf %477, %486 : vector<16x64xf32>
    %488 = vector.broadcast %292 : vector<1x64xf32> to vector<16x64xf32>
    %489 = arith.mulf %487, %488 : vector<16x64xf32>
    %490 = vector.broadcast %293 : vector<1x64xf32> to vector<16x64xf32>
    %491 = arith.addf %489, %490 : vector<16x64xf32>
    %cst_229 = arith.constant dense<0.000000e+00> : vector<16x256xf32>
    %492 = tpu.matmul %491, %294, %cst_229 {dimension_numbers = #tpu.dot_dimension_numbers<[1], [0], [0], [1], [0, 0, 1, 1], [], []>} : vector<16x64xf32>, vector<64x256xf32>, vector<16x256xf32> -> vector<16x256xf32>
    %493 = vector.broadcast %295 : vector<1x256xf32> to vector<16x256xf32>
    %494 = arith.addf %492, %493 : vector<16x256xf32>
    %cst_230 = arith.constant 5.000000e-01 : f32
    %495 = vector.broadcast %cst_230 : f32 to vector<16x256xf32>
    %496 = arith.mulf %495, %494 : vector<16x256xf32>
    %cst_231 = arith.constant 0.707106769 : f32
    %497 = vector.broadcast %cst_231 : f32 to vector<16x256xf32>
    %498 = arith.mulf %494, %497 : vector<16x256xf32>
    %cst_232 = arith.constant 0.000000e+00 : f32
    %499 = vector.broadcast %cst_232 : f32 to vector<16x256xf32>
    %500 = arith.cmpf oge, %498, %499 : vector<16x256xf32>
    %cst_233 = arith.constant 1.000000e+00 : f32
    %cst_234 = arith.constant -1.000000e+00 : f32
    %501 = vector.broadcast %cst_233 : f32 to vector<16x256xf32>
    %502 = vector.broadcast %cst_234 : f32 to vector<16x256xf32>
    %503 = arith.select %500, %501, %502 : vector<16x256xi1>, vector<16x256xf32>
    %504 = math.absf %498 : vector<16x256xf32>
    %cst_235 = arith.constant 0.327591091 : f32
    %505 = vector.broadcast %cst_235 : f32 to vector<16x256xf32>
    %506 = arith.mulf %505, %504 : vector<16x256xf32>
    %cst_236 = arith.constant 1.000000e+00 : f32
    %507 = vector.broadcast %cst_236 : f32 to vector<16x256xf32>
    %508 = arith.addf %507, %506 : vector<16x256xf32>
    %cst_237 = arith.constant 1.000000e+00 : f32
    %509 = vector.broadcast %cst_237 : f32 to vector<16x256xf32>
    %510 = arith.divf %509, %508 : vector<16x256xf32>
    %cst_238 = arith.constant 1.06140542 : f32
    %511 = vector.broadcast %cst_238 : f32 to vector<16x256xf32>
    %512 = arith.mulf %511, %510 : vector<16x256xf32>
    %cst_239 = arith.constant -1.45315206 : f32
    %513 = vector.broadcast %cst_239 : f32 to vector<16x256xf32>
    %514 = arith.addf %512, %513 : vector<16x256xf32>
    %515 = arith.mulf %514, %510 : vector<16x256xf32>
    %cst_240 = arith.constant 1.42141378 : f32
    %516 = vector.broadcast %cst_240 : f32 to vector<16x256xf32>
    %517 = arith.addf %515, %516 : vector<16x256xf32>
    %518 = arith.mulf %517, %510 : vector<16x256xf32>
    %cst_241 = arith.constant -0.284496725 : f32
    %519 = vector.broadcast %cst_241 : f32 to vector<16x256xf32>
    %520 = arith.addf %518, %519 : vector<16x256xf32>
    %521 = arith.mulf %520, %510 : vector<16x256xf32>
    %cst_242 = arith.constant 0.254829586 : f32
    %522 = vector.broadcast %cst_242 : f32 to vector<16x256xf32>
    %523 = arith.addf %521, %522 : vector<16x256xf32>
    %524 = arith.mulf %523, %510 : vector<16x256xf32>
    %cst_243 = arith.constant 0.000000e+00 : f32
    %525 = vector.broadcast %cst_243 : f32 to vector<16x256xf32>
    %526 = arith.subf %525, %504 : vector<16x256xf32>
    %527 = arith.mulf %526, %504 : vector<16x256xf32>
    %528 = math.exp %527 : vector<16x256xf32>
    %529 = arith.mulf %524, %528 : vector<16x256xf32>
    %cst_244 = arith.constant 1.000000e+00 : f32
    %530 = vector.broadcast %cst_244 : f32 to vector<16x256xf32>
    %531 = arith.subf %530, %529 : vector<16x256xf32>
    %532 = arith.mulf %503, %531 : vector<16x256xf32>
    %cst_245 = arith.constant 1.000000e+00 : f32
    %533 = vector.broadcast %cst_245 : f32 to vector<16x256xf32>
    %534 = arith.addf %533, %532 : vector<16x256xf32>
    %535 = arith.mulf %496, %534 : vector<16x256xf32>
    %cst_246 = arith.constant dense<0.000000e+00> : vector<16x64xf32>
    %536 = tpu.matmul %535, %296, %cst_246 {dimension_numbers = #tpu.dot_dimension_numbers<[1], [0], [0], [1], [0, 0, 1, 1], [], []>} : vector<16x256xf32>, vector<256x64xf32>, vector<16x64xf32> -> vector<16x64xf32>
    %537 = vector.broadcast %297 : vector<1x64xf32> to vector<16x64xf32>
    %538 = arith.addf %536, %537 : vector<16x64xf32>
    %539 = arith.addf %471, %538 : vector<16x64xf32>
    %c0_247 = arith.constant 0 : index
    %c0_248 = arith.constant 0 : index
    %540 = vector.load %arg30[%c0_247, %c0_248] : memref<1x64xf32, #tpu.memory_space<vmem>>, vector<1x64xf32>
    %c0_249 = arith.constant 0 : index
    %c0_250 = arith.constant 0 : index
    %541 = vector.load %arg31[%c0_249, %c0_250] : memref<1x64xf32, #tpu.memory_space<vmem>>, vector<1x64xf32>
    %cst_251 = arith.constant dense<0.000000e+00> : vector<16xf32>
    %542 = vector.multi_reduction <add>, %539, %cst_251 [1] : vector<16x64xf32> to vector<16xf32>
    %543 = vector.shape_cast %542 : vector<16xf32> to vector<16x1xf32>
    %cst_252 = arith.constant 6.400000e+01 : f32
    %544 = vector.broadcast %cst_252 : f32 to vector<16x1xf32>
    %545 = arith.divf %543, %544 : vector<16x1xf32>
    %546 = vector.broadcast %545 : vector<16x1xf32> to vector<16x64xf32>
    %547 = arith.subf %539, %546 : vector<16x64xf32>
    %548 = arith.mulf %547, %547 : vector<16x64xf32>
    %cst_253 = arith.constant dense<0.000000e+00> : vector<16xf32>
    %549 = vector.multi_reduction <add>, %548, %cst_253 [1] : vector<16x64xf32> to vector<16xf32>
    %550 = vector.shape_cast %549 : vector<16xf32> to vector<16x1xf32>
    %cst_254 = arith.constant 6.400000e+01 : f32
    %551 = vector.broadcast %cst_254 : f32 to vector<16x1xf32>
    %552 = arith.divf %550, %551 : vector<16x1xf32>
    %cst_255 = arith.constant 9.99999997E-7 : f32
    %553 = vector.broadcast %cst_255 : f32 to vector<16x1xf32>
    %554 = arith.addf %552, %553 : vector<16x1xf32>
    %555 = math.rsqrt %554 : vector<16x1xf32>
    %556 = vector.broadcast %555 : vector<16x1xf32> to vector<16x64xf32>
    %557 = arith.mulf %547, %556 : vector<16x64xf32>
    %558 = vector.broadcast %540 : vector<1x64xf32> to vector<16x64xf32>
    %559 = arith.mulf %557, %558 : vector<16x64xf32>
    %560 = vector.broadcast %541 : vector<1x64xf32> to vector<16x64xf32>
    %561 = arith.addf %559, %560 : vector<16x64xf32>
    %c0_256 = arith.constant 0 : index
    %c0_257 = arith.constant 0 : index
    %562 = vector.load %arg34[%c0_256, %c0_257] : memref<16x64xf32, #tpu.memory_space<vmem>>, vector<16x64xf32>
    tpu.vector_store %arg34[%c0_256, %c0_257], %561 {strides = array<i32>} : memref<16x64xf32, #tpu.memory_space<vmem>>, vector<16x64xf32>,
    %c0_258 = arith.constant 0 : index
    %c0_259 = arith.constant 0 : index
    %563 = vector.load %arg32[%c0_258, %c0_259] : memref<64x128xf32, #tpu.memory_space<vmem>>, vector<64x128xf32>
    %cst_260 = arith.constant dense<0.000000e+00> : vector<16x128xf32>
    %564 = tpu.matmul %561, %563, %cst_260 {dimension_numbers = #tpu.dot_dimension_numbers<[1], [0], [0], [1], [0, 0, 1, 1], [], []>} : vector<16x64xf32>, vector<64x128xf32>, vector<16x128xf32> -> vector<16x128xf32>
    %c0_261 = arith.constant 0 : index
    %c0_262 = arith.constant 0 : index
    %565 = vector.load %arg33[%c0_261, %c0_262] : memref<1x128xf32, #tpu.memory_space<vmem>>, vector<1x128xf32>
    %566 = vector.broadcast %565 : vector<1x128xf32> to vector<16x128xf32>
    %567 = arith.addf %564, %566 : vector<16x128xf32>
    %c0_263 = arith.constant 0 : index
    %c0_264 = arith.constant 0 : index
    %568 = vector.load %arg35[%c0_263, %c0_264] : memref<16x128xf32, #tpu.memory_space<vmem>>, vector<16x128xf32>
    tpu.vector_store %arg35[%c0_263, %c0_264], %567 {strides = array<i32>} : memref<16x128xf32, #tpu.memory_space<vmem>>, vector<16x128xf32>,
    return
  }
  func.func @transform_0(%arg0: i32) -> (i32, i32) {
    %c0_i32 = arith.constant 0 : i32
    %c0_i32_0 = arith.constant 0 : i32
    %c0_i32_1 = arith.constant 0 : i32
    return %c0_i32, %c0_i32_0 : i32, i32
  }
  func.func @transform_1(%arg0: i32) -> (i32, i32) {
    %c0_i32 = arith.constant 0 : i32
    %c0_i32_0 = arith.constant 0 : i32
    %c0_i32_1 = arith.constant 0 : i32
    return %c0_i32, %c0_i32_0 : i32, i32
  }
  func.func @transform_2(%arg0: i32) -> (i32, i32) {
    %c0_i32 = arith.constant 0 : i32
    %c0_i32_0 = arith.constant 0 : i32
    %c0_i32_1 = arith.constant 0 : i32
    return %c0_i32, %c0_i32_0 : i32, i32
  }
  func.func @transform_3(%arg0: i32) -> (i32, i32) {
    %c0_i32 = arith.constant 0 : i32
    %c0_i32_0 = arith.constant 0 : i32
    %c0_i32_1 = arith.constant 0 : i32
    return %c0_i32, %c0_i32_0 : i32, i32
  }
  func.func @transform_4(%arg0: i32) -> (i32, i32) {
    %c0_i32 = arith.constant 0 : i32
    %c0_i32_0 = arith.constant 0 : i32
    %c0_i32_1 = arith.constant 0 : i32
    return %c0_i32, %c0_i32_0 : i32, i32
  }
  func.func @transform_5(%arg0: i32) -> (i32, i32) {
    %c0_i32 = arith.constant 0 : i32
    %c0_i32_0 = arith.constant 0 : i32
    %c0_i32_1 = arith.constant 0 : i32
    return %c0_i32, %c0_i32_0 : i32, i32
  }
  func.func @transform_6(%arg0: i32) -> (i32, i32) {
    %c0_i32 = arith.constant 0 : i32
    %c0_i32_0 = arith.constant 0 : i32
    %c0_i32_1 = arith.constant 0 : i32
    return %c0_i32, %c0_i32_0 : i32, i32
  }
  func.func @transform_7(%arg0: i32) -> (i32, i32) {
    %c0_i32 = arith.constant 0 : i32
    %c0_i32_0 = arith.constant 0 : i32
    %c0_i32_1 = arith.constant 0 : i32
    return %c0_i32, %c0_i32_0 : i32, i32
  }
  func.func @transform_8(%arg0: i32) -> (i32, i32) {
    %c0_i32 = arith.constant 0 : i32
    %c0_i32_0 = arith.constant 0 : i32
    %c0_i32_1 = arith.constant 0 : i32
    return %c0_i32, %c0_i32_0 : i32, i32
  }
  func.func @transform_9(%arg0: i32) -> (i32, i32) {
    %c0_i32 = arith.constant 0 : i32
    %c0_i32_0 = arith.constant 0 : i32
    %c0_i32_1 = arith.constant 0 : i32
    return %c0_i32, %c0_i32_0 : i32, i32
  }
  func.func @transform_10(%arg0: i32) -> (i32, i32) {
    %c0_i32 = arith.constant 0 : i32
    %c0_i32_0 = arith.constant 0 : i32
    %c0_i32_1 = arith.constant 0 : i32
    return %c0_i32, %c0_i32_0 : i32, i32
  }
  func.func @transform_11(%arg0: i32) -> (i32, i32) {
    %c0_i32 = arith.constant 0 : i32
    %c0_i32_0 = arith.constant 0 : i32
    %c0_i32_1 = arith.constant 0 : i32
    return %c0_i32, %c0_i32_0 : i32, i32
  }
  func.func @transform_12(%arg0: i32) -> (i32, i32) {
    %c0_i32 = arith.constant 0 : i32
    %c0_i32_0 = arith.constant 0 : i32
    %c0_i32_1 = arith.constant 0 : i32
    return %c0_i32, %c0_i32_0 : i32, i32
  }
  func.func @transform_13(%arg0: i32) -> (i32, i32) {
    %c0_i32 = arith.constant 0 : i32
    %c0_i32_0 = arith.constant 0 : i32
    %c0_i32_1 = arith.constant 0 : i32
    return %c0_i32, %c0_i32_0 : i32, i32
  }
  func.func @transform_14(%arg0: i32) -> (i32, i32) {
    %c0_i32 = arith.constant 0 : i32
    %c0_i32_0 = arith.constant 0 : i32
    %c0_i32_1 = arith.constant 0 : i32
    return %c0_i32, %c0_i32_0 : i32, i32
  }
  func.func @transform_15(%arg0: i32) -> (i32, i32) {
    %c0_i32 = arith.constant 0 : i32
    %c0_i32_0 = arith.constant 0 : i32
    %c0_i32_1 = arith.constant 0 : i32
    return %c0_i32, %c0_i32_0 : i32, i32
  }
  func.func @transform_16(%arg0: i32) -> (i32, i32) {
    %c0_i32 = arith.constant 0 : i32
    %c0_i32_0 = arith.constant 0 : i32
    %c0_i32_1 = arith.constant 0 : i32
    return %c0_i32, %c0_i32_0 : i32, i32
  }
  func.func @transform_17(%arg0: i32) -> (i32, i32) {
    %c0_i32 = arith.constant 0 : i32
    %c0_i32_0 = arith.constant 0 : i32
    %c0_i32_1 = arith.constant 0 : i32
    return %c0_i32, %c0_i32_0 : i32, i32
  }
  func.func @transform_18(%arg0: i32) -> (i32, i32) {
    %c0_i32 = arith.constant 0 : i32
    %c0_i32_0 = arith.constant 0 : i32
    %c0_i32_1 = arith.constant 0 : i32
    return %c0_i32, %c0_i32_0 : i32, i32
  }
  func.func @transform_19(%arg0: i32) -> (i32, i32) {
    %c0_i32 = arith.constant 0 : i32
    %c0_i32_0 = arith.constant 0 : i32
    %c0_i32_1 = arith.constant 0 : i32
    return %c0_i32, %c0_i32_0 : i32, i32
  }
  func.func @transform_20(%arg0: i32) -> (i32, i32) {
    %c0_i32 = arith.constant 0 : i32
    %c0_i32_0 = arith.constant 0 : i32
    %c0_i32_1 = arith.constant 0 : i32
    return %c0_i32, %c0_i32_0 : i32, i32
  }
  func.func @transform_21(%arg0: i32) -> (i32, i32) {
    %c0_i32 = arith.constant 0 : i32
    %c0_i32_0 = arith.constant 0 : i32
    %c0_i32_1 = arith.constant 0 : i32
    return %c0_i32, %c0_i32_0 : i32, i32
  }
  func.func @transform_22(%arg0: i32) -> (i32, i32) {
    %c0_i32 = arith.constant 0 : i32
    %c0_i32_0 = arith.constant 0 : i32
    %c0_i32_1 = arith.constant 0 : i32
    return %c0_i32, %c0_i32_0 : i32, i32
  }
  func.func @transform_23(%arg0: i32) -> (i32, i32) {
    %c0_i32 = arith.constant 0 : i32
    %c0_i32_0 = arith.constant 0 : i32
    %c0_i32_1 = arith.constant 0 : i32
    return %c0_i32, %c0_i32_0 : i32, i32
  }
  func.func @transform_24(%arg0: i32) -> (i32, i32) {
    %c0_i32 = arith.constant 0 : i32
    %c0_i32_0 = arith.constant 0 : i32
    %c0_i32_1 = arith.constant 0 : i32
    return %c0_i32, %c0_i32_0 : i32, i32
  }
  func.func @transform_25(%arg0: i32) -> (i32, i32) {
    %c0_i32 = arith.constant 0 : i32
    %c0_i32_0 = arith.constant 0 : i32
    %c0_i32_1 = arith.constant 0 : i32
    return %c0_i32, %c0_i32_0 : i32, i32
  }
  func.func @transform_26(%arg0: i32) -> (i32, i32) {
    %c0_i32 = arith.constant 0 : i32
    %c0_i32_0 = arith.constant 0 : i32
    %c0_i32_1 = arith.constant 0 : i32
    return %c0_i32, %c0_i32_0 : i32, i32
  }
  func.func @transform_27(%arg0: i32) -> (i32, i32) {
    %c0_i32 = arith.constant 0 : i32
    %c0_i32_0 = arith.constant 0 : i32
    %c0_i32_1 = arith.constant 0 : i32
    return %c0_i32, %c0_i32_0 : i32, i32
  }
  func.func @transform_28(%arg0: i32) -> (i32, i32) {
    %c0_i32 = arith.constant 0 : i32
    %c0_i32_0 = arith.constant 0 : i32
    %c0_i32_1 = arith.constant 0 : i32
    return %c0_i32, %c0_i32_0 : i32, i32
  }
  func.func @transform_29(%arg0: i32) -> (i32, i32) {
    %c0_i32 = arith.constant 0 : i32
    %c0_i32_0 = arith.constant 0 : i32
    %c0_i32_1 = arith.constant 0 : i32
    return %c0_i32, %c0_i32_0 : i32, i32
  }
  func.func @transform_30(%arg0: i32) -> (i32, i32) {
    %c0_i32 = arith.constant 0 : i32
    %c0_i32_0 = arith.constant 0 : i32
    %c0_i32_1 = arith.constant 0 : i32
    return %c0_i32, %c0_i32_0 : i32, i32
  }
  func.func @transform_31(%arg0: i32) -> (i32, i32) {
    %c0_i32 = arith.constant 0 : i32
    %c0_i32_0 = arith.constant 0 : i32
    %c0_i32_1 = arith.constant 0 : i32
    return %c0_i32, %c0_i32_0 : i32, i32
  }
  func.func @transform_32(%arg0: i32) -> (i32, i32) {
    %c0_i32 = arith.constant 0 : i32
    %c0_i32_0 = arith.constant 0 : i32
    %c0_i32_1 = arith.constant 0 : i32
    return %c0_i32, %c0_i32_0 : i32, i32
  }
  func.func @transform_33(%arg0: i32) -> (i32, i32) {
    %c0_i32 = arith.constant 0 : i32
    %c0_i32_0 = arith.constant 0 : i32
    %c0_i32_1 = arith.constant 0 : i32
    return %c0_i32, %c0_i32_0 : i32, i32
  }
  func.func @transform_34(%arg0: i32) -> (i32, i32) {
    %c0_i32 = arith.constant 0 : i32
    %c0_i32_0 = arith.constant 0 : i32
    %c0_i32_1 = arith.constant 0 : i32
    return %c0_i32, %c0_i32_0 : i32, i32
  }
}

</mosaic_0001>

<llo_original>
// kernel: sinet_forward.1
$region0: #{sinet_forward.1}
  #allocation0 [shape = 'u32[]', space=smem, size = 0x4, offset = 0x4, fixed_abs, tag = 'smem constant byte address 0x4 - core index']
  #allocation1 [shape = 'u32[144,128]{1,0:T(1,128)}', space=vmem, size = 0x12000, scoped, tag = 'internal scratch']
  #allocation2 [shape = 'f32[16,64]{1,0:T(8,128)}', space=vmem, size = 0x2000, scoped, tag = 'scratch operand']
  #allocation3 [shape = 'f32[16,64]{1,0:T(8,128)}', space=vmem, size = 0x2000, scoped, tag = 'scratch operand']
  %s0 = inlined_call_operand.smem [shape: u32[35], index: -1, kind: input, shape index: {}]
  %s1 = sld [smem:[%s0]]
  %s2 = scalar_lea.smem %s0, 1
  %s3 = sld [smem:[%s2]]
  %s4 = scalar_lea.smem %s0, 2
  %s5 = sld [smem:[%s4]]
  %s6 = scalar_lea.smem %s0, 3
  %s7 = sld [smem:[%s6]]
  %s8 = scalar_lea.smem %s0, 4
  %s9 = sld [smem:[%s8]]
  %s10 = scalar_lea.smem %s0, 5
  %s11 = sld [smem:[%s10]]
  %s12 = scalar_lea.smem %s0, 6
  %s13 = sld [smem:[%s12]]
  %s14 = scalar_lea.smem %s0, 7
  %s15 = sld [smem:[%s14]]
  %s16 = scalar_lea.smem %s0, 8
  %s17 = sld [smem:[%s16]]
  %s18 = scalar_lea.smem %s0, 9
  %s19 = sld [smem:[%s18]]
  %s20 = scalar_lea.smem %s0, 10
  %s21 = sld [smem:[%s20]]
  %s22 = scalar_lea.smem %s0, 11
  %s23 = sld [smem:[%s22]]
  %s24 = scalar_lea.smem %s0, 12
  %s25 = sld [smem:[%s24]]
  %s26 = scalar_lea.smem %s0, 13
  %s27 = sld [smem:[%s26]]
  %s28 = scalar_lea.smem %s0, 14
  %s29 = sld [smem:[%s28]]
  %s30 = scalar_lea.smem %s0, 15
  %s31 = sld [smem:[%s30]]
  %s32 = scalar_lea.smem %s0, 16
  %s33 = sld [smem:[%s32]]
  %s34 = scalar_lea.smem %s0, 17
  %s35 = sld [smem:[%s34]]
  %s36 = scalar_lea.smem %s0, 18
  %s37 = sld [smem:[%s36]]
  %s38 = scalar_lea.smem %s0, 19
  %s39 = sld [smem:[%s38]]
  %s40 = scalar_lea.smem %s0, 20
  %s41 = sld [smem:[%s40]]
  %s42 = scalar_lea.smem %s0, 21
  %s43 = sld [smem:[%s42]]
  %s44 = scalar_lea.smem %s0, 22
  %s45 = sld [smem:[%s44]]
  %s46 = scalar_lea.smem %s0, 23
  %s47 = sld [smem:[%s46]]
  %s48 = scalar_lea.smem %s0, 24
  %s49 = sld [smem:[%s48]]
  %s50 = scalar_lea.smem %s0, 25
  %s51 = sld [smem:[%s50]]
  %s52 = scalar_lea.smem %s0, 26
  %s53 = sld [smem:[%s52]]
  %s54 = scalar_lea.smem %s0, 27
  %s55 = sld [smem:[%s54]]
  %s56 = scalar_lea.smem %s0, 28
  %s57 = sld [smem:[%s56]]
  %s58 = scalar_lea.smem %s0, 29
  %s59 = sld [smem:[%s58]]
  %s60 = scalar_lea.smem %s0, 30
  %s61 = sld [smem:[%s60]]
  %s62 = scalar_lea.smem %s0, 31
  %s63 = sld [smem:[%s62]]
  %s64 = scalar_lea.smem %s0, 32
  %s65 = sld [smem:[%s64]]
  %s66 = scalar_lea.smem %s0, 33
  %s67 = sld [smem:[%s66]]
  %s68 = scalar_lea.smem %s0, 34
  %s69 = sld [smem:[%s68]]
  %70 = xla_tuple %s67, %s69
  %s71 = sld [smem:[#allocation0]]
  $region150: #{sinet_forward.1} parent=0
    _
  %s73 = ssub.s32 1, %s71
  %s74 = scalar_select 0, %s73, %s71
  // Predicated region
  $region2: #{sinet_forward.1} parent=0 // pred_check
    _
  $region3: #{sinet_forward.1} parent=0 // pred_check_branch
    %76 = sbr.rel (0) target = $region5
  $region4: #{sinet_forward.1} parent=0 // pred_region
    _
  $region5: #{sinet_forward.1} parent=0 // pred_fallthru
    _
  // Predicated region
  $region6: #{sinet_forward.1} parent=0 // pred_check
    _
  $region7: #{sinet_forward.1} parent=0 // pred_check_branch
    %78 = sbr.rel (0) target = $region9
  $region8: #{sinet_forward.1} parent=0 // pred_region
    _
  $region9: #{sinet_forward.1} parent=0 // pred_fallthru
    _
  // Predicated region
  $region10: #{sinet_forward.1} parent=0 // pred_check
    _
  $region11: #{sinet_forward.1} parent=0 // pred_check_branch
    %80 = sbr.rel (0) target = $region13
  $region12: #{sinet_forward.1} parent=0 // pred_region
    _
  $region13: #{sinet_forward.1} parent=0 // pred_fallthru
    _
  // Predicated region
  $region14: #{sinet_forward.1} parent=0 // pred_check
    _
  $region15: #{sinet_forward.1} parent=0 // pred_check_branch
    %82 = sbr.rel (0) target = $region17
  $region16: #{sinet_forward.1} parent=0 // pred_region
    _
  $region17: #{sinet_forward.1} parent=0 // pred_fallthru
    _
  // Predicated region
  $region18: #{sinet_forward.1} parent=0 // pred_check
    _
  $region19: #{sinet_forward.1} parent=0 // pred_check_branch
    %84 = sbr.rel (0) target = $region21
  $region20: #{sinet_forward.1} parent=0 // pred_region
    _
  $region21: #{sinet_forward.1} parent=0 // pred_fallthru
    _
  // Predicated region
  $region22: #{sinet_forward.1} parent=0 // pred_check
    _
  $region23: #{sinet_forward.1} parent=0 // pred_check_branch
    %86 = sbr.rel (0) target = $region25
  $region24: #{sinet_forward.1} parent=0 // pred_region
    _
  $region25: #{sinet_forward.1} parent=0 // pred_fallthru
    _
  // Predicated region
  $region26: #{sinet_forward.1} parent=0 // pred_check
    _
  $region27: #{sinet_forward.1} parent=0 // pred_check_branch
    %88 = sbr.rel (0) target = $region29
  $region28: #{sinet_forward.1} parent=0 // pred_region
    _
  $region29: #{sinet_forward.1} parent=0 // pred_fallthru
    _
  // Predicated region
  $region30: #{sinet_forward.1} parent=0 // pred_check
    _
  $region31: #{sinet_forward.1} parent=0 // pred_check_branch
    %90 = sbr.rel (0) target = $region33
  $region32: #{sinet_forward.1} parent=0 // pred_region
    _
  $region33: #{sinet_forward.1} parent=0 // pred_fallthru
    _
  // Predicated region
  $region34: #{sinet_forward.1} parent=0 // pred_check
    _
  $region35: #{sinet_forward.1} parent=0 // pred_check_branch
    %92 = sbr.rel (0) target = $region37
  $region36: #{sinet_forward.1} parent=0 // pred_region
    _
  $region37: #{sinet_forward.1} parent=0 // pred_fallthru
    _
  // Predicated region
  $region38: #{sinet_forward.1} parent=0 // pred_check
    _
  $region39: #{sinet_forward.1} parent=0 // pred_check_branch
    %94 = sbr.rel (0) target = $region41
  $region40: #{sinet_forward.1} parent=0 // pred_region
    _
  $region41: #{sinet_forward.1} parent=0 // pred_fallthru
    _
  // Predicated region
  $region42: #{sinet_forward.1} parent=0 // pred_check
    _
  $region43: #{sinet_forward.1} parent=0 // pred_check_branch
    %96 = sbr.rel (0) target = $region45
  $region44: #{sinet_forward.1} parent=0 // pred_region
    _
  $region45: #{sinet_forward.1} parent=0 // pred_fallthru
    _
  // Predicated region
  $region46: #{sinet_forward.1} parent=0 // pred_check
    _
  $region47: #{sinet_forward.1} parent=0 // pred_check_branch
    %98 = sbr.rel (0) target = $region49
  $region48: #{sinet_forward.1} parent=0 // pred_region
    _
  $region49: #{sinet_forward.1} parent=0 // pred_fallthru
    _
  // Predicated region
  $region50: #{sinet_forward.1} parent=0 // pred_check
    _
  $region51: #{sinet_forward.1} parent=0 // pred_check_branch
    %100 = sbr.rel (0) target = $region53
  $region52: #{sinet_forward.1} parent=0 // pred_region
    _
  $region53: #{sinet_forward.1} parent=0 // pred_fallthru
    _
  // Predicated region
  $region54: #{sinet_forward.1} parent=0 // pred_check
    _
  $region55: #{sinet_forward.1} parent=0 // pred_check_branch
    %102 = sbr.rel (0) target = $region57
  $region56: #{sinet_forward.1} parent=0 // pred_region
    _
  $region57: #{sinet_forward.1} parent=0 // pred_fallthru
    _
  // Predicated region
  $region58: #{sinet_forward.1} parent=0 // pred_check
    _
  $region59: #{sinet_forward.1} parent=0 // pred_check_branch
    %104 = sbr.rel (0) target = $region61
  $region60: #{sinet_forward.1} parent=0 // pred_region
    _
  $region61: #{sinet_forward.1} parent=0 // pred_fallthru
    _
  // Predicated region
  $region62: #{sinet_forward.1} parent=0 // pred_check
    _
  $region63: #{sinet_forward.1} parent=0 // pred_check_branch
    %106 = sbr.rel (0) target = $region65
  $region64: #{sinet_forward.1} parent=0 // pred_region
    _
  $region65: #{sinet_forward.1} parent=0 // pred_fallthru
    _
  // Predicated region
  $region66: #{sinet_forward.1} parent=0 // pred_check
    _
  $region67: #{sinet_forward.1} parent=0 // pred_check_branch
    %108 = sbr.rel (0) target = $region69
  $region68: #{sinet_forward.1} parent=0 // pred_region
    _
  $region69: #{sinet_forward.1} parent=0 // pred_fallthru
    _
  // Predicated region
  $region70: #{sinet_forward.1} parent=0 // pred_check
    _
  $region71: #{sinet_forward.1} parent=0 // pred_check_branch
    %110 = sbr.rel (0) target = $region73
  $region72: #{sinet_forward.1} parent=0 // pred_region
    _
  $region73: #{sinet_forward.1} parent=0 // pred_fallthru
    _
  // Predicated region
  $region74: #{sinet_forward.1} parent=0 // pred_check
    _
  $region75: #{sinet_forward.1} parent=0 // pred_check_branch
    %112 = sbr.rel (0) target = $region77
  $region76: #{sinet_forward.1} parent=0 // pred_region
    _
  $region77: #{sinet_forward.1} parent=0 // pred_fallthru
    _
  // Predicated region
  $region78: #{sinet_forward.1} parent=0 // pred_check
    _
  $region79: #{sinet_forward.1} parent=0 // pred_check_branch
    %114 = sbr.rel (0) target = $region81
  $region80: #{sinet_forward.1} parent=0 // pred_region
    _
  $region81: #{sinet_forward.1} parent=0 // pred_fallthru
    _
  // Predicated region
  $region82: #{sinet_forward.1} parent=0 // pred_check
    _
  $region83: #{sinet_forward.1} parent=0 // pred_check_branch
    %116 = sbr.rel (0) target = $region85
  $region84: #{sinet_forward.1} parent=0 // pred_region
    _
  $region85: #{sinet_forward.1} parent=0 // pred_fallthru
    _
  // Predicated region
  $region86: #{sinet_forward.1} parent=0 // pred_check
    _
  $region87: #{sinet_forward.1} parent=0 // pred_check_branch
    %118 = sbr.rel (0) target = $region89
  $region88: #{sinet_forward.1} parent=0 // pred_region
    _
  $region89: #{sinet_forward.1} parent=0 // pred_fallthru
    _
  // Predicated region
  $region90: #{sinet_forward.1} parent=0 // pred_check
    _
  $region91: #{sinet_forward.1} parent=0 // pred_check_branch
    %120 = sbr.rel (0) target = $region93
  $region92: #{sinet_forward.1} parent=0 // pred_region
    _
  $region93: #{sinet_forward.1} parent=0 // pred_fallthru
    _
  // Predicated region
  $region94: #{sinet_forward.1} parent=0 // pred_check
    _
  $region95: #{sinet_forward.1} parent=0 // pred_check_branch
    %122 = sbr.rel (0) target = $region97
  $region96: #{sinet_forward.1} parent=0 // pred_region
    _
  $region97: #{sinet_forward.1} parent=0 // pred_fallthru
    _
  // Predicated region
  $region98: #{sinet_forward.1} parent=0 // pred_check
    _
  $region99: #{sinet_forward.1} parent=0 // pred_check_branch
    %124 = sbr.rel (0) target = $region101
  $region100: #{sinet_forward.1} parent=0 // pred_region
    _
  $region101: #{sinet_forward.1} parent=0 // pred_fallthru
    _
  // Predicated region
  $region102: #{sinet_forward.1} parent=0 // pred_check
    _
  $region103: #{sinet_forward.1} parent=0 // pred_check_branch
    %126 = sbr.rel (0) target = $region105
  $region104: #{sinet_forward.1} parent=0 // pred_region
    _
  $region105: #{sinet_forward.1} parent=0 // pred_fallthru
    _
  // Predicated region
  $region106: #{sinet_forward.1} parent=0 // pred_check
    _
  $region107: #{sinet_forward.1} parent=0 // pred_check_branch
    %128 = sbr.rel (0) target = $region109
  $region108: #{sinet_forward.1} parent=0 // pred_region
    _
  $region109: #{sinet_forward.1} parent=0 // pred_fallthru
    _
  // Predicated region
  $region110: #{sinet_forward.1} parent=0 // pred_check
    _
  $region111: #{sinet_forward.1} parent=0 // pred_check_branch
    %130 = sbr.rel (0) target = $region113
  $region112: #{sinet_forward.1} parent=0 // pred_region
    _
  $region113: #{sinet_forward.1} parent=0 // pred_fallthru
    _
  // Predicated region
  $region114: #{sinet_forward.1} parent=0 // pred_check
    _
  $region115: #{sinet_forward.1} parent=0 // pred_check_branch
    %132 = sbr.rel (0) target = $region117
  $region116: #{sinet_forward.1} parent=0 // pred_region
    _
  $region117: #{sinet_forward.1} parent=0 // pred_fallthru
    _
  // Predicated region
  $region118: #{sinet_forward.1} parent=0 // pred_check
    _
  $region119: #{sinet_forward.1} parent=0 // pred_check_branch
    %134 = sbr.rel (0) target = $region121
  $region120: #{sinet_forward.1} parent=0 // pred_region
    _
  $region121: #{sinet_forward.1} parent=0 // pred_fallthru
    _
  // Predicated region
  $region122: #{sinet_forward.1} parent=0 // pred_check
    _
  $region123: #{sinet_forward.1} parent=0 // pred_check_branch
    %136 = sbr.rel (0) target = $region125
  $region124: #{sinet_forward.1} parent=0 // pred_region
    _
  $region125: #{sinet_forward.1} parent=0 // pred_fallthru
    _
  // Predicated region
  $region126: #{sinet_forward.1} parent=0 // pred_check
    _
  $region127: #{sinet_forward.1} parent=0 // pred_check_branch
    %138 = sbr.rel (0) target = $region129
  $region128: #{sinet_forward.1} parent=0 // pred_region
    _
  $region129: #{sinet_forward.1} parent=0 // pred_fallthru
    _
  // Predicated region
  $region130: #{sinet_forward.1} parent=0 // pred_check
    _
  $region131: #{sinet_forward.1} parent=0 // pred_check_branch
    %140 = sbr.rel (0) target = $region133
  $region132: #{sinet_forward.1} parent=0 // pred_region
    _
  $region133: #{sinet_forward.1} parent=0 // pred_fallthru
    _
  %v141 = vld [vmem:[%s1] sm:$0xff]
  %v142 = vld [vmem:[%s1 + $0x8] sm:$0xff]
  %v143 = vld [vmem:[%s1 + $0x10] sm:$0xff]
  %v144 = vld [vmem:[%s1 + $0x18] sm:$0xff]
  %v145 = vld [vmem:[%s1 + $0x20] sm:$0xff]
  %v146 = vld [vmem:[%s1 + $0x28] sm:$0xff]
  %v147 = vld [vmem:[%s3] sm:$0xff]
  %v148 = vld [vmem:[%s3 + $0x8] sm:$0xff]
  %v149 = vld [vmem:[%s3 + $0x10] sm:$0xff]
  %v150 = vld [vmem:[%s3 + $0x18] sm:$0xff]
  %v151 = vld [vmem:[%s3 + $0x20] sm:$0xff]
  %v152 = vld [vmem:[%s3 + $0x28] sm:$0xff]
  %v153 = vld [vmem:[%s3 + $0x30] sm:$0xff]
  %v154 = vld [vmem:[%s3 + $0x38] sm:$0xff]
  %v155 = vld [vmem:[%s3 + $0x40] sm:$0xff]
  %v156 = vld [vmem:[%s3 + $0x48] sm:$0xff]
  %v157 = vld [vmem:[%s3 + $0x50] sm:$0xff]
  %v158 = vld [vmem:[%s3 + $0x58] sm:$0xff]
  %v159 = vld [vmem:[%s3 + $0x60] sm:$0xff]
  %v160 = vld [vmem:[%s3 + $0x68] sm:$0xff]
  %v161 = vld [vmem:[%s3 + $0x70] sm:$0xff]
  %v162 = vld [vmem:[%s3 + $0x78] sm:$0xff]
  %v163 = vld [vmem:[%s3 + $0x80] sm:$0xff]
  %v164 = vld [vmem:[%s3 + $0x88] sm:$0xff]
  %v165 = vld [vmem:[%s3 + $0x90] sm:$0xff]
  %v166 = vld [vmem:[%s3 + $0x98] sm:$0xff]
  %v167 = vld [vmem:[%s3 + $0xa0] sm:$0xff]
  %v168 = vld [vmem:[%s3 + $0xa8] sm:$0xff]
  %v169 = vld [vmem:[%s3 + $0xb0] sm:$0xff]
  %v170 = vld [vmem:[%s3 + $0xb8] sm:$0xff]
  %v171 = vld [vmem:[%s3 + $0xc0] sm:$0xff]
  %v172 = vld [vmem:[%s3 + $0xc8] sm:$0xff]
  %v173 = vld [vmem:[%s3 + $0xd0] sm:$0xff]
  %v174 = vld [vmem:[%s3 + $0xd8] sm:$0xff]
  %v175 = vld [vmem:[%s3 + $0xe0] sm:$0xff]
  %v176 = vld [vmem:[%s3 + $0xe8] sm:$0xff]
  %v177 = vld [vmem:[%s3 + $0xf0] sm:$0xff]
  %v178 = vld [vmem:[%s3 + $0xf8] sm:$0xff]
  %v179 = vld [vmem:[%s3 + $0x100] sm:$0xff]
  %v180 = vld [vmem:[%s3 + $0x108] sm:$0xff]
  %v181 = vld [vmem:[%s3 + $0x110] sm:$0xff]
  %v182 = vld [vmem:[%s3 + $0x118] sm:$0xff]
  %v183 = vld [vmem:[%s3 + $0x120] sm:$0xff]
  %v184 = vld [vmem:[%s3 + $0x128] sm:$0xff]
  %v185 = vld [vmem:[%s3 + $0x130] sm:$0xff]
  %v186 = vld [vmem:[%s3 + $0x138] sm:$0xff]
  %v187 = vld [vmem:[%s3 + $0x140] sm:$0xff]
  %v188 = vld [vmem:[%s3 + $0x148] sm:$0xff]
  %v189 = vld [vmem:[%s3 + $0x150] sm:$0xff]
  %v190 = vld [vmem:[%s3 + $0x158] sm:$0xff]
  %v191 = vld [vmem:[%s3 + $0x160] sm:$0xff]
  %v192 = vld [vmem:[%s3 + $0x168] sm:$0xff]
  %v193 = vld [vmem:[%s3 + $0x170] sm:$0xff]
  %v194 = vld [vmem:[%s3 + $0x178] sm:$0xff]
  %v195 = vld [vmem:[%s3 + $0x180] sm:$0xff]
  %v196 = vld [vmem:[%s3 + $0x188] sm:$0xff]
  %v197 = vld [vmem:[%s3 + $0x190] sm:$0xff]
  %v198 = vld [vmem:[%s3 + $0x198] sm:$0xff]
  %v199 = vld [vmem:[%s3 + $0x1a0] sm:$0xff]
  %v200 = vld [vmem:[%s3 + $0x1a8] sm:$0xff]
  %v201 = vld [vmem:[%s3 + $0x1b0] sm:$0xff]
  %v202 = vld [vmem:[%s3 + $0x1b8] sm:$0xff]
  %v203 = vld [vmem:[%s3 + $0x1c0] sm:$0xff]
  %v204 = vld [vmem:[%s3 + $0x1c8] sm:$0xff]
  %v205 = vld [vmem:[%s3 + $0x1d0] sm:$0xff]
  %v206 = vld [vmem:[%s3 + $0x1d8] sm:$0xff]
  %v207 = vld [vmem:[%s3 + $0x1e0] sm:$0xff]
  %v208 = vld [vmem:[%s3 + $0x1e8] sm:$0xff]
  %v209 = vld [vmem:[%s3 + $0x1f0] sm:$0xff]
  %v210 = vld [vmem:[%s3 + $0x1f8] sm:$0xff]
  %v211 = vld [vmem:[%s3 + $0x200] sm:$0xff]
  %v212 = vld [vmem:[%s3 + $0x208] sm:$0xff]
  %v213 = vld [vmem:[%s3 + $0x210] sm:$0xff]
  %v214 = vld [vmem:[%s3 + $0x218] sm:$0xff]
  %v215 = vld [vmem:[%s3 + $0x220] sm:$0xff]
  %v216 = vld [vmem:[%s3 + $0x228] sm:$0xff]
  %v217 = vld [vmem:[%s3 + $0x230] sm:$0xff]
  %v218 = vld [vmem:[%s3 + $0x238] sm:$0xff]
  %v219 = vld [vmem:[%s3 + $0x240] sm:$0xff]
  %v220 = vld [vmem:[%s3 + $0x248] sm:$0xff]
  %v221 = vld [vmem:[%s3 + $0x250] sm:$0xff]
  %v222 = vld [vmem:[%s3 + $0x258] sm:$0xff]
  %v223 = vld [vmem:[%s3 + $0x260] sm:$0xff]
  %v224 = vld [vmem:[%s3 + $0x268] sm:$0xff]
  %v225 = vld [vmem:[%s3 + $0x270] sm:$0xff]
  %v226 = vld [vmem:[%s3 + $0x278] sm:$0xff]
  %v227 = vld [vmem:[%s3 + $0x280] sm:$0xff]
  %v228 = vld [vmem:[%s3 + $0x288] sm:$0xff]
  %v229 = vld [vmem:[%s3 + $0x290] sm:$0xff]
  %v230 = vld [vmem:[%s3 + $0x298] sm:$0xff]
  %v231 = vld [vmem:[%s3 + $0x2a0] sm:$0xff]
  %v232 = vld [vmem:[%s3 + $0x2a8] sm:$0xff]
  %v233 = vld [vmem:[%s3 + $0x2b0] sm:$0xff]
  %v234 = vld [vmem:[%s3 + $0x2b8] sm:$0xff]
  %v235 = vld [vmem:[%s3 + $0x2c0] sm:$0xff]
  %v236 = vld [vmem:[%s3 + $0x2c8] sm:$0xff]
  %v237 = vld [vmem:[%s3 + $0x2d0] sm:$0xff]
  %v238 = vld [vmem:[%s3 + $0x2d8] sm:$0xff]
  %v239 = vld [vmem:[%s3 + $0x2e0] sm:$0xff]
  %v240 = vld [vmem:[%s3 + $0x2e8] sm:$0xff]
  %v241 = vld [vmem:[%s3 + $0x2f0] sm:$0xff]
  %v242 = vld [vmem:[%s3 + $0x2f8] sm:$0xff]
  %v243 = vld [vmem:[%s5] sm:$0x1]
  %v245 = vlaneseq
  %v246 = vshrl.u32 %v245, 7
  %v247 = vsub.s32 0, %v246
  %v248 = vrot.slane %v243, %v247
  %250 = vmatprep.subr.mxu0 0.0
  %251 = vmatpush1.msra.mxu0 %v162
  %252 = vmatprep.subr.mxu0 0.0
  %253 = vmatpush1.msra.mxu0 %v161
  %254 = vmatprep.subr.mxu0 0.0
  %255 = vmatpush1.msra.mxu0 %v160
  %256 = vmatprep.subr.mxu0 0.0
  %257 = vmatpush1.msra.mxu0 %v159
  %258 = vmatprep.subr.mxu0 0.0
  %259 = vmatpush1.msra.mxu0 %v158
  %260 = vmatprep.subr.mxu0 0.0
  %261 = vmatpush1.msra.mxu0 %v157
  %262 = vmatprep.subr.mxu0 0.0
  %263 = vmatpush1.msra.mxu0 %v156
  %264 = vmatprep.subr.mxu0 0.0
  %265 = vmatpush1.msra.mxu0 %v155
  %266 = vmatprep.subr.mxu0 0.0
  %267 = vmatpush1.msra.mxu0 %v154
  %268 = vmatprep.subr.mxu0 0.0
  %269 = vmatpush1.msra.mxu0 %v153
  %270 = vmatprep.subr.mxu0 0.0
  %271 = vmatpush1.msra.mxu0 %v152
  %272 = vmatprep.subr.mxu0 0.0
  %273 = vmatpush1.msra.mxu0 %v151
  %274 = vmatprep.subr.mxu0 0.0
  %275 = vmatpush1.msra.mxu0 %v150
  %276 = vmatprep.subr.mxu0 0.0
  %277 = vmatpush1.msra.mxu0 %v149
  %278 = vmatprep.subr.mxu0 0.0
  %279 = vmatpush1.msra.mxu0 %v148
  %280 = vmatprep.subr.mxu0 0.0
  %281 = vmatpush1.msra.mxu0 %v147
  %282 = vmatprep.subr.mxu0 0.0
  %283 = vmatpush2.msra.mxu0 %v178
  %284 = vmatprep.subr.mxu0 0.0
  %285 = vmatpush2.msra.mxu0 %v177
  %286 = vmatprep.subr.mxu0 0.0
  %287 = vmatpush2.msra.mxu0 %v176
  %288 = vmatprep.subr.mxu0 0.0
  %289 = vmatpush2.msra.mxu0 %v175
  %290 = vmatprep.subr.mxu0 0.0
  %291 = vmatpush2.msra.mxu0 %v174
  %292 = vmatprep.subr.mxu0 0.0
  %293 = vmatpush2.msra.mxu0 %v173
  %294 = vmatprep.subr.mxu0 0.0
  %295 = vmatpush2.msra.mxu0 %v172
  %296 = vmatprep.subr.mxu0 0.0
  %297 = vmatpush2.msra.mxu0 %v171
  %298 = vmatprep.subr.mxu0 0.0
  %299 = vmatpush2.msra.mxu0 %v170
  %300 = vmatprep.subr.mxu0 0.0
  %301 = vmatpush2.msra.mxu0 %v169
  %302 = vmatprep.subr.mxu0 0.0
  %303 = vmatpush2.msra.mxu0 %v168
  %304 = vmatprep.subr.mxu0 0.0
  %305 = vmatpush2.msra.mxu0 %v167
  %306 = vmatprep.subr.mxu0 0.0
  %307 = vmatpush2.msra.mxu0 %v166
  %308 = vmatprep.subr.mxu0 0.0
  %309 = vmatpush2.msra.mxu0 %v165
  %310 = vmatprep.subr.mxu0 0.0
  %311 = vmatpush2.msra.mxu0 %v164
  %312 = vmatprep.subr.mxu0 0.0
  %313 = vmatpush2.msra.mxu0 %v163
  %314 = vmatprep.mubr.f32.mxu0 %v142
  %315 = vmatmul.mubr.f32.gmra.mxu0 %v141
  %v316 = vpop.f32.mrf.mxu0
  %v317 = vadd.f32 %v248, %v316
  %v318 = vpop.f32.mrf.mxu0
  %319 = vdwg.mxu0
  %320 = vmatprep.subr.mxu0 0.0
  %321 = vmatpush1.msra.mxu0 %v194
  %322 = vmatprep.subr.mxu0 0.0
  %323 = vmatpush1.msra.mxu0 %v193
  %324 = vmatprep.subr.mxu0 0.0
  %325 = vmatpush1.msra.mxu0 %v192
  %326 = vmatprep.subr.mxu0 0.0
  %327 = vmatpush1.msra.mxu0 %v191
  %328 = vmatprep.subr.mxu0 0.0
  %329 = vmatpush1.msra.mxu0 %v190
  %330 = vmatprep.subr.mxu0 0.0
  %331 = vmatpush1.msra.mxu0 %v189
  %332 = vmatprep.subr.mxu0 0.0
  %333 = vmatpush1.msra.mxu0 %v188
  %334 = vmatprep.subr.mxu0 0.0
  %335 = vmatpush1.msra.mxu0 %v187
  %336 = vmatprep.subr.mxu0 0.0
  %337 = vmatpush1.msra.mxu0 %v186
  %338 = vmatprep.subr.mxu0 0.0
  %339 = vmatpush1.msra.mxu0 %v185
  %340 = vmatprep.subr.mxu0 0.0
  %341 = vmatpush1.msra.mxu0 %v184
  %342 = vmatprep.subr.mxu0 0.0
  %343 = vmatpush1.msra.mxu0 %v183
  %344 = vmatprep.subr.mxu0 0.0
  %345 = vmatpush1.msra.mxu0 %v182
  %346 = vmatprep.subr.mxu0 0.0
  %347 = vmatpush1.msra.mxu0 %v181
  %348 = vmatprep.subr.mxu0 0.0
  %349 = vmatpush1.msra.mxu0 %v180
  %350 = vmatprep.subr.mxu0 0.0
  %351 = vmatpush1.msra.mxu0 %v179
  %352 = vmatprep.subr.mxu0 0.0
  %353 = vmatpush2.msra.mxu0 %v210
  %354 = vmatprep.subr.mxu0 0.0
  %355 = vmatpush2.msra.mxu0 %v209
  %356 = vmatprep.subr.mxu0 0.0
  %357 = vmatpush2.msra.mxu0 %v208
  %358 = vmatprep.subr.mxu0 0.0
  %359 = vmatpush2.msra.mxu0 %v207
  %360 = vmatprep.subr.mxu0 0.0
  %361 = vmatpush2.msra.mxu0 %v206
  %362 = vmatprep.subr.mxu0 0.0
  %363 = vmatpush2.msra.mxu0 %v205
  %364 = vmatprep.subr.mxu0 0.0
  %365 = vmatpush2.msra.mxu0 %v204
  %366 = vmatprep.subr.mxu0 0.0
  %367 = vmatpush2.msra.mxu0 %v203
  %368 = vmatprep.subr.mxu0 0.0
  %369 = vmatpush2.msra.mxu0 %v202
  %370 = vmatprep.subr.mxu0 0.0
  %371 = vmatpush2.msra.mxu0 %v201
  %372 = vmatprep.subr.mxu0 0.0
  %373 = vmatpush2.msra.mxu0 %v200
  %374 = vmatprep.subr.mxu0 0.0
  %375 = vmatpush2.msra.mxu0 %v199
  %376 = vmatprep.subr.mxu0 0.0
  %377 = vmatpush2.msra.mxu0 %v198
  %378 = vmatprep.subr.mxu0 0.0
  %379 = vmatpush2.msra.mxu0 %v197
  %380 = vmatprep.subr.mxu0 0.0
  %381 = vmatpush2.msra.mxu0 %v196
  %382 = vmatprep.subr.mxu0 0.0
  %383 = vmatpush2.msra.mxu0 %v195
  %384 = vmatprep.mubr.f32.mxu0 %v144
  %385 = vmatmul.mubr.f32.gmra.mxu0 %v143
  %v386 = vpop.f32.mrf.mxu0
  %v387 = vadd.f32 %v317, %v386
  %v388 = vpop.f32.mrf.mxu0
  %389 = vdwg.mxu0
  %390 = vmatprep.subr.mxu0 0.0
  %391 = vmatpush1.msra.mxu0 %v226
  %392 = vmatprep.subr.mxu0 0.0
  %393 = vmatpush1.msra.mxu0 %v225
  %394 = vmatprep.subr.mxu0 0.0
  %395 = vmatpush1.msra.mxu0 %v224
  %396 = vmatprep.subr.mxu0 0.0
  %397 = vmatpush1.msra.mxu0 %v223
  %398 = vmatprep.subr.mxu0 0.0
  %399 = vmatpush1.msra.mxu0 %v222
  %400 = vmatprep.subr.mxu0 0.0
  %401 = vmatpush1.msra.mxu0 %v221
  %402 = vmatprep.subr.mxu0 0.0
  %403 = vmatpush1.msra.mxu0 %v220
  %404 = vmatprep.subr.mxu0 0.0
  %405 = vmatpush1.msra.mxu0 %v219
  %406 = vmatprep.subr.mxu0 0.0
  %407 = vmatpush1.msra.mxu0 %v218
  %408 = vmatprep.subr.mxu0 0.0
  %409 = vmatpush1.msra.mxu0 %v217
  %410 = vmatprep.subr.mxu0 0.0
  %411 = vmatpush1.msra.mxu0 %v216
  %412 = vmatprep.subr.mxu0 0.0
  %413 = vmatpush1.msra.mxu0 %v215
  %414 = vmatprep.subr.mxu0 0.0
  %415 = vmatpush1.msra.mxu0 %v214
  %416 = vmatprep.subr.mxu0 0.0
  %417 = vmatpush1.msra.mxu0 %v213
  %418 = vmatprep.subr.mxu0 0.0
  %419 = vmatpush1.msra.mxu0 %v212
  %420 = vmatprep.subr.mxu0 0.0
  %421 = vmatpush1.msra.mxu0 %v211
  %422 = vmatprep.subr.mxu0 0.0
  %423 = vmatpush2.msra.mxu0 %v242
  %424 = vmatprep.subr.mxu0 0.0
  %425 = vmatpush2.msra.mxu0 %v241
  %426 = vmatprep.subr.mxu0 0.0
  %427 = vmatpush2.msra.mxu0 %v240
  %428 = vmatprep.subr.mxu0 0.0
  %429 = vmatpush2.msra.mxu0 %v239
  %430 = vmatprep.subr.mxu0 0.0
  %431 = vmatpush2.msra.mxu0 %v238
  %432 = vmatprep.subr.mxu0 0.0
  %433 = vmatpush2.msra.mxu0 %v237
  %434 = vmatprep.subr.mxu0 0.0
  %435 = vmatpush2.msra.mxu0 %v236
  %436 = vmatprep.subr.mxu0 0.0
  %437 = vmatpush2.msra.mxu0 %v235
  %438 = vmatprep.subr.mxu0 0.0
  %439 = vmatpush2.msra.mxu0 %v234
  %440 = vmatprep.subr.mxu0 0.0
  %441 = vmatpush2.msra.mxu0 %v233
  %442 = vmatprep.subr.mxu0 0.0
  %443 = vmatpush2.msra.mxu0 %v232
  %444 = vmatprep.subr.mxu0 0.0
  %445 = vmatpush2.msra.mxu0 %v231
  %446 = vmatprep.subr.mxu0 0.0
  %447 = vmatpush2.msra.mxu0 %v230
  %448 = vmatprep.subr.mxu0 0.0
  %449 = vmatpush2.msra.mxu0 %v229
  %450 = vmatprep.subr.mxu0 0.0
  %451 = vmatpush2.msra.mxu0 %v228
  %452 = vmatprep.subr.mxu0 0.0
  %453 = vmatpush2.msra.mxu0 %v227
  %454 = vmatprep.mubr.f32.mxu0 %v146
  %455 = vmatmul.mubr.f32.gmra.mxu0 %v145
  %v456 = vpop.f32.mrf.mxu0
  %v457 = vadd.f32 %v387, %v456
  %v458 = vpop.f32.mrf.mxu0
  %459 = vdwg.mxu0
  %v460 = vld [vmem:[%s9] sm:$0xff]
  %v461 = vadd.f32 %v460, %v460
  %v462 = vld [vmem:[%s7] sm:$0x1]
  %v463 = vadd.f32 %v462, %v461
  %vm464 = vcmask 516096
  %465 = vst.msk [vmem:[#allocation2] sm:$0x1] %vm464, %v463
  %v467 = vrot.slane %v461, 1
  %v469 = vadd.f32 %v457, %v467
  %vm470 = vcmask 519168
  %471 = vst.msk [vmem:[#allocation2 + $0x1] sm:$0xf] %vm470, %v469
  %vm472 = vcmask 518144
  %473 = vst.msk [vmem:[#allocation2 + $0x5] sm:$0x7] %vm472, 0.0
  %474 = vst.msk [vmem:[#allocation2 + $0x8] sm:$0x1] %vm464, %v463
  %v475 = vrot.slane %v461, 5
  %v477 = vadd.f32 %v457, %v475
  %vm478 = vcmask 523268
  %479 = vst.msk [vmem:[#allocation2 + $0x5] sm:$0xf0] %vm478, %v477
  %480 = vst.msk [vmem:[#allocation2 + $0xd] sm:$0x7] %vm472, 0.0
  %v481 = vld [vmem:[#allocation2] sm:$0xff]
  %v482 = vld [vmem:[#allocation2 + $0x8] sm:$0xff]
  %v483 = vlaneseq
  %v484 = vand.u32 %v483, 127
  %vm485 = vcmp.lt.s32.totalorder %v484, 5
  %v486 = vld [vmem:[%s11] sm:$0x1]
  %v487 = vld [vmem:[%s13] sm:$0x1]
  %v488 = vld [vmem:[%s15] sm:$0xff]
  %v489 = vld [vmem:[%s15 + $0x8] sm:$0xff]
  %v490 = vld [vmem:[%s15 + $0x10] sm:$0xff]
  %v491 = vld [vmem:[%s15 + $0x18] sm:$0xff]
  %v492 = vld [vmem:[%s15 + $0x20] sm:$0xff]
  %v493 = vld [vmem:[%s15 + $0x28] sm:$0xff]
  %v494 = vld [vmem:[%s15 + $0x30] sm:$0xff]
  %v495 = vld [vmem:[%s15 + $0x38] sm:$0xff]
  %v496 = vld [vmem:[%s15 + $0x40] sm:$0xff]
  %v497 = vld [vmem:[%s15 + $0x48] sm:$0xff]
  %v498 = vld [vmem:[%s15 + $0x50] sm:$0xff]
  %v499 = vld [vmem:[%s15 + $0x58] sm:$0xff]
  %v500 = vld [vmem:[%s15 + $0x60] sm:$0xff]
  %v501 = vld [vmem:[%s15 + $0x68] sm:$0xff]
  %v502 = vld [vmem:[%s15 + $0x70] sm:$0xff]
  %v503 = vld [vmem:[%s15 + $0x78] sm:$0xff]
  %v504 = vld [vmem:[%s17] sm:$0x3]
  %v505 = vld [vmem:[%s19] sm:$0xff]
  %v506 = vld [vmem:[%s19 + $0x8] sm:$0xff]
  %v507 = vld [vmem:[%s19 + $0x10] sm:$0xff]
  %v508 = vld [vmem:[%s19 + $0x18] sm:$0xff]
  %v509 = vld [vmem:[%s19 + $0x20] sm:$0xff]
  %v510 = vld [vmem:[%s19 + $0x28] sm:$0xff]
  %v511 = vld [vmem:[%s19 + $0x30] sm:$0xff]
  %v512 = vld [vmem:[%s19 + $0x38] sm:$0xff]
  %v513 = vld [vmem:[%s21] sm:$0x1]
  %v514 = vld [vmem:[%s23] sm:$0x1]
  %v515 = vld [vmem:[%s25] sm:$0x1]
  %v516 = vld [vmem:[%s27] sm:$0xff]
  %v517 = vld [vmem:[%s27 + $0x8] sm:$0xff]
  %v518 = vld [vmem:[%s27 + $0x10] sm:$0xff]
  %v519 = vld [vmem:[%s27 + $0x18] sm:$0xff]
  %v520 = vld [vmem:[%s27 + $0x20] sm:$0xff]
  %v521 = vld [vmem:[%s27 + $0x28] sm:$0xff]
  %v522 = vld [vmem:[%s27 + $0x30] sm:$0xff]
  %v523 = vld [vmem:[%s27 + $0x38] sm:$0xff]
  %v524 = vld [vmem:[%s27 + $0x40] sm:$0xff]
  %v525 = vld [vmem:[%s27 + $0x48] sm:$0xff]
  %v526 = vld [vmem:[%s27 + $0x50] sm:$0xff]
  %v527 = vld [vmem:[%s27 + $0x58] sm:$0xff]
  %v528 = vld [vmem:[%s27 + $0x60] sm:$0xff]
  %v529 = vld [vmem:[%s27 + $0x68] sm:$0xff]
  %v530 = vld [vmem:[%s27 + $0x70] sm:$0xff]
  %v531 = vld [vmem:[%s27 + $0x78] sm:$0xff]
  %v532 = vld [vmem:[%s29] sm:$0x3]
  %v533 = vld [vmem:[%s31] sm:$0xff]
  %v534 = vld [vmem:[%s31 + $0x8] sm:$0xff]
  %v535 = vld [vmem:[%s31 + $0x10] sm:$0xff]
  %v536 = vld [vmem:[%s31 + $0x18] sm:$0xff]
  %v537 = vld [vmem:[%s31 + $0x20] sm:$0xff]
  %v538 = vld [vmem:[%s31 + $0x28] sm:$0xff]
  %v539 = vld [vmem:[%s31 + $0x30] sm:$0xff]
  %v540 = vld [vmem:[%s31 + $0x38] sm:$0xff]
  %v541 = vld [vmem:[%s31 + $0x40] sm:$0xff]
  %v542 = vld [vmem:[%s31 + $0x48] sm:$0xff]
  %v543 = vld [vmem:[%s31 + $0x50] sm:$0xff]
  %v544 = vld [vmem:[%s31 + $0x58] sm:$0xff]
  %v545 = vld [vmem:[%s31 + $0x60] sm:$0xff]
  %v546 = vld [vmem:[%s31 + $0x68] sm:$0xff]
  %v547 = vld [vmem:[%s31 + $0x70] sm:$0xff]
  %v548 = vld [vmem:[%s31 + $0x78] sm:$0xff]
  %v549 = vld [vmem:[%s31 + $0x80] sm:$0xff]
  %v550 = vld [vmem:[%s31 + $0x88] sm:$0xff]
  %v551 = vld [vmem:[%s31 + $0x90] sm:$0xff]
  %v552 = vld [vmem:[%s31 + $0x98] sm:$0xff]
  %v553 = vld [vmem:[%s31 + $0xa0] sm:$0xff]
  %v554 = vld [vmem:[%s31 + $0xa8] sm:$0xff]
  %v555 = vld [vmem:[%s31 + $0xb0] sm:$0xff]
  %v556 = vld [vmem:[%s31 + $0xb8] sm:$0xff]
  %v557 = vld [vmem:[%s31 + $0xc0] sm:$0xff]
  %v558 = vld [vmem:[%s31 + $0xc8] sm:$0xff]
  %v559 = vld [vmem:[%s31 + $0xd0] sm:$0xff]
  %v560 = vld [vmem:[%s31 + $0xd8] sm:$0xff]
  %v561 = vld [vmem:[%s31 + $0xe0] sm:$0xff]
  %v562 = vld [vmem:[%s31 + $0xe8] sm:$0xff]
  %v563 = vld [vmem:[%s31 + $0xf0] sm:$0xff]
  %v564 = vld [vmem:[%s31 + $0xf8] sm:$0xff]
  %v565 = vld [vmem:[%s33] sm:$0x1]
  %vm566 = vcmask 523264
  %v567 = vsel %vm566, %v481, 0.0
  %568 = vadd.xlane.f32.xlu0 %v567
  %v569 = vpop.xlane.xlu0 %568
  %v570 = vsel %vm566, %v482, 0.0
  %571 = vadd.xlane.f32.xlu0 %v570
  %v572 = vpop.xlane.xlu0 %571
  %v573 = vrcp.pop 64.0
  %v574 = vmul.f32 %v569, %v573
  %v575 = vmul.f32 %v572, %v573
  %v576 = vsub.f32 %v481, %v574
  %v577 = vsub.f32 %v482, %v575
  %v578 = vmul.f32 %v576, %v576
  %v579 = vmul.f32 %v577, %v577
  %v580 = vsel %vm566, %v578, 0.0
  %581 = vadd.xlane.f32.xlu0 %v580
  %v582 = vpop.xlane.xlu0 %581
  %v583 = vsel %vm566, %v579, 0.0
  %584 = vadd.xlane.f32.xlu0 %v583
  %v585 = vpop.xlane.xlu0 %584
  %v586 = vmul.f32 %v582, %v573
  %v587 = vmul.f32 %v585, %v573
  %v588 = vadd.f32 %v586, 1e-06
  %v589 = vadd.f32 %v587, 1e-06
  %v590 = vrsqrt.pop %v588
  %v591 = vrsqrt.pop %v589
  %v592 = vmul.f32 %v576, %v590
  %v593 = vmul.f32 %v577, %v591
  %v595 = vlaneseq
  %v596 = vshrl.u32 %v595, 7
  %v597 = vsub.s32 0, %v596
  %v598 = vrot.slane %v486, %v597
  %v600 = vmul.f32 %v592, %v598
  %v601 = vmul.f32 %v593, %v598
  %v603 = vlaneseq
  %v604 = vshrl.u32 %v603, 7
  %v605 = vsub.s32 0, %v604
  %v606 = vrot.slane %v487, %v605
  %v608 = vadd.f32 %v600, %v606
  %v609 = vadd.f32 %v601, %v606
  %v611 = vlaneseq
  %v612 = vshrl.u32 %v611, 7
  %v613 = vsub.s32 0, %v612
  %v614 = vrot.slane %v504, %v613
  %v615 = vlaneseq
  %v616 = vshrl.u32 %v615, 7
  %v617 = vsub.s32 1, %v616
  %v618 = vrot.slane %v504, %v617
  %v622 = vsel %vm566, %v608, 0
  %v625 = vsel %vm566, %v609, 0
  %627 = vmatprep.subr.mxu0 0.0
  %628 = vmatpush1.msra.mxu0 0.0
  %629 = vmatprep.subr.mxu0 0.0
  %630 = vmatpush1.msra.mxu0 0.0
  %631 = vmatprep.subr.mxu0 0.0
  %632 = vmatpush1.msra.mxu0 0.0
  %633 = vmatprep.subr.mxu0 0.0
  %634 = vmatpush1.msra.mxu0 0.0
  %635 = vmatprep.subr.mxu0 0.0
  %636 = vmatpush1.msra.mxu0 0.0
  %637 = vmatprep.subr.mxu0 0.0
  %638 = vmatpush1.msra.mxu0 0.0
  %639 = vmatprep.subr.mxu0 0.0
  %640 = vmatpush1.msra.mxu0 0.0
  %641 = vmatprep.subr.mxu0 0.0
  %642 = vmatpush1.msra.mxu0 0.0
  %643 = vmatprep.subr.mxu0 %v503
  %644 = vmatpush1.msra.mxu0 %v502
  %645 = vmatprep.subr.mxu0 %v501
  %646 = vmatpush1.msra.mxu0 %v500
  %647 = vmatprep.subr.mxu0 %v499
  %648 = vmatpush1.msra.mxu0 %v498
  %649 = vmatprep.subr.mxu0 %v497
  %650 = vmatpush1.msra.mxu0 %v496
  %651 = vmatprep.subr.mxu0 %v495
  %652 = vmatpush1.msra.mxu0 %v494
  %653 = vmatprep.subr.mxu0 %v493
  %654 = vmatpush1.msra.mxu0 %v492
  %655 = vmatprep.subr.mxu0 %v491
  %656 = vmatpush1.msra.mxu0 %v490
  %657 = vmatprep.subr.mxu0 %v489
  %658 = vmatpush1.msra.mxu0 %v488
  %659 = vmatprep.subr.mxu0 0.0
  %660 = vmatpush2.msra.mxu0 0.0
  %661 = vmatprep.subr.mxu0 0.0
  %662 = vmatpush2.msra.mxu0 0.0
  %663 = vmatprep.subr.mxu0 0.0
  %664 = vmatpush2.msra.mxu0 0.0
  %665 = vmatprep.subr.mxu0 0.0
  %666 = vmatpush2.msra.mxu0 0.0
  %667 = vmatprep.subr.mxu0 0.0
  %668 = vmatpush2.msra.mxu0 0.0
  %669 = vmatprep.subr.mxu0 0.0
  %670 = vmatpush2.msra.mxu0 0.0
  %671 = vmatprep.subr.mxu0 0.0
  %672 = vmatpush2.msra.mxu0 0.0
  %673 = vmatprep.subr.mxu0 0.0
  %674 = vmatpush2.msra.mxu0 0.0
  %675 = vmatprep.subr.mxu0 0.0
  %676 = vmatpush2.msra.mxu0 0.0
  %677 = vmatprep.subr.mxu0 0.0
  %678 = vmatpush2.msra.mxu0 0.0
  %679 = vmatprep.subr.mxu0 0.0
  %680 = vmatpush2.msra.mxu0 0.0
  %681 = vmatprep.subr.mxu0 0.0
  %682 = vmatpush2.msra.mxu0 0.0
  %683 = vmatprep.subr.mxu0 0.0
  %684 = vmatpush2.msra.mxu0 0.0
  %685 = vmatprep.subr.mxu0 0.0
  %686 = vmatpush2.msra.mxu0 0.0
  %687 = vmatprep.subr.mxu0 0.0
  %688 = vmatpush2.msra.mxu0 0.0
  %689 = vmatprep.subr.mxu0 0.0
  %690 = vmatpush2.msra.mxu0 0.0
  %691 = vmatprep.mubr.f32.mxu0 0.0
  %692 = vmatmul.mubr.f32.gmra.mxu0 %v622
  %v693 = vpop.f32.mrf.mxu0
  %v694 = vadd.f32 %v614, %v693
  %v695 = vpop.f32.mrf.mxu0
  %v696 = vadd.f32 %v618, %v695
  %697 = vmatprep.mubr.f32.mxu0 0.0
  %698 = vmatmul.mubr.f32.gmra.mxu0 %v625
  %v699 = vpop.f32.mrf.mxu0
  %v700 = vadd.f32 %v614, %v699
  %v701 = vpop.f32.mrf.mxu0
  %v702 = vadd.f32 %v618, %v701
  %703 = vdwg.mxu0
  %v704 = vmul.f32 %v694, 0.25
  %706 = vrot.lane.b32.xlu0 %v694, 64
  %v707 = vpop.permute.xlu0 %706
  %vm708 = vcmask 130048
  %v710 = vsel %vm708, %v704, 0
  %v712 = vsel %vm708, %v707, 0
  %714 = vmatprep.subr.mxu0 0.0
  %715 = vmatpush1.xpose.msra.mxu0 0.0
  %716 = vmatprep.subr.mxu0 0.0
  %717 = vmatpush1.xpose.msra.mxu0 0.0
  %718 = vmatprep.subr.mxu0 0.0
  %719 = vmatpush1.xpose.msra.mxu0 0.0
  %720 = vmatprep.subr.mxu0 0.0
  %721 = vmatpush1.xpose.msra.mxu0 0.0
  %722 = vmatprep.subr.mxu0 0.0
  %723 = vmatpush1.xpose.msra.mxu0 0.0
  %724 = vmatprep.subr.mxu0 0.0
  %725 = vmatpush1.xpose.msra.mxu0 0.0
  %726 = vmatprep.subr.mxu0 0.0
  %727 = vmatpush1.xpose.msra.mxu0 0.0
  %728 = vmatprep.subr.mxu0 0.0
  %729 = vmatpush1.xpose.msra.mxu0 0.0
  %730 = vmatprep.subr.mxu0 0.0
  %731 = vmatpush1.xpose.msra.mxu0 0.0
  %732 = vmatprep.subr.mxu0 0.0
  %733 = vmatpush1.xpose.msra.mxu0 0.0
  %734 = vmatprep.subr.mxu0 0.0
  %735 = vmatpush1.xpose.msra.mxu0 0.0
  %736 = vmatprep.subr.mxu0 0.0
  %737 = vmatpush1.xpose.msra.mxu0 0.0
  %738 = vmatprep.subr.mxu0 0.0
  %739 = vmatpush1.xpose.msra.mxu0 0.0
  %740 = vmatprep.subr.mxu0 0.0
  %741 = vmatpush1.xpose.msra.mxu0 0.0
  %742 = vmatprep.subr.mxu0 0.0
  %743 = vmatpush1.xpose.msra.mxu0 0.0
  %744 = vmatprep.subr.mxu0 0.0
  %745 = vmatpush1.xpose.msra.mxu0 %v712
  %746 = vmatprep.subr.mxu0 0.0
  %747 = vmatpush2.xpose.msra.mxu0 0.0
  %748 = vmatprep.subr.mxu0 0.0
  %749 = vmatpush2.xpose.msra.mxu0 0.0
  %750 = vmatprep.subr.mxu0 0.0
  %751 = vmatpush2.xpose.msra.mxu0 0.0
  %752 = vmatprep.subr.mxu0 0.0
  %753 = vmatpush2.xpose.msra.mxu0 0.0
  %754 = vmatprep.subr.mxu0 0.0
  %755 = vmatpush2.xpose.msra.mxu0 0.0
  %756 = vmatprep.subr.mxu0 0.0
  %757 = vmatpush2.xpose.msra.mxu0 0.0
  %758 = vmatprep.subr.mxu0 0.0
  %759 = vmatpush2.xpose.msra.mxu0 0.0
  %760 = vmatprep.subr.mxu0 0.0
  %761 = vmatpush2.xpose.msra.mxu0 0.0
  %762 = vmatprep.subr.mxu0 0.0
  %763 = vmatpush2.xpose.msra.mxu0 0.0
  %764 = vmatprep.subr.mxu0 0.0
  %765 = vmatpush2.xpose.msra.mxu0 0.0
  %766 = vmatprep.subr.mxu0 0.0
  %767 = vmatpush2.xpose.msra.mxu0 0.0
  %768 = vmatprep.subr.mxu0 0.0
  %769 = vmatpush2.xpose.msra.mxu0 0.0
  %770 = vmatprep.subr.mxu0 0.0
  %771 = vmatpush2.xpose.msra.mxu0 0.0
  %772 = vmatprep.subr.mxu0 0.0
  %773 = vmatpush2.xpose.msra.mxu0 0.0
  %774 = vmatprep.subr.mxu0 0.0
  %775 = vmatpush2.xpose.msra.mxu0 0.0
  %776 = vmatprep.subr.mxu0 0.0
  %777 = vmatpush2.xpose.msra.mxu0 0.0
  %778 = vmatprep.mubr.f32.mxu0 0.0
  %779 = vmatmul.mubr.f32.gmra.mxu0 %v710
  %v780 = vpop.f32.mrf.mxu0
  %v781 = vadd.f32 0.0, %v780
  %v782 = vpop.f32.mrf.mxu0
  %783 = vdwg.mxu0
  %v784 = vsel %vm485, %v781, -1e+30
  %vm785 = vcmask 64512
  %v786 = vsel %vm785, %v784, -inf
  %787 = vmax.xlane.f32.xlu0 %v786
  %v788 = vpop.xlane.xlu0 %787
  %v789 = vsub.f32 %v784, %v788
  %v790 = vmul.f32 %v789, 1.442695
  %v791 = vpow.pop %v790
  %v792 = vsel %vm785, %v791, 0.0
  %793 = vadd.xlane.f32.xlu0 %v792
  %v794 = vpop.xlane.xlu0 %793
  %v795 = vrcp.pop %v794
  %v796 = vmul.f32 %v791, %v795
  %v798 = vsel %vm785, %v796, 0
  %800 = vmatprep.subr.mxu0 0.0
  %801 = vmatpush1.msra.mxu0 0.0
  %802 = vmatprep.subr.mxu0 0.0
  %803 = vmatpush1.msra.mxu0 0.0
  %804 = vmatprep.subr.mxu0 0.0
  %805 = vmatpush1.msra.mxu0 0.0
  %806 = vmatprep.subr.mxu0 0.0
  %807 = vmatpush1.msra.mxu0 0.0
  %808 = vmatprep.subr.mxu0 0.0
  %809 = vmatpush1.msra.mxu0 0.0
  %810 = vmatprep.subr.mxu0 0.0
  %811 = vmatpush1.msra.mxu0 0.0
  %812 = vmatprep.subr.mxu0 0.0
  %813 = vmatpush1.msra.mxu0 0.0
  %814 = vmatprep.subr.mxu0 0.0
  %815 = vmatpush1.msra.mxu0 0.0
  %816 = vmatprep.subr.mxu0 0.0
  %817 = vmatpush1.msra.mxu0 0.0
  %818 = vmatprep.subr.mxu0 0.0
  %819 = vmatpush1.msra.mxu0 0.0
  %820 = vmatprep.subr.mxu0 0.0
  %821 = vmatpush1.msra.mxu0 0.0
  %822 = vmatprep.subr.mxu0 0.0
  %823 = vmatpush1.msra.mxu0 0.0
  %824 = vmatprep.subr.mxu0 0.0
  %825 = vmatpush1.msra.mxu0 0.0
  %826 = vmatprep.subr.mxu0 0.0
  %827 = vmatpush1.msra.mxu0 0.0
  %828 = vmatprep.subr.mxu0 0.0
  %829 = vmatpush1.msra.mxu0 0.0
  %830 = vmatprep.subr.mxu0 0.0
  %831 = vmatpush1.msra.mxu0 %v696
  %832 = vmatprep.subr.mxu0 0.0
  %833 = vmatpush2.msra.mxu0 0.0
  %834 = vmatprep.subr.mxu0 0.0
  %835 = vmatpush2.msra.mxu0 0.0
  %836 = vmatprep.subr.mxu0 0.0
  %837 = vmatpush2.msra.mxu0 0.0
  %838 = vmatprep.subr.mxu0 0.0
  %839 = vmatpush2.msra.mxu0 0.0
  %840 = vmatprep.subr.mxu0 0.0
  %841 = vmatpush2.msra.mxu0 0.0
  %842 = vmatprep.subr.mxu0 0.0
  %843 = vmatpush2.msra.mxu0 0.0
  %844 = vmatprep.subr.mxu0 0.0
  %845 = vmatpush2.msra.mxu0 0.0
  %846 = vmatprep.subr.mxu0 0.0
  %847 = vmatpush2.msra.mxu0 0.0
  %848 = vmatprep.subr.mxu0 0.0
  %849 = vmatpush2.msra.mxu0 0.0
  %850 = vmatprep.subr.mxu0 0.0
  %851 = vmatpush2.msra.mxu0 0.0
  %852 = vmatprep.subr.mxu0 0.0
  %853 = vmatpush2.msra.mxu0 0.0
  %854 = vmatprep.subr.mxu0 0.0
  %855 = vmatpush2.msra.mxu0 0.0
  %856 = vmatprep.subr.mxu0 0.0
  %857 = vmatpush2.msra.mxu0 0.0
  %858 = vmatprep.subr.mxu0 0.0
  %859 = vmatpush2.msra.mxu0 0.0
  %860 = vmatprep.subr.mxu0 0.0
  %861 = vmatpush2.msra.mxu0 0.0
  %862 = vmatprep.subr.mxu0 0.0
  %863 = vmatpush2.msra.mxu0 0.0
  %864 = vmatprep.mubr.f32.mxu0 0.0
  %865 = vmatmul.mubr.f32.gmra.mxu0 %v798
  %v866 = vpop.f32.mrf.mxu0
  %v867 = vadd.f32 0.0, %v866
  %v868 = vpop.f32.mrf.mxu0
  %869 = vdwg.mxu0
  %870 = vst.msk [vmem:[#allocation3] sm:$0xff] %vm708, %v867
  %871 = vrot.lane.b32.xlu0 %v704, 112
  %v872 = vpop.permute.xlu0 %871
  %873 = vrot.lane.b32.xlu0 %v694, 48
  %v874 = vpop.permute.xlu0 %873
  %v875 = vsel %vm708, %v872, 0
  %v877 = vsel %vm708, %v874, 0
  %879 = vmatprep.subr.mxu0 0.0
  %880 = vmatpush1.xpose.msra.mxu0 0.0
  %881 = vmatprep.subr.mxu0 0.0
  %882 = vmatpush1.xpose.msra.mxu0 0.0
  %883 = vmatprep.subr.mxu0 0.0
  %884 = vmatpush1.xpose.msra.mxu0 0.0
  %885 = vmatprep.subr.mxu0 0.0
  %886 = vmatpush1.xpose.msra.mxu0 0.0
  %887 = vmatprep.subr.mxu0 0.0
  %888 = vmatpush1.xpose.msra.mxu0 0.0
  %889 = vmatprep.subr.mxu0 0.0
  %890 = vmatpush1.xpose.msra.mxu0 0.0
  %891 = vmatprep.subr.mxu0 0.0
  %892 = vmatpush1.xpose.msra.mxu0 0.0
  %893 = vmatprep.subr.mxu0 0.0
  %894 = vmatpush1.xpose.msra.mxu0 0.0
  %895 = vmatprep.subr.mxu0 0.0
  %896 = vmatpush1.xpose.msra.mxu0 0.0
  %897 = vmatprep.subr.mxu0 0.0
  %898 = vmatpush1.xpose.msra.mxu0 0.0
  %899 = vmatprep.subr.mxu0 0.0
  %900 = vmatpush1.xpose.msra.mxu0 0.0
  %901 = vmatprep.subr.mxu0 0.0
  %902 = vmatpush1.xpose.msra.mxu0 0.0
  %903 = vmatprep.subr.mxu0 0.0
  %904 = vmatpush1.xpose.msra.mxu0 0.0
  %905 = vmatprep.subr.mxu0 0.0
  %906 = vmatpush1.xpose.msra.mxu0 0.0
  %907 = vmatprep.subr.mxu0 0.0
  %908 = vmatpush1.xpose.msra.mxu0 0.0
  %909 = vmatprep.subr.mxu0 0.0
  %910 = vmatpush1.xpose.msra.mxu0 %v877
  %911 = vmatprep.subr.mxu0 0.0
  %912 = vmatpush2.xpose.msra.mxu0 0.0
  %913 = vmatprep.subr.mxu0 0.0
  %914 = vmatpush2.xpose.msra.mxu0 0.0
  %915 = vmatprep.subr.mxu0 0.0
  %916 = vmatpush2.xpose.msra.mxu0 0.0
  %917 = vmatprep.subr.mxu0 0.0
  %918 = vmatpush2.xpose.msra.mxu0 0.0
  %919 = vmatprep.subr.mxu0 0.0
  %920 = vmatpush2.xpose.msra.mxu0 0.0
  %921 = vmatprep.subr.mxu0 0.0
  %922 = vmatpush2.xpose.msra.mxu0 0.0
  %923 = vmatprep.subr.mxu0 0.0
  %924 = vmatpush2.xpose.msra.mxu0 0.0
  %925 = vmatprep.subr.mxu0 0.0
  %926 = vmatpush2.xpose.msra.mxu0 0.0
  %927 = vmatprep.subr.mxu0 0.0
  %928 = vmatpush2.xpose.msra.mxu0 0.0
  %929 = vmatprep.subr.mxu0 0.0
  %930 = vmatpush2.xpose.msra.mxu0 0.0
  %931 = vmatprep.subr.mxu0 0.0
  %932 = vmatpush2.xpose.msra.mxu0 0.0
  %933 = vmatprep.subr.mxu0 0.0
  %934 = vmatpush2.xpose.msra.mxu0 0.0
  %935 = vmatprep.subr.mxu0 0.0
  %936 = vmatpush2.xpose.msra.mxu0 0.0
  %937 = vmatprep.subr.mxu0 0.0
  %938 = vmatpush2.xpose.msra.mxu0 0.0
  %939 = vmatprep.subr.mxu0 0.0
  %940 = vmatpush2.xpose.msra.mxu0 0.0
  %941 = vmatprep.subr.mxu0 0.0
  %942 = vmatpush2.xpose.msra.mxu0 0.0
  %943 = vmatprep.mubr.f32.mxu0 0.0
  %944 = vmatmul.mubr.f32.gmra.mxu0 %v875
  %v945 = vpop.f32.mrf.mxu0
  %v946 = vadd.f32 0.0, %v945
  %v947 = vpop.f32.mrf.mxu0
  %948 = vdwg.mxu0
  %v949 = vsel %vm485, %v946, -1e+30
  %v950 = vsel %vm785, %v949, -inf
  %951 = vmax.xlane.f32.xlu0 %v950
  %v952 = vpop.xlane.xlu0 %951
  %v953 = vsub.f32 %v949, %v952
  %v954 = vmul.f32 %v953, 1.442695
  %v955 = vpow.pop %v954
  %v956 = vsel %vm785, %v955, 0.0
  %957 = vadd.xlane.f32.xlu0 %v956
  %v958 = vpop.xlane.xlu0 %957
  %v959 = vrcp.pop %v958
  %v960 = vmul.f32 %v955, %v959
  %962 = vrot.lane.b32.xlu0 %v696, 112
  %v963 = vpop.permute.xlu0 %962
  %v966 = vsel %vm785, %v960, 0
  %968 = vmatprep.subr.mxu0 0.0
  %969 = vmatpush1.msra.mxu0 0.0
  %970 = vmatprep.subr.mxu0 0.0
  %971 = vmatpush1.msra.mxu0 0.0
  %972 = vmatprep.subr.mxu0 0.0
  %973 = vmatpush1.msra.mxu0 0.0
  %974 = vmatprep.subr.mxu0 0.0
  %975 = vmatpush1.msra.mxu0 0.0
  %976 = vmatprep.subr.mxu0 0.0
  %977 = vmatpush1.msra.mxu0 0.0
  %978 = vmatprep.subr.mxu0 0.0
  %979 = vmatpush1.msra.mxu0 0.0
  %980 = vmatprep.subr.mxu0 0.0
  %981 = vmatpush1.msra.mxu0 0.0
  %982 = vmatprep.subr.mxu0 0.0
  %983 = vmatpush1.msra.mxu0 0.0
  %984 = vmatprep.subr.mxu0 0.0
  %985 = vmatpush1.msra.mxu0 0.0
  %986 = vmatprep.subr.mxu0 0.0
  %987 = vmatpush1.msra.mxu0 0.0
  %988 = vmatprep.subr.mxu0 0.0
  %989 = vmatpush1.msra.mxu0 0.0
  %990 = vmatprep.subr.mxu0 0.0
  %991 = vmatpush1.msra.mxu0 0.0
  %992 = vmatprep.subr.mxu0 0.0
  %993 = vmatpush1.msra.mxu0 0.0
  %994 = vmatprep.subr.mxu0 0.0
  %995 = vmatpush1.msra.mxu0 0.0
  %996 = vmatprep.subr.mxu0 0.0
  %997 = vmatpush1.msra.mxu0 0.0
  %998 = vmatprep.subr.mxu0 0.0
  %999 = vmatpush1.msra.mxu0 %v963
  %1000 = vmatprep.subr.mxu0 0.0
  %1001 = vmatpush2.msra.mxu0 0.0
  %1002 = vmatprep.subr.mxu0 0.0
  %1003 = vmatpush2.msra.mxu0 0.0
  %1004 = vmatprep.subr.mxu0 0.0
  %1005 = vmatpush2.msra.mxu0 0.0
  %1006 = vmatprep.subr.mxu0 0.0
  %1007 = vmatpush2.msra.mxu0 0.0
  %1008 = vmatprep.subr.mxu0 0.0
  %1009 = vmatpush2.msra.mxu0 0.0
  %1010 = vmatprep.subr.mxu0 0.0
  %1011 = vmatpush2.msra.mxu0 0.0
  %1012 = vmatprep.subr.mxu0 0.0
  %1013 = vmatpush2.msra.mxu0 0.0
  %1014 = vmatprep.subr.mxu0 0.0
  %1015 = vmatpush2.msra.mxu0 0.0
  %1016 = vmatprep.subr.mxu0 0.0
  %1017 = vmatpush2.msra.mxu0 0.0
  %1018 = vmatprep.subr.mxu0 0.0
  %1019 = vmatpush2.msra.mxu0 0.0
  %1020 = vmatprep.subr.mxu0 0.0
  %1021 = vmatpush2.msra.mxu0 0.0
  %1022 = vmatprep.subr.mxu0 0.0
  %1023 = vmatpush2.msra.mxu0 0.0
  %1024 = vmatprep.subr.mxu0 0.0
  %1025 = vmatpush2.msra.mxu0 0.0
  %1026 = vmatprep.subr.mxu0 0.0
  %1027 = vmatpush2.msra.mxu0 0.0
  %1028 = vmatprep.subr.mxu0 0.0
  %1029 = vmatpush2.msra.mxu0 0.0
  %1030 = vmatprep.subr.mxu0 0.0
  %1031 = vmatpush2.msra.mxu0 0.0
  %1032 = vmatprep.mubr.f32.mxu0 0.0
  %1033 = vmatmul.mubr.f32.gmra.mxu0 %v966
  %v1034 = vpop.f32.mrf.mxu0
  %v1035 = vadd.f32 0.0, %v1034
  %v1036 = vpop.f32.mrf.mxu0
  %1037 = vdwg.mxu0
  %1039 = vrot.lane.b32.xlu0 %v1035, 16
  %v1040 = vpop.permute.xlu0 %1039
  %vm1042 = vcmask 261248
  %1043 = vst.msk [vmem:[#allocation3] sm:$0xff] %vm1042, %v1040
  %1044 = vrot.lane.b32.xlu0 %v704, 96
  %v1045 = vpop.permute.xlu0 %1044
  %1046 = vrot.lane.b32.xlu0 %v694, 32
  %v1047 = vpop.permute.xlu0 %1046
  %v1048 = vsel %vm708, %v1045, 0
  %v1050 = vsel %vm708, %v1047, 0
  %1052 = vmatprep.subr.mxu0 0.0
  %1053 = vmatpush1.xpose.msra.mxu0 0.0
  %1054 = vmatprep.subr.mxu0 0.0
  %1055 = vmatpush1.xpose.msra.mxu0 0.0
  %1056 = vmatprep.subr.mxu0 0.0
  %1057 = vmatpush1.xpose.msra.mxu0 0.0
  %1058 = vmatprep.subr.mxu0 0.0
  %1059 = vmatpush1.xpose.msra.mxu0 0.0
  %1060 = vmatprep.subr.mxu0 0.0
  %1061 = vmatpush1.xpose.msra.mxu0 0.0
  %1062 = vmatprep.subr.mxu0 0.0
  %1063 = vmatpush1.xpose.msra.mxu0 0.0
  %1064 = vmatprep.subr.mxu0 0.0
  %1065 = vmatpush1.xpose.msra.mxu0 0.0
  %1066 = vmatprep.subr.mxu0 0.0
  %1067 = vmatpush1.xpose.msra.mxu0 0.0
  %1068 = vmatprep.subr.mxu0 0.0
  %1069 = vmatpush1.xpose.msra.mxu0 0.0
  %1070 = vmatprep.subr.mxu0 0.0
  %1071 = vmatpush1.xpose.msra.mxu0 0.0
  %1072 = vmatprep.subr.mxu0 0.0
  %1073 = vmatpush1.xpose.msra.mxu0 0.0
  %1074 = vmatprep.subr.mxu0 0.0
  %1075 = vmatpush1.xpose.msra.mxu0 0.0
  %1076 = vmatprep.subr.mxu0 0.0
  %1077 = vmatpush1.xpose.msra.mxu0 0.0
  %1078 = vmatprep.subr.mxu0 0.0
  %1079 = vmatpush1.xpose.msra.mxu0 0.0
  %1080 = vmatprep.subr.mxu0 0.0
  %1081 = vmatpush1.xpose.msra.mxu0 0.0
  %1082 = vmatprep.subr.mxu0 0.0
  %1083 = vmatpush1.xpose.msra.mxu0 %v1050
  %1084 = vmatprep.subr.mxu0 0.0
  %1085 = vmatpush2.xpose.msra.mxu0 0.0
  %1086 = vmatprep.subr.mxu0 0.0
  %1087 = vmatpush2.xpose.msra.mxu0 0.0
  %1088 = vmatprep.subr.mxu0 0.0
  %1089 = vmatpush2.xpose.msra.mxu0 0.0
  %1090 = vmatprep.subr.mxu0 0.0
  %1091 = vmatpush2.xpose.msra.mxu0 0.0
  %1092 = vmatprep.subr.mxu0 0.0
  %1093 = vmatpush2.xpose.msra.mxu0 0.0
  %1094 = vmatprep.subr.mxu0 0.0
  %1095 = vmatpush2.xpose.msra.mxu0 0.0
  %1096 = vmatprep.subr.mxu0 0.0
  %1097 = vmatpush2.xpose.msra.mxu0 0.0
  %1098 = vmatprep.subr.mxu0 0.0
  %1099 = vmatpush2.xpose.msra.mxu0 0.0
  %1100 = vmatprep.subr.mxu0 0.0
  %1101 = vmatpush2.xpose.msra.mxu0 0.0
  %1102 = vmatprep.subr.mxu0 0.0
  %1103 = vmatpush2.xpose.msra.mxu0 0.0
  %1104 = vmatprep.subr.mxu0 0.0
  %1105 = vmatpush2.xpose.msra.mxu0 0.0
  %1106 = vmatprep.subr.mxu0 0.0
  %1107 = vmatpush2.xpose.msra.mxu0 0.0
  %1108 = vmatprep.subr.mxu0 0.0
  %1109 = vmatpush2.xpose.msra.mxu0 0.0
  %1110 = vmatprep.subr.mxu0 0.0
  %1111 = vmatpush2.xpose.msra.mxu0 0.0
  %1112 = vmatprep.subr.mxu0 0.0
  %1113 = vmatpush2.xpose.msra.mxu0 0.0
  %1114 = vmatprep.subr.mxu0 0.0
  %1115 = vmatpush2.xpose.msra.mxu0 0.0
  %1116 = vmatprep.mubr.f32.mxu0 0.0
  %1117 = vmatmul.mubr.f32.gmra.mxu0 %v1048
  %v1118 = vpop.f32.mrf.mxu0
  %v1119 = vadd.f32 0.0, %v1118
  %v1120 = vpop.f32.mrf.mxu0
  %1121 = vdwg.mxu0
  %v1122 = vsel %vm485, %v1119, -1e+30
  %v1123 = vsel %vm785, %v1122, -inf
  %1124 = vmax.xlane.f32.xlu0 %v1123
  %v1125 = vpop.xlane.xlu0 %1124
  %v1126 = vsub.f32 %v1122, %v1125
  %v1127 = vmul.f32 %v1126, 1.442695
  %v1128 = vpow.pop %v1127
  %v1129 = vsel %vm785, %v1128, 0.0
  %1130 = vadd.xlane.f32.xlu0 %v1129
  %v1131 = vpop.xlane.xlu0 %1130
  %v1132 = vrcp.pop %v1131
  %v1133 = vmul.f32 %v1128, %v1132
  %1134 = vrot.lane.b32.xlu0 %v696, 96
  %v1135 = vpop.permute.xlu0 %1134
  %v1138 = vsel %vm785, %v1133, 0
  %1140 = vmatprep.subr.mxu0 0.0
  %1141 = vmatpush1.msra.mxu0 0.0
  %1142 = vmatprep.subr.mxu0 0.0
  %1143 = vmatpush1.msra.mxu0 0.0
  %1144 = vmatprep.subr.mxu0 0.0
  %1145 = vmatpush1.msra.mxu0 0.0
  %1146 = vmatprep.subr.mxu0 0.0
  %1147 = vmatpush1.msra.mxu0 0.0
  %1148 = vmatprep.subr.mxu0 0.0
  %1149 = vmatpush1.msra.mxu0 0.0
  %1150 = vmatprep.subr.mxu0 0.0
  %1151 = vmatpush1.msra.mxu0 0.0
  %1152 = vmatprep.subr.mxu0 0.0
  %1153 = vmatpush1.msra.mxu0 0.0
  %1154 = vmatprep.subr.mxu0 0.0
  %1155 = vmatpush1.msra.mxu0 0.0
  %1156 = vmatprep.subr.mxu0 0.0
  %1157 = vmatpush1.msra.mxu0 0.0
  %1158 = vmatprep.subr.mxu0 0.0
  %1159 = vmatpush1.msra.mxu0 0.0
  %1160 = vmatprep.subr.mxu0 0.0
  %1161 = vmatpush1.msra.mxu0 0.0
  %1162 = vmatprep.subr.mxu0 0.0
  %1163 = vmatpush1.msra.mxu0 0.0
  %1164 = vmatprep.subr.mxu0 0.0
  %1165 = vmatpush1.msra.mxu0 0.0
  %1166 = vmatprep.subr.mxu0 0.0
  %1167 = vmatpush1.msra.mxu0 0.0
  %1168 = vmatprep.subr.mxu0 0.0
  %1169 = vmatpush1.msra.mxu0 0.0
  %1170 = vmatprep.subr.mxu0 0.0
  %1171 = vmatpush1.msra.mxu0 %v1135
  %1172 = vmatprep.subr.mxu0 0.0
  %1173 = vmatpush2.msra.mxu0 0.0
  %1174 = vmatprep.subr.mxu0 0.0
  %1175 = vmatpush2.msra.mxu0 0.0
  %1176 = vmatprep.subr.mxu0 0.0
  %1177 = vmatpush2.msra.mxu0 0.0
  %1178 = vmatprep.subr.mxu0 0.0
  %1179 = vmatpush2.msra.mxu0 0.0
  %1180 = vmatprep.subr.mxu0 0.0
  %1181 = vmatpush2.msra.mxu0 0.0
  %1182 = vmatprep.subr.mxu0 0.0
  %1183 = vmatpush2.msra.mxu0 0.0
  %1184 = vmatprep.subr.mxu0 0.0
  %1185 = vmatpush2.msra.mxu0 0.0
  %1186 = vmatprep.subr.mxu0 0.0
  %1187 = vmatpush2.msra.mxu0 0.0
  %1188 = vmatprep.subr.mxu0 0.0
  %1189 = vmatpush2.msra.mxu0 0.0
  %1190 = vmatprep.subr.mxu0 0.0
  %1191 = vmatpush2.msra.mxu0 0.0
  %1192 = vmatprep.subr.mxu0 0.0
  %1193 = vmatpush2.msra.mxu0 0.0
  %1194 = vmatprep.subr.mxu0 0.0
  %1195 = vmatpush2.msra.mxu0 0.0
  %1196 = vmatprep.subr.mxu0 0.0
  %1197 = vmatpush2.msra.mxu0 0.0
  %1198 = vmatprep.subr.mxu0 0.0
  %1199 = vmatpush2.msra.mxu0 0.0
  %1200 = vmatprep.subr.mxu0 0.0
  %1201 = vmatpush2.msra.mxu0 0.0
  %1202 = vmatprep.subr.mxu0 0.0
  %1203 = vmatpush2.msra.mxu0 0.0
  %1204 = vmatprep.mubr.f32.mxu0 0.0
  %1205 = vmatmul.mubr.f32.gmra.mxu0 %v1138
  %v1206 = vpop.f32.mrf.mxu0
  %v1207 = vadd.f32 0.0, %v1206
  %v1208 = vpop.f32.mrf.mxu0
  %1209 = vdwg.mxu0
  %1211 = vrot.lane.b32.xlu0 %v1207, 32
  %v1212 = vpop.permute.xlu0 %1211
  %vm1214 = vcmask 392448
  %1215 = vst.msk [vmem:[#allocation3] sm:$0xff] %vm1214, %v1212
  %1216 = vrot.lane.b32.xlu0 %v704, 80
  %v1217 = vpop.permute.xlu0 %1216
  %1218 = vrot.lane.b32.xlu0 %v694, 16
  %v1219 = vpop.permute.xlu0 %1218
  %v1220 = vsel %vm708, %v1217, 0
  %v1222 = vsel %vm708, %v1219, 0
  %1224 = vmatprep.subr.mxu0 0.0
  %1225 = vmatpush1.xpose.msra.mxu0 0.0
  %1226 = vmatprep.subr.mxu0 0.0
  %1227 = vmatpush1.xpose.msra.mxu0 0.0
  %1228 = vmatprep.subr.mxu0 0.0
  %1229 = vmatpush1.xpose.msra.mxu0 0.0
  %1230 = vmatprep.subr.mxu0 0.0
  %1231 = vmatpush1.xpose.msra.mxu0 0.0
  %1232 = vmatprep.subr.mxu0 0.0
  %1233 = vmatpush1.xpose.msra.mxu0 0.0
  %1234 = vmatprep.subr.mxu0 0.0
  %1235 = vmatpush1.xpose.msra.mxu0 0.0
  %1236 = vmatprep.subr.mxu0 0.0
  %1237 = vmatpush1.xpose.msra.mxu0 0.0
  %1238 = vmatprep.subr.mxu0 0.0
  %1239 = vmatpush1.xpose.msra.mxu0 0.0
  %1240 = vmatprep.subr.mxu0 0.0
  %1241 = vmatpush1.xpose.msra.mxu0 0.0
  %1242 = vmatprep.subr.mxu0 0.0
  %1243 = vmatpush1.xpose.msra.mxu0 0.0
  %1244 = vmatprep.subr.mxu0 0.0
  %1245 = vmatpush1.xpose.msra.mxu0 0.0
  %1246 = vmatprep.subr.mxu0 0.0
  %1247 = vmatpush1.xpose.msra.mxu0 0.0
  %1248 = vmatprep.subr.mxu0 0.0
  %1249 = vmatpush1.xpose.msra.mxu0 0.0
  %1250 = vmatprep.subr.mxu0 0.0
  %1251 = vmatpush1.xpose.msra.mxu0 0.0
  %1252 = vmatprep.subr.mxu0 0.0
  %1253 = vmatpush1.xpose.msra.mxu0 0.0
  %1254 = vmatprep.subr.mxu0 0.0
  %1255 = vmatpush1.xpose.msra.mxu0 %v1222
  %1256 = vmatprep.subr.mxu0 0.0
  %1257 = vmatpush2.xpose.msra.mxu0 0.0
  %1258 = vmatprep.subr.mxu0 0.0
  %1259 = vmatpush2.xpose.msra.mxu0 0.0
  %1260 = vmatprep.subr.mxu0 0.0
  %1261 = vmatpush2.xpose.msra.mxu0 0.0
  %1262 = vmatprep.subr.mxu0 0.0
  %1263 = vmatpush2.xpose.msra.mxu0 0.0
  %1264 = vmatprep.subr.mxu0 0.0
  %1265 = vmatpush2.xpose.msra.mxu0 0.0
  %1266 = vmatprep.subr.mxu0 0.0
  %1267 = vmatpush2.xpose.msra.mxu0 0.0
  %1268 = vmatprep.subr.mxu0 0.0
  %1269 = vmatpush2.xpose.msra.mxu0 0.0
  %1270 = vmatprep.subr.mxu0 0.0
  %1271 = vmatpush2.xpose.msra.mxu0 0.0
  %1272 = vmatprep.subr.mxu0 0.0
  %1273 = vmatpush2.xpose.msra.mxu0 0.0
  %1274 = vmatprep.subr.mxu0 0.0
  %1275 = vmatpush2.xpose.msra.mxu0 0.0
  %1276 = vmatprep.subr.mxu0 0.0
  %1277 = vmatpush2.xpose.msra.mxu0 0.0
  %1278 = vmatprep.subr.mxu0 0.0
  %1279 = vmatpush2.xpose.msra.mxu0 0.0
  %1280 = vmatprep.subr.mxu0 0.0
  %1281 = vmatpush2.xpose.msra.mxu0 0.0
  %1282 = vmatprep.subr.mxu0 0.0
  %1283 = vmatpush2.xpose.msra.mxu0 0.0
  %1284 = vmatprep.subr.mxu0 0.0
  %1285 = vmatpush2.xpose.msra.mxu0 0.0
  %1286 = vmatprep.subr.mxu0 0.0
  %1287 = vmatpush2.xpose.msra.mxu0 0.0
  %1288 = vmatprep.mubr.f32.mxu0 0.0
  %1289 = vmatmul.mubr.f32.gmra.mxu0 %v1220
  %v1290 = vpop.f32.mrf.mxu0
  %v1291 = vadd.f32 0.0, %v1290
  %v1292 = vpop.f32.mrf.mxu0
  %1293 = vdwg.mxu0
  %v1294 = vsel %vm485, %v1291, -1e+30
  %v1295 = vsel %vm785, %v1294, -inf
  %1296 = vmax.xlane.f32.xlu0 %v1295
  %v1297 = vpop.xlane.xlu0 %1296
  %v1298 = vsub.f32 %v1294, %v1297
  %v1299 = vmul.f32 %v1298, 1.442695
  %v1300 = vpow.pop %v1299
  %v1301 = vsel %vm785, %v1300, 0.0
  %1302 = vadd.xlane.f32.xlu0 %v1301
  %v1303 = vpop.xlane.xlu0 %1302
  %v1304 = vrcp.pop %v1303
  %v1305 = vmul.f32 %v1300, %v1304
  %1306 = vrot.lane.b32.xlu0 %v696, 80
  %v1307 = vpop.permute.xlu0 %1306
  %v1310 = vsel %vm785, %v1305, 0
  %1312 = vmatprep.subr.mxu0 0.0
  %1313 = vmatpush1.msra.mxu0 0.0
  %1314 = vmatprep.subr.mxu0 0.0
  %1315 = vmatpush1.msra.mxu0 0.0
  %1316 = vmatprep.subr.mxu0 0.0
  %1317 = vmatpush1.msra.mxu0 0.0
  %1318 = vmatprep.subr.mxu0 0.0
  %1319 = vmatpush1.msra.mxu0 0.0
  %1320 = vmatprep.subr.mxu0 0.0
  %1321 = vmatpush1.msra.mxu0 0.0
  %1322 = vmatprep.subr.mxu0 0.0
  %1323 = vmatpush1.msra.mxu0 0.0
  %1324 = vmatprep.subr.mxu0 0.0
  %1325 = vmatpush1.msra.mxu0 0.0
  %1326 = vmatprep.subr.mxu0 0.0
  %1327 = vmatpush1.msra.mxu0 0.0
  %1328 = vmatprep.subr.mxu0 0.0
  %1329 = vmatpush1.msra.mxu0 0.0
  %1330 = vmatprep.subr.mxu0 0.0
  %1331 = vmatpush1.msra.mxu0 0.0
  %1332 = vmatprep.subr.mxu0 0.0
  %1333 = vmatpush1.msra.mxu0 0.0
  %1334 = vmatprep.subr.mxu0 0.0
  %1335 = vmatpush1.msra.mxu0 0.0
  %1336 = vmatprep.subr.mxu0 0.0
  %1337 = vmatpush1.msra.mxu0 0.0
  %1338 = vmatprep.subr.mxu0 0.0
  %1339 = vmatpush1.msra.mxu0 0.0
  %1340 = vmatprep.subr.mxu0 0.0
  %1341 = vmatpush1.msra.mxu0 0.0
  %1342 = vmatprep.subr.mxu0 0.0
  %1343 = vmatpush1.msra.mxu0 %v1307
  %1344 = vmatprep.subr.mxu0 0.0
  %1345 = vmatpush2.msra.mxu0 0.0
  %1346 = vmatprep.subr.mxu0 0.0
  %1347 = vmatpush2.msra.mxu0 0.0
  %1348 = vmatprep.subr.mxu0 0.0
  %1349 = vmatpush2.msra.mxu0 0.0
  %1350 = vmatprep.subr.mxu0 0.0
  %1351 = vmatpush2.msra.mxu0 0.0
  %1352 = vmatprep.subr.mxu0 0.0
  %1353 = vmatpush2.msra.mxu0 0.0
  %1354 = vmatprep.subr.mxu0 0.0
  %1355 = vmatpush2.msra.mxu0 0.0
  %1356 = vmatprep.subr.mxu0 0.0
  %1357 = vmatpush2.msra.mxu0 0.0
  %1358 = vmatprep.subr.mxu0 0.0
  %1359 = vmatpush2.msra.mxu0 0.0
  %1360 = vmatprep.subr.mxu0 0.0
  %1361 = vmatpush2.msra.mxu0 0.0
  %1362 = vmatprep.subr.mxu0 0.0
  %1363 = vmatpush2.msra.mxu0 0.0
  %1364 = vmatprep.subr.mxu0 0.0
  %1365 = vmatpush2.msra.mxu0 0.0
  %1366 = vmatprep.subr.mxu0 0.0
  %1367 = vmatpush2.msra.mxu0 0.0
  %1368 = vmatprep.subr.mxu0 0.0
  %1369 = vmatpush2.msra.mxu0 0.0
  %1370 = vmatprep.subr.mxu0 0.0
  %1371 = vmatpush2.msra.mxu0 0.0
  %1372 = vmatprep.subr.mxu0 0.0
  %1373 = vmatpush2.msra.mxu0 0.0
  %1374 = vmatprep.subr.mxu0 0.0
  %1375 = vmatpush2.msra.mxu0 0.0
  %1376 = vmatprep.mubr.f32.mxu0 0.0
  %1377 = vmatmul.mubr.f32.gmra.mxu0 %v1310
  %v1378 = vpop.f32.mrf.mxu0
  %v1379 = vadd.f32 0.0, %v1378
  %v1380 = vpop.f32.mrf.mxu0
  %1381 = vdwg.mxu0
  %1383 = vrot.lane.b32.xlu0 %v1379, 48
  %v1384 = vpop.permute.xlu0 %1383
  %vm1386 = vcmask 523648
  %1387 = vst.msk [vmem:[#allocation3] sm:$0xff] %vm1386, %v1384
  %v1388 = vmul.f32 %v700, 0.25
  %1390 = vrot.lane.b32.xlu0 %v700, 64
  %v1391 = vpop.permute.xlu0 %1390
  %v1393 = vsel %vm708, %v1388, 0
  %v1395 = vsel %vm708, %v1391, 0
  %1397 = vmatprep.subr.mxu0 0.0
  %1398 = vmatpush1.xpose.msra.mxu0 0.0
  %1399 = vmatprep.subr.mxu0 0.0
  %1400 = vmatpush1.xpose.msra.mxu0 0.0
  %1401 = vmatprep.subr.mxu0 0.0
  %1402 = vmatpush1.xpose.msra.mxu0 0.0
  %1403 = vmatprep.subr.mxu0 0.0
  %1404 = vmatpush1.xpose.msra.mxu0 0.0
  %1405 = vmatprep.subr.mxu0 0.0
  %1406 = vmatpush1.xpose.msra.mxu0 0.0
  %1407 = vmatprep.subr.mxu0 0.0
  %1408 = vmatpush1.xpose.msra.mxu0 0.0
  %1409 = vmatprep.subr.mxu0 0.0
  %1410 = vmatpush1.xpose.msra.mxu0 0.0
  %1411 = vmatprep.subr.mxu0 0.0
  %1412 = vmatpush1.xpose.msra.mxu0 0.0
  %1413 = vmatprep.subr.mxu0 0.0
  %1414 = vmatpush1.xpose.msra.mxu0 0.0
  %1415 = vmatprep.subr.mxu0 0.0
  %1416 = vmatpush1.xpose.msra.mxu0 0.0
  %1417 = vmatprep.subr.mxu0 0.0
  %1418 = vmatpush1.xpose.msra.mxu0 0.0
  %1419 = vmatprep.subr.mxu0 0.0
  %1420 = vmatpush1.xpose.msra.mxu0 0.0
  %1421 = vmatprep.subr.mxu0 0.0
  %1422 = vmatpush1.xpose.msra.mxu0 0.0
  %1423 = vmatprep.subr.mxu0 0.0
  %1424 = vmatpush1.xpose.msra.mxu0 0.0
  %1425 = vmatprep.subr.mxu0 0.0
  %1426 = vmatpush1.xpose.msra.mxu0 0.0
  %1427 = vmatprep.subr.mxu0 0.0
  %1428 = vmatpush1.xpose.msra.mxu0 %v1395
  %1429 = vmatprep.subr.mxu0 0.0
  %1430 = vmatpush2.xpose.msra.mxu0 0.0
  %1431 = vmatprep.subr.mxu0 0.0
  %1432 = vmatpush2.xpose.msra.mxu0 0.0
  %1433 = vmatprep.subr.mxu0 0.0
  %1434 = vmatpush2.xpose.msra.mxu0 0.0
  %1435 = vmatprep.subr.mxu0 0.0
  %1436 = vmatpush2.xpose.msra.mxu0 0.0
  %1437 = vmatprep.subr.mxu0 0.0
  %1438 = vmatpush2.xpose.msra.mxu0 0.0
  %1439 = vmatprep.subr.mxu0 0.0
  %1440 = vmatpush2.xpose.msra.mxu0 0.0
  %1441 = vmatprep.subr.mxu0 0.0
  %1442 = vmatpush2.xpose.msra.mxu0 0.0
  %1443 = vmatprep.subr.mxu0 0.0
  %1444 = vmatpush2.xpose.msra.mxu0 0.0
  %1445 = vmatprep.subr.mxu0 0.0
  %1446 = vmatpush2.xpose.msra.mxu0 0.0
  %1447 = vmatprep.subr.mxu0 0.0
  %1448 = vmatpush2.xpose.msra.mxu0 0.0
  %1449 = vmatprep.subr.mxu0 0.0
  %1450 = vmatpush2.xpose.msra.mxu0 0.0
  %1451 = vmatprep.subr.mxu0 0.0
  %1452 = vmatpush2.xpose.msra.mxu0 0.0
  %1453 = vmatprep.subr.mxu0 0.0
  %1454 = vmatpush2.xpose.msra.mxu0 0.0
  %1455 = vmatprep.subr.mxu0 0.0
  %1456 = vmatpush2.xpose.msra.mxu0 0.0
  %1457 = vmatprep.subr.mxu0 0.0
  %1458 = vmatpush2.xpose.msra.mxu0 0.0
  %1459 = vmatprep.subr.mxu0 0.0
  %1460 = vmatpush2.xpose.msra.mxu0 0.0
  %1461 = vmatprep.mubr.f32.mxu0 0.0
  %1462 = vmatmul.mubr.f32.gmra.mxu0 %v1393
  %v1463 = vpop.f32.mrf.mxu0
  %v1464 = vadd.f32 0.0, %v1463
  %v1465 = vpop.f32.mrf.mxu0
  %1466 = vdwg.mxu0
  %v1467 = vsel %vm485, %v1464, -1e+30
  %v1468 = vsel %vm785, %v1467, -inf
  %1469 = vmax.xlane.f32.xlu0 %v1468
  %v1470 = vpop.xlane.xlu0 %1469
  %v1471 = vsub.f32 %v1467, %v1470
  %v1472 = vmul.f32 %v1471, 1.442695
  %v1473 = vpow.pop %v1472
  %v1474 = vsel %vm785, %v1473, 0.0
  %1475 = vadd.xlane.f32.xlu0 %v1474
  %v1476 = vpop.xlane.xlu0 %1475
  %v1477 = vrcp.pop %v1476
  %v1478 = vmul.f32 %v1473, %v1477
  %v1480 = vsel %vm785, %v1478, 0
  %1482 = vmatprep.subr.mxu0 0.0
  %1483 = vmatpush1.msra.mxu0 0.0
  %1484 = vmatprep.subr.mxu0 0.0
  %1485 = vmatpush1.msra.mxu0 0.0
  %1486 = vmatprep.subr.mxu0 0.0
  %1487 = vmatpush1.msra.mxu0 0.0
  %1488 = vmatprep.subr.mxu0 0.0
  %1489 = vmatpush1.msra.mxu0 0.0
  %1490 = vmatprep.subr.mxu0 0.0
  %1491 = vmatpush1.msra.mxu0 0.0
  %1492 = vmatprep.subr.mxu0 0.0
  %1493 = vmatpush1.msra.mxu0 0.0
  %1494 = vmatprep.subr.mxu0 0.0
  %1495 = vmatpush1.msra.mxu0 0.0
  %1496 = vmatprep.subr.mxu0 0.0
  %1497 = vmatpush1.msra.mxu0 0.0
  %1498 = vmatprep.subr.mxu0 0.0
  %1499 = vmatpush1.msra.mxu0 0.0
  %1500 = vmatprep.subr.mxu0 0.0
  %1501 = vmatpush1.msra.mxu0 0.0
  %1502 = vmatprep.subr.mxu0 0.0
  %1503 = vmatpush1.msra.mxu0 0.0
  %1504 = vmatprep.subr.mxu0 0.0
  %1505 = vmatpush1.msra.mxu0 0.0
  %1506 = vmatprep.subr.mxu0 0.0
  %1507 = vmatpush1.msra.mxu0 0.0
  %1508 = vmatprep.subr.mxu0 0.0
  %1509 = vmatpush1.msra.mxu0 0.0
  %1510 = vmatprep.subr.mxu0 0.0
  %1511 = vmatpush1.msra.mxu0 0.0
  %1512 = vmatprep.subr.mxu0 0.0
  %1513 = vmatpush1.msra.mxu0 %v702
  %1514 = vmatprep.subr.mxu0 0.0
  %1515 = vmatpush2.msra.mxu0 0.0
  %1516 = vmatprep.subr.mxu0 0.0
  %1517 = vmatpush2.msra.mxu0 0.0
  %1518 = vmatprep.subr.mxu0 0.0
  %1519 = vmatpush2.msra.mxu0 0.0
  %1520 = vmatprep.subr.mxu0 0.0
  %1521 = vmatpush2.msra.mxu0 0.0
  %1522 = vmatprep.subr.mxu0 0.0
  %1523 = vmatpush2.msra.mxu0 0.0
  %1524 = vmatprep.subr.mxu0 0.0
  %1525 = vmatpush2.msra.mxu0 0.0
  %1526 = vmatprep.subr.mxu0 0.0
  %1527 = vmatpush2.msra.mxu0 0.0
  %1528 = vmatprep.subr.mxu0 0.0
  %1529 = vmatpush2.msra.mxu0 0.0
  %1530 = vmatprep.subr.mxu0 0.0
  %1531 = vmatpush2.msra.mxu0 0.0
  %1532 = vmatprep.subr.mxu0 0.0
  %1533 = vmatpush2.msra.mxu0 0.0
  %1534 = vmatprep.subr.mxu0 0.0
  %1535 = vmatpush2.msra.mxu0 0.0
  %1536 = vmatprep.subr.mxu0 0.0
  %1537 = vmatpush2.msra.mxu0 0.0
  %1538 = vmatprep.subr.mxu0 0.0
  %1539 = vmatpush2.msra.mxu0 0.0
  %1540 = vmatprep.subr.mxu0 0.0
  %1541 = vmatpush2.msra.mxu0 0.0
  %1542 = vmatprep.subr.mxu0 0.0
  %1543 = vmatpush2.msra.mxu0 0.0
  %1544 = vmatprep.subr.mxu0 0.0
  %1545 = vmatpush2.msra.mxu0 0.0
  %1546 = vmatprep.mubr.f32.mxu0 0.0
  %1547 = vmatmul.mubr.f32.gmra.mxu0 %v1480
  %v1548 = vpop.f32.mrf.mxu0
  %v1549 = vadd.f32 0.0, %v1548
  %v1550 = vpop.f32.mrf.mxu0
  %1551 = vdwg.mxu0
  %1552 = vst.msk [vmem:[#allocation3 + $0x8] sm:$0xff] %vm708, %v1549
  %1553 = vrot.lane.b32.xlu0 %v1388, 112
  %v1554 = vpop.permute.xlu0 %1553
  %1555 = vrot.lane.b32.xlu0 %v700, 48
  %v1556 = vpop.permute.xlu0 %1555
  %v1557 = vsel %vm708, %v1554, 0
  %v1559 = vsel %vm708, %v1556, 0
  %1561 = vmatprep.subr.mxu0 0.0
  %1562 = vmatpush1.xpose.msra.mxu0 0.0
  %1563 = vmatprep.subr.mxu0 0.0
  %1564 = vmatpush1.xpose.msra.mxu0 0.0
  %1565 = vmatprep.subr.mxu0 0.0
  %1566 = vmatpush1.xpose.msra.mxu0 0.0
  %1567 = vmatprep.subr.mxu0 0.0
  %1568 = vmatpush1.xpose.msra.mxu0 0.0
  %1569 = vmatprep.subr.mxu0 0.0
  %1570 = vmatpush1.xpose.msra.mxu0 0.0
  %1571 = vmatprep.subr.mxu0 0.0
  %1572 = vmatpush1.xpose.msra.mxu0 0.0
  %1573 = vmatprep.subr.mxu0 0.0
  %1574 = vmatpush1.xpose.msra.mxu0 0.0
  %1575 = vmatprep.subr.mxu0 0.0
  %1576 = vmatpush1.xpose.msra.mxu0 0.0
  %1577 = vmatprep.subr.mxu0 0.0
  %1578 = vmatpush1.xpose.msra.mxu0 0.0
  %1579 = vmatprep.subr.mxu0 0.0
  %1580 = vmatpush1.xpose.msra.mxu0 0.0
  %1581 = vmatprep.subr.mxu0 0.0
  %1582 = vmatpush1.xpose.msra.mxu0 0.0
  %1583 = vmatprep.subr.mxu0 0.0
  %1584 = vmatpush1.xpose.msra.mxu0 0.0
  %1585 = vmatprep.subr.mxu0 0.0
  %1586 = vmatpush1.xpose.msra.mxu0 0.0
  %1587 = vmatprep.subr.mxu0 0.0
  %1588 = vmatpush1.xpose.msra.mxu0 0.0
  %1589 = vmatprep.subr.mxu0 0.0
  %1590 = vmatpush1.xpose.msra.mxu0 0.0
  %1591 = vmatprep.subr.mxu0 0.0
  %1592 = vmatpush1.xpose.msra.mxu0 %v1559
  %1593 = vmatprep.subr.mxu0 0.0
  %1594 = vmatpush2.xpose.msra.mxu0 0.0
  %1595 = vmatprep.subr.mxu0 0.0
  %1596 = vmatpush2.xpose.msra.mxu0 0.0
  %1597 = vmatprep.subr.mxu0 0.0
  %1598 = vmatpush2.xpose.msra.mxu0 0.0
  %1599 = vmatprep.subr.mxu0 0.0
  %1600 = vmatpush2.xpose.msra.mxu0 0.0
  %1601 = vmatprep.subr.mxu0 0.0
  %1602 = vmatpush2.xpose.msra.mxu0 0.0
  %1603 = vmatprep.subr.mxu0 0.0
  %1604 = vmatpush2.xpose.msra.mxu0 0.0
  %1605 = vmatprep.subr.mxu0 0.0
  %1606 = vmatpush2.xpose.msra.mxu0 0.0
  %1607 = vmatprep.subr.mxu0 0.0
  %1608 = vmatpush2.xpose.msra.mxu0 0.0
  %1609 = vmatprep.subr.mxu0 0.0
  %1610 = vmatpush2.xpose.msra.mxu0 0.0
  %1611 = vmatprep.subr.mxu0 0.0
  %1612 = vmatpush2.xpose.msra.mxu0 0.0
  %1613 = vmatprep.subr.mxu0 0.0
  %1614 = vmatpush2.xpose.msra.mxu0 0.0
  %1615 = vmatprep.subr.mxu0 0.0
  %1616 = vmatpush2.xpose.msra.mxu0 0.0
  %1617 = vmatprep.subr.mxu0 0.0
  %1618 = vmatpush2.xpose.msra.mxu0 0.0
  %1619 = vmatprep.subr.mxu0 0.0
  %1620 = vmatpush2.xpose.msra.mxu0 0.0
  %1621 = vmatprep.subr.mxu0 0.0
  %1622 = vmatpush2.xpose.msra.mxu0 0.0
  %1623 = vmatprep.subr.mxu0 0.0
  %1624 = vmatpush2.xpose.msra.mxu0 0.0
  %1625 = vmatprep.mubr.f32.mxu0 0.0
  %1626 = vmatmul.mubr.f32.gmra.mxu0 %v1557
  %v1627 = vpop.f32.mrf.mxu0
  %v1628 = vadd.f32 0.0, %v1627
  %v1629 = vpop.f32.mrf.mxu0
  %1630 = vdwg.mxu0
  %v1631 = vsel %vm485, %v1628, -1e+30
  %v1632 = vsel %vm785, %v1631, -inf
  %1633 = vmax.xlane.f32.xlu0 %v1632
  %v1634 = vpop.xlane.xlu0 %1633
  %v1635 = vsub.f32 %v1631, %v1634
  %v1636 = vmul.f32 %v1635, 1.442695
  %v1637 = vpow.pop %v1636
  %v1638 = vsel %vm785, %v1637, 0.0
  %1639 = vadd.xlane.f32.xlu0 %v1638
  %v1640 = vpop.xlane.xlu0 %1639
  %v1641 = vrcp.pop %v1640
  %v1642 = vmul.f32 %v1637, %v1641
  %1644 = vrot.lane.b32.xlu0 %v702, 112
  %v1645 = vpop.permute.xlu0 %1644
  %v1648 = vsel %vm785, %v1642, 0
  %1650 = vmatprep.subr.mxu0 0.0
  %1651 = vmatpush1.msra.mxu0 0.0
  %1652 = vmatprep.subr.mxu0 0.0
  %1653 = vmatpush1.msra.mxu0 0.0
  %1654 = vmatprep.subr.mxu0 0.0
  %1655 = vmatpush1.msra.mxu0 0.0
  %1656 = vmatprep.subr.mxu0 0.0
  %1657 = vmatpush1.msra.mxu0 0.0
  %1658 = vmatprep.subr.mxu0 0.0
  %1659 = vmatpush1.msra.mxu0 0.0
  %1660 = vmatprep.subr.mxu0 0.0
  %1661 = vmatpush1.msra.mxu0 0.0
  %1662 = vmatprep.subr.mxu0 0.0
  %1663 = vmatpush1.msra.mxu0 0.0
  %1664 = vmatprep.subr.mxu0 0.0
  %1665 = vmatpush1.msra.mxu0 0.0
  %1666 = vmatprep.subr.mxu0 0.0
  %1667 = vmatpush1.msra.mxu0 0.0
  %1668 = vmatprep.subr.mxu0 0.0
  %1669 = vmatpush1.msra.mxu0 0.0
  %1670 = vmatprep.subr.mxu0 0.0
  %1671 = vmatpush1.msra.mxu0 0.0
  %1672 = vmatprep.subr.mxu0 0.0
  %1673 = vmatpush1.msra.mxu0 0.0
  %1674 = vmatprep.subr.mxu0 0.0
  %1675 = vmatpush1.msra.mxu0 0.0
  %1676 = vmatprep.subr.mxu0 0.0
  %1677 = vmatpush1.msra.mxu0 0.0
  %1678 = vmatprep.subr.mxu0 0.0
  %1679 = vmatpush1.msra.mxu0 0.0
  %1680 = vmatprep.subr.mxu0 0.0
  %1681 = vmatpush1.msra.mxu0 %v1645
  %1682 = vmatprep.subr.mxu0 0.0
  %1683 = vmatpush2.msra.mxu0 0.0
  %1684 = vmatprep.subr.mxu0 0.0
  %1685 = vmatpush2.msra.mxu0 0.0
  %1686 = vmatprep.subr.mxu0 0.0
  %1687 = vmatpush2.msra.mxu0 0.0
  %1688 = vmatprep.subr.mxu0 0.0
  %1689 = vmatpush2.msra.mxu0 0.0
  %1690 = vmatprep.subr.mxu0 0.0
  %1691 = vmatpush2.msra.mxu0 0.0
  %1692 = vmatprep.subr.mxu0 0.0
  %1693 = vmatpush2.msra.mxu0 0.0
  %1694 = vmatprep.subr.mxu0 0.0
  %1695 = vmatpush2.msra.mxu0 0.0
  %1696 = vmatprep.subr.mxu0 0.0
  %1697 = vmatpush2.msra.mxu0 0.0
  %1698 = vmatprep.subr.mxu0 0.0
  %1699 = vmatpush2.msra.mxu0 0.0
  %1700 = vmatprep.subr.mxu0 0.0
  %1701 = vmatpush2.msra.mxu0 0.0
  %1702 = vmatprep.subr.mxu0 0.0
  %1703 = vmatpush2.msra.mxu0 0.0
  %1704 = vmatprep.subr.mxu0 0.0
  %1705 = vmatpush2.msra.mxu0 0.0
  %1706 = vmatprep.subr.mxu0 0.0
  %1707 = vmatpush2.msra.mxu0 0.0
  %1708 = vmatprep.subr.mxu0 0.0
  %1709 = vmatpush2.msra.mxu0 0.0
  %1710 = vmatprep.subr.mxu0 0.0
  %1711 = vmatpush2.msra.mxu0 0.0
  %1712 = vmatprep.subr.mxu0 0.0
  %1713 = vmatpush2.msra.mxu0 0.0
  %1714 = vmatprep.mubr.f32.mxu0 0.0
  %1715 = vmatmul.mubr.f32.gmra.mxu0 %v1648
  %v1716 = vpop.f32.mrf.mxu0
  %v1717 = vadd.f32 0.0, %v1716
  %v1718 = vpop.f32.mrf.mxu0
  %1719 = vdwg.mxu0
  %1721 = vrot.lane.b32.xlu0 %v1717, 16
  %v1722 = vpop.permute.xlu0 %1721
  %1724 = vst.msk [vmem:[#allocation3 + $0x8] sm:$0xff] %vm1042, %v1722
  %1725 = vrot.lane.b32.xlu0 %v1388, 96
  %v1726 = vpop.permute.xlu0 %1725
  %1727 = vrot.lane.b32.xlu0 %v700, 32
  %v1728 = vpop.permute.xlu0 %1727
  %v1729 = vsel %vm708, %v1726, 0
  %v1731 = vsel %vm708, %v1728, 0
  %1733 = vmatprep.subr.mxu0 0.0
  %1734 = vmatpush1.xpose.msra.mxu0 0.0
  %1735 = vmatprep.subr.mxu0 0.0
  %1736 = vmatpush1.xpose.msra.mxu0 0.0
  %1737 = vmatprep.subr.mxu0 0.0
  %1738 = vmatpush1.xpose.msra.mxu0 0.0
  %1739 = vmatprep.subr.mxu0 0.0
  %1740 = vmatpush1.xpose.msra.mxu0 0.0
  %1741 = vmatprep.subr.mxu0 0.0
  %1742 = vmatpush1.xpose.msra.mxu0 0.0
  %1743 = vmatprep.subr.mxu0 0.0
  %1744 = vmatpush1.xpose.msra.mxu0 0.0
  %1745 = vmatprep.subr.mxu0 0.0
  %1746 = vmatpush1.xpose.msra.mxu0 0.0
  %1747 = vmatprep.subr.mxu0 0.0
  %1748 = vmatpush1.xpose.msra.mxu0 0.0
  %1749 = vmatprep.subr.mxu0 0.0
  %1750 = vmatpush1.xpose.msra.mxu0 0.0
  %1751 = vmatprep.subr.mxu0 0.0
  %1752 = vmatpush1.xpose.msra.mxu0 0.0
  %1753 = vmatprep.subr.mxu0 0.0
  %1754 = vmatpush1.xpose.msra.mxu0 0.0
  %1755 = vmatprep.subr.mxu0 0.0
  %1756 = vmatpush1.xpose.msra.mxu0 0.0
  %1757 = vmatprep.subr.mxu0 0.0
  %1758 = vmatpush1.xpose.msra.mxu0 0.0
  %1759 = vmatprep.subr.mxu0 0.0
  %1760 = vmatpush1.xpose.msra.mxu0 0.0
  %1761 = vmatprep.subr.mxu0 0.0
  %1762 = vmatpush1.xpose.msra.mxu0 0.0
  %1763 = vmatprep.subr.mxu0 0.0
  %1764 = vmatpush1.xpose.msra.mxu0 %v1731
  %1765 = vmatprep.subr.mxu0 0.0
  %1766 = vmatpush2.xpose.msra.mxu0 0.0
  %1767 = vmatprep.subr.mxu0 0.0
  %1768 = vmatpush2.xpose.msra.mxu0 0.0
  %1769 = vmatprep.subr.mxu0 0.0
  %1770 = vmatpush2.xpose.msra.mxu0 0.0
  %1771 = vmatprep.subr.mxu0 0.0
  %1772 = vmatpush2.xpose.msra.mxu0 0.0
  %1773 = vmatprep.subr.mxu0 0.0
  %1774 = vmatpush2.xpose.msra.mxu0 0.0
  %1775 = vmatprep.subr.mxu0 0.0
  %1776 = vmatpush2.xpose.msra.mxu0 0.0
  %1777 = vmatprep.subr.mxu0 0.0
  %1778 = vmatpush2.xpose.msra.mxu0 0.0
  %1779 = vmatprep.subr.mxu0 0.0
  %1780 = vmatpush2.xpose.msra.mxu0 0.0
  %1781 = vmatprep.subr.mxu0 0.0
  %1782 = vmatpush2.xpose.msra.mxu0 0.0
  %1783 = vmatprep.subr.mxu0 0.0
  %1784 = vmatpush2.xpose.msra.mxu0 0.0
  %1785 = vmatprep.subr.mxu0 0.0
  %1786 = vmatpush2.xpose.msra.mxu0 0.0
  %1787 = vmatprep.subr.mxu0 0.0
  %1788 = vmatpush2.xpose.msra.mxu0 0.0
  %1789 = vmatprep.subr.mxu0 0.0
  %1790 = vmatpush2.xpose.msra.mxu0 0.0
  %1791 = vmatprep.subr.mxu0 0.0
  %1792 = vmatpush2.xpose.msra.mxu0 0.0
  %1793 = vmatprep.subr.mxu0 0.0
  %1794 = vmatpush2.xpose.msra.mxu0 0.0
  %1795 = vmatprep.subr.mxu0 0.0
  %1796 = vmatpush2.xpose.msra.mxu0 0.0
  %1797 = vmatprep.mubr.f32.mxu0 0.0
  %1798 = vmatmul.mubr.f32.gmra.mxu0 %v1729
  %v1799 = vpop.f32.mrf.mxu0
  %v1800 = vadd.f32 0.0, %v1799
  %v1801 = vpop.f32.mrf.mxu0
  %1802 = vdwg.mxu0
  %v1803 = vsel %vm485, %v1800, -1e+30
  %v1804 = vsel %vm785, %v1803, -inf
  %1805 = vmax.xlane.f32.xlu0 %v1804
  %v1806 = vpop.xlane.xlu0 %1805
  %v1807 = vsub.f32 %v1803, %v1806
  %v1808 = vmul.f32 %v1807, 1.442695
  %v1809 = vpow.pop %v1808
  %v1810 = vsel %vm785, %v1809, 0.0
  %1811 = vadd.xlane.f32.xlu0 %v1810
  %v1812 = vpop.xlane.xlu0 %1811
  %v1813 = vrcp.pop %v1812
  %v1814 = vmul.f32 %v1809, %v1813
  %1815 = vrot.lane.b32.xlu0 %v702, 96
  %v1816 = vpop.permute.xlu0 %1815
  %v1819 = vsel %vm785, %v1814, 0
  %1821 = vmatprep.subr.mxu0 0.0
  %1822 = vmatpush1.msra.mxu0 0.0
  %1823 = vmatprep.subr.mxu0 0.0
  %1824 = vmatpush1.msra.mxu0 0.0
  %1825 = vmatprep.subr.mxu0 0.0
  %1826 = vmatpush1.msra.mxu0 0.0
  %1827 = vmatprep.subr.mxu0 0.0
  %1828 = vmatpush1.msra.mxu0 0.0
  %1829 = vmatprep.subr.mxu0 0.0
  %1830 = vmatpush1.msra.mxu0 0.0
  %1831 = vmatprep.subr.mxu0 0.0
  %1832 = vmatpush1.msra.mxu0 0.0
  %1833 = vmatprep.subr.mxu0 0.0
  %1834 = vmatpush1.msra.mxu0 0.0
  %1835 = vmatprep.subr.mxu0 0.0
  %1836 = vmatpush1.msra.mxu0 0.0
  %1837 = vmatprep.subr.mxu0 0.0
  %1838 = vmatpush1.msra.mxu0 0.0
  %1839 = vmatprep.subr.mxu0 0.0
  %1840 = vmatpush1.msra.mxu0 0.0
  %1841 = vmatprep.subr.mxu0 0.0
  %1842 = vmatpush1.msra.mxu0 0.0
  %1843 = vmatprep.subr.mxu0 0.0
  %1844 = vmatpush1.msra.mxu0 0.0
  %1845 = vmatprep.subr.mxu0 0.0
  %1846 = vmatpush1.msra.mxu0 0.0
  %1847 = vmatprep.subr.mxu0 0.0
  %1848 = vmatpush1.msra.mxu0 0.0
  %1849 = vmatprep.subr.mxu0 0.0
  %1850 = vmatpush1.msra.mxu0 0.0
  %1851 = vmatprep.subr.mxu0 0.0
  %1852 = vmatpush1.msra.mxu0 %v1816
  %1853 = vmatprep.subr.mxu0 0.0
  %1854 = vmatpush2.msra.mxu0 0.0
  %1855 = vmatprep.subr.mxu0 0.0
  %1856 = vmatpush2.msra.mxu0 0.0
  %1857 = vmatprep.subr.mxu0 0.0
  %1858 = vmatpush2.msra.mxu0 0.0
  %1859 = vmatprep.subr.mxu0 0.0
  %1860 = vmatpush2.msra.mxu0 0.0
  %1861 = vmatprep.subr.mxu0 0.0
  %1862 = vmatpush2.msra.mxu0 0.0
  %1863 = vmatprep.subr.mxu0 0.0
  %1864 = vmatpush2.msra.mxu0 0.0
  %1865 = vmatprep.subr.mxu0 0.0
  %1866 = vmatpush2.msra.mxu0 0.0
  %1867 = vmatprep.subr.mxu0 0.0
  %1868 = vmatpush2.msra.mxu0 0.0
  %1869 = vmatprep.subr.mxu0 0.0
  %1870 = vmatpush2.msra.mxu0 0.0
  %1871 = vmatprep.subr.mxu0 0.0
  %1872 = vmatpush2.msra.mxu0 0.0
  %1873 = vmatprep.subr.mxu0 0.0
  %1874 = vmatpush2.msra.mxu0 0.0
  %1875 = vmatprep.subr.mxu0 0.0
  %1876 = vmatpush2.msra.mxu0 0.0
  %1877 = vmatprep.subr.mxu0 0.0
  %1878 = vmatpush2.msra.mxu0 0.0
  %1879 = vmatprep.subr.mxu0 0.0
  %1880 = vmatpush2.msra.mxu0 0.0
  %1881 = vmatprep.subr.mxu0 0.0
  %1882 = vmatpush2.msra.mxu0 0.0
  %1883 = vmatprep.subr.mxu0 0.0
  %1884 = vmatpush2.msra.mxu0 0.0
  %1885 = vmatprep.mubr.f32.mxu0 0.0
  %1886 = vmatmul.mubr.f32.gmra.mxu0 %v1819
  %v1887 = vpop.f32.mrf.mxu0
  %v1888 = vadd.f32 0.0, %v1887
  %v1889 = vpop.f32.mrf.mxu0
  %1890 = vdwg.mxu0
  %1892 = vrot.lane.b32.xlu0 %v1888, 32
  %v1893 = vpop.permute.xlu0 %1892
  %1895 = vst.msk [vmem:[#allocation3 + $0x8] sm:$0xff] %vm1214, %v1893
  %1896 = vrot.lane.b32.xlu0 %v1388, 80
  %v1897 = vpop.permute.xlu0 %1896
  %1898 = vrot.lane.b32.xlu0 %v700, 16
  %v1899 = vpop.permute.xlu0 %1898
  %v1900 = vsel %vm708, %v1897, 0
  %v1902 = vsel %vm708, %v1899, 0
  %1904 = vmatprep.subr.mxu0 0.0
  %1905 = vmatpush1.xpose.msra.mxu0 0.0
  %1906 = vmatprep.subr.mxu0 0.0
  %1907 = vmatpush1.xpose.msra.mxu0 0.0
  %1908 = vmatprep.subr.mxu0 0.0
  %1909 = vmatpush1.xpose.msra.mxu0 0.0
  %1910 = vmatprep.subr.mxu0 0.0
  %1911 = vmatpush1.xpose.msra.mxu0 0.0
  %1912 = vmatprep.subr.mxu0 0.0
  %1913 = vmatpush1.xpose.msra.mxu0 0.0
  %1914 = vmatprep.subr.mxu0 0.0
  %1915 = vmatpush1.xpose.msra.mxu0 0.0
  %1916 = vmatprep.subr.mxu0 0.0
  %1917 = vmatpush1.xpose.msra.mxu0 0.0
  %1918 = vmatprep.subr.mxu0 0.0
  %1919 = vmatpush1.xpose.msra.mxu0 0.0
  %1920 = vmatprep.subr.mxu0 0.0
  %1921 = vmatpush1.xpose.msra.mxu0 0.0
  %1922 = vmatprep.subr.mxu0 0.0
  %1923 = vmatpush1.xpose.msra.mxu0 0.0
  %1924 = vmatprep.subr.mxu0 0.0
  %1925 = vmatpush1.xpose.msra.mxu0 0.0
  %1926 = vmatprep.subr.mxu0 0.0
  %1927 = vmatpush1.xpose.msra.mxu0 0.0
  %1928 = vmatprep.subr.mxu0 0.0
  %1929 = vmatpush1.xpose.msra.mxu0 0.0
  %1930 = vmatprep.subr.mxu0 0.0
  %1931 = vmatpush1.xpose.msra.mxu0 0.0
  %1932 = vmatprep.subr.mxu0 0.0
  %1933 = vmatpush1.xpose.msra.mxu0 0.0
  %1934 = vmatprep.subr.mxu0 0.0
  %1935 = vmatpush1.xpose.msra.mxu0 %v1902
  %1936 = vmatprep.subr.mxu0 0.0
  %1937 = vmatpush2.xpose.msra.mxu0 0.0
  %1938 = vmatprep.subr.mxu0 0.0
  %1939 = vmatpush2.xpose.msra.mxu0 0.0
  %1940 = vmatprep.subr.mxu0 0.0
  %1941 = vmatpush2.xpose.msra.mxu0 0.0
  %1942 = vmatprep.subr.mxu0 0.0
  %1943 = vmatpush2.xpose.msra.mxu0 0.0
  %1944 = vmatprep.subr.mxu0 0.0
  %1945 = vmatpush2.xpose.msra.mxu0 0.0
  %1946 = vmatprep.subr.mxu0 0.0
  %1947 = vmatpush2.xpose.msra.mxu0 0.0
  %1948 = vmatprep.subr.mxu0 0.0
  %1949 = vmatpush2.xpose.msra.mxu0 0.0
  %1950 = vmatprep.subr.mxu0 0.0
  %1951 = vmatpush2.xpose.msra.mxu0 0.0
  %1952 = vmatprep.subr.mxu0 0.0
  %1953 = vmatpush2.xpose.msra.mxu0 0.0
  %1954 = vmatprep.subr.mxu0 0.0
  %1955 = vmatpush2.xpose.msra.mxu0 0.0
  %1956 = vmatprep.subr.mxu0 0.0
  %1957 = vmatpush2.xpose.msra.mxu0 0.0
  %1958 = vmatprep.subr.mxu0 0.0
  %1959 = vmatpush2.xpose.msra.mxu0 0.0
  %1960 = vmatprep.subr.mxu0 0.0
  %1961 = vmatpush2.xpose.msra.mxu0 0.0
  %1962 = vmatprep.subr.mxu0 0.0
  %1963 = vmatpush2.xpose.msra.mxu0 0.0
  %1964 = vmatprep.subr.mxu0 0.0
  %1965 = vmatpush2.xpose.msra.mxu0 0.0
  %1966 = vmatprep.subr.mxu0 0.0
  %1967 = vmatpush2.xpose.msra.mxu0 0.0
  %1968 = vmatprep.mubr.f32.mxu0 0.0
  %1969 = vmatmul.mubr.f32.gmra.mxu0 %v1900
  %v1970 = vpop.f32.mrf.mxu0
  %v1971 = vadd.f32 0.0, %v1970
  %v1972 = vpop.f32.mrf.mxu0
  %1973 = vdwg.mxu0
  %v1974 = vsel %vm485, %v1971, -1e+30
  %v1975 = vsel %vm785, %v1974, -inf
  %1976 = vmax.xlane.f32.xlu0 %v1975
  %v1977 = vpop.xlane.xlu0 %1976
  %v1978 = vsub.f32 %v1974, %v1977
  %v1979 = vmul.f32 %v1978, 1.442695
  %v1980 = vpow.pop %v1979
  %v1981 = vsel %vm785, %v1980, 0.0
  %1982 = vadd.xlane.f32.xlu0 %v1981
  %v1983 = vpop.xlane.xlu0 %1982
  %v1984 = vrcp.pop %v1983
  %v1985 = vmul.f32 %v1980, %v1984
  %1986 = vrot.lane.b32.xlu0 %v702, 80
  %v1987 = vpop.permute.xlu0 %1986
  %v1990 = vsel %vm785, %v1985, 0
  %1992 = vmatprep.subr.mxu0 0.0
  %1993 = vmatpush1.msra.mxu0 0.0
  %1994 = vmatprep.subr.mxu0 0.0
  %1995 = vmatpush1.msra.mxu0 0.0
  %1996 = vmatprep.subr.mxu0 0.0
  %1997 = vmatpush1.msra.mxu0 0.0
  %1998 = vmatprep.subr.mxu0 0.0
  %1999 = vmatpush1.msra.mxu0 0.0
  %2000 = vmatprep.subr.mxu0 0.0
  %2001 = vmatpush1.msra.mxu0 0.0
  %2002 = vmatprep.subr.mxu0 0.0
  %2003 = vmatpush1.msra.mxu0 0.0
  %2004 = vmatprep.subr.mxu0 0.0
  %2005 = vmatpush1.msra.mxu0 0.0
  %2006 = vmatprep.subr.mxu0 0.0
  %2007 = vmatpush1.msra.mxu0 0.0
  %2008 = vmatprep.subr.mxu0 0.0
  %2009 = vmatpush1.msra.mxu0 0.0
  %2010 = vmatprep.subr.mxu0 0.0
  %2011 = vmatpush1.msra.mxu0 0.0
  %2012 = vmatprep.subr.mxu0 0.0
  %2013 = vmatpush1.msra.mxu0 0.0
  %2014 = vmatprep.subr.mxu0 0.0
  %2015 = vmatpush1.msra.mxu0 0.0
  %2016 = vmatprep.subr.mxu0 0.0
  %2017 = vmatpush1.msra.mxu0 0.0
  %2018 = vmatprep.subr.mxu0 0.0
  %2019 = vmatpush1.msra.mxu0 0.0
  %2020 = vmatprep.subr.mxu0 0.0
  %2021 = vmatpush1.msra.mxu0 0.0
  %2022 = vmatprep.subr.mxu0 0.0
  %2023 = vmatpush1.msra.mxu0 %v1987
  %2024 = vmatprep.subr.mxu0 0.0
  %2025 = vmatpush2.msra.mxu0 0.0
  %2026 = vmatprep.subr.mxu0 0.0
  %2027 = vmatpush2.msra.mxu0 0.0
  %2028 = vmatprep.subr.mxu0 0.0
  %2029 = vmatpush2.msra.mxu0 0.0
  %2030 = vmatprep.subr.mxu0 0.0
  %2031 = vmatpush2.msra.mxu0 0.0
  %2032 = vmatprep.subr.mxu0 0.0
  %2033 = vmatpush2.msra.mxu0 0.0
  %2034 = vmatprep.subr.mxu0 0.0
  %2035 = vmatpush2.msra.mxu0 0.0
  %2036 = vmatprep.subr.mxu0 0.0
  %2037 = vmatpush2.msra.mxu0 0.0
  %2038 = vmatprep.subr.mxu0 0.0
  %2039 = vmatpush2.msra.mxu0 0.0
  %2040 = vmatprep.subr.mxu0 0.0
  %2041 = vmatpush2.msra.mxu0 0.0
  %2042 = vmatprep.subr.mxu0 0.0
  %2043 = vmatpush2.msra.mxu0 0.0
  %2044 = vmatprep.subr.mxu0 0.0
  %2045 = vmatpush2.msra.mxu0 0.0
  %2046 = vmatprep.subr.mxu0 0.0
  %2047 = vmatpush2.msra.mxu0 0.0
  %2048 = vmatprep.subr.mxu0 0.0
  %2049 = vmatpush2.msra.mxu0 0.0
  %2050 = vmatprep.subr.mxu0 0.0
  %2051 = vmatpush2.msra.mxu0 0.0
  %2052 = vmatprep.subr.mxu0 0.0
  %2053 = vmatpush2.msra.mxu0 0.0
  %2054 = vmatprep.subr.mxu0 0.0
  %2055 = vmatpush2.msra.mxu0 0.0
  %2056 = vmatprep.mubr.f32.mxu0 0.0
  %2057 = vmatmul.mubr.f32.gmra.mxu0 %v1990
  %v2058 = vpop.f32.mrf.mxu0
  %v2059 = vadd.f32 0.0, %v2058
  %v2060 = vpop.f32.mrf.mxu0
  %2061 = vdwg.mxu0
  %2063 = vrot.lane.b32.xlu0 %v2059, 48
  %v2064 = vpop.permute.xlu0 %2063
  %2066 = vst.msk [vmem:[#allocation3 + $0x8] sm:$0xff] %vm1386, %v2064
  %v2067 = vld [vmem:[#allocation3] sm:$0xff]
  %v2068 = vld [vmem:[#allocation3 + $0x8] sm:$0xff]
  %v2070 = vlaneseq
  %v2071 = vshrl.u32 %v2070, 7
  %v2072 = vsub.s32 0, %v2071
  %v2073 = vrot.slane %v513, %v2072
  %v2076 = vsel %vm566, %v2067, 0
  %v2079 = vsel %vm566, %v2068, 0
  %2081 = vmatprep.subr.mxu0 0.0
  %2082 = vmatpush1.msra.mxu0 0.0
  %2083 = vmatprep.subr.mxu0 0.0
  %2084 = vmatpush1.msra.mxu0 0.0
  %2085 = vmatprep.subr.mxu0 0.0
  %2086 = vmatpush1.msra.mxu0 0.0
  %2087 = vmatprep.subr.mxu0 0.0
  %2088 = vmatpush1.msra.mxu0 0.0
  %2089 = vmatprep.subr.mxu0 0.0
  %2090 = vmatpush1.msra.mxu0 0.0
  %2091 = vmatprep.subr.mxu0 0.0
  %2092 = vmatpush1.msra.mxu0 0.0
  %2093 = vmatprep.subr.mxu0 0.0
  %2094 = vmatpush1.msra.mxu0 0.0
  %2095 = vmatprep.subr.mxu0 0.0
  %2096 = vmatpush1.msra.mxu0 0.0
  %2097 = vmatprep.subr.mxu0 0.0
  %2098 = vmatpush1.msra.mxu0 %v512
  %2099 = vmatprep.subr.mxu0 0.0
  %2100 = vmatpush1.msra.mxu0 %v511
  %2101 = vmatprep.subr.mxu0 0.0
  %2102 = vmatpush1.msra.mxu0 %v510
  %2103 = vmatprep.subr.mxu0 0.0
  %2104 = vmatpush1.msra.mxu0 %v509
  %2105 = vmatprep.subr.mxu0 0.0
  %2106 = vmatpush1.msra.mxu0 %v508
  %2107 = vmatprep.subr.mxu0 0.0
  %2108 = vmatpush1.msra.mxu0 %v507
  %2109 = vmatprep.subr.mxu0 0.0
  %2110 = vmatpush1.msra.mxu0 %v506
  %2111 = vmatprep.subr.mxu0 0.0
  %2112 = vmatpush1.msra.mxu0 %v505
  %2113 = vmatprep.subr.mxu0 0.0
  %2114 = vmatpush2.msra.mxu0 0.0
  %2115 = vmatprep.subr.mxu0 0.0
  %2116 = vmatpush2.msra.mxu0 0.0
  %2117 = vmatprep.subr.mxu0 0.0
  %2118 = vmatpush2.msra.mxu0 0.0
  %2119 = vmatprep.subr.mxu0 0.0
  %2120 = vmatpush2.msra.mxu0 0.0
  %2121 = vmatprep.subr.mxu0 0.0
  %2122 = vmatpush2.msra.mxu0 0.0
  %2123 = vmatprep.subr.mxu0 0.0
  %2124 = vmatpush2.msra.mxu0 0.0
  %2125 = vmatprep.subr.mxu0 0.0
  %2126 = vmatpush2.msra.mxu0 0.0
  %2127 = vmatprep.subr.mxu0 0.0
  %2128 = vmatpush2.msra.mxu0 0.0
  %2129 = vmatprep.subr.mxu0 0.0
  %2130 = vmatpush2.msra.mxu0 0.0
  %2131 = vmatprep.subr.mxu0 0.0
  %2132 = vmatpush2.msra.mxu0 0.0
  %2133 = vmatprep.subr.mxu0 0.0
  %2134 = vmatpush2.msra.mxu0 0.0
  %2135 = vmatprep.subr.mxu0 0.0
  %2136 = vmatpush2.msra.mxu0 0.0
  %2137 = vmatprep.subr.mxu0 0.0
  %2138 = vmatpush2.msra.mxu0 0.0
  %2139 = vmatprep.subr.mxu0 0.0
  %2140 = vmatpush2.msra.mxu0 0.0
  %2141 = vmatprep.subr.mxu0 0.0
  %2142 = vmatpush2.msra.mxu0 0.0
  %2143 = vmatprep.subr.mxu0 0.0
  %2144 = vmatpush2.msra.mxu0 0.0
  %2145 = vmatprep.mubr.f32.mxu0 0.0
  %2146 = vmatmul.mubr.f32.gmra.mxu0 %v2076
  %v2147 = vpop.f32.mrf.mxu0
  %v2148 = vadd.f32 %v2073, %v2147
  %v2149 = vpop.f32.mrf.mxu0
  %2150 = vmatprep.mubr.f32.mxu0 0.0
  %2151 = vmatmul.mubr.f32.gmra.mxu0 %v2079
  %v2152 = vpop.f32.mrf.mxu0
  %v2153 = vadd.f32 %v2073, %v2152
  %v2154 = vpop.f32.mrf.mxu0
  %2155 = vdwg.mxu0
  %v2156 = vadd.f32 %v481, %v2148
  %v2157 = vadd.f32 %v482, %v2153
  %v2158 = vsel %vm566, %v2156, 0.0
  %2159 = vadd.xlane.f32.xlu0 %v2158
  %v2160 = vpop.xlane.xlu0 %2159
  %v2161 = vsel %vm566, %v2157, 0.0
  %2162 = vadd.xlane.f32.xlu0 %v2161
  %v2163 = vpop.xlane.xlu0 %2162
  %v2164 = vmul.f32 %v2160, %v573
  %v2165 = vmul.f32 %v2163, %v573
  %v2166 = vsub.f32 %v2156, %v2164
  %v2167 = vsub.f32 %v2157, %v2165
  %v2168 = vmul.f32 %v2166, %v2166
  %v2169 = vmul.f32 %v2167, %v2167
  %v2170 = vsel %vm566, %v2168, 0.0
  %2171 = vadd.xlane.f32.xlu0 %v2170
  %v2172 = vpop.xlane.xlu0 %2171
  %v2173 = vsel %vm566, %v2169, 0.0
  %2174 = vadd.xlane.f32.xlu0 %v2173
  %v2175 = vpop.xlane.xlu0 %2174
  %v2176 = vmul.f32 %v2172, %v573
  %v2177 = vmul.f32 %v2175, %v573
  %v2178 = vadd.f32 %v2176, 1e-06
  %v2179 = vadd.f32 %v2177, 1e-06
  %v2180 = vrsqrt.pop %v2178
  %v2181 = vrsqrt.pop %v2179
  %v2182 = vmul.f32 %v2166, %v2180
  %v2183 = vmul.f32 %v2167, %v2181
  %v2185 = vlaneseq
  %v2186 = vshrl.u32 %v2185, 7
  %v2187 = vsub.s32 0, %v2186
  %v2188 = vrot.slane %v514, %v2187
  %v2190 = vmul.f32 %v2182, %v2188
  %v2191 = vmul.f32 %v2183, %v2188
  %v2193 = vlaneseq
  %v2194 = vshrl.u32 %v2193, 7
  %v2195 = vsub.s32 0, %v2194
  %v2196 = vrot.slane %v515, %v2195
  %v2198 = vadd.f32 %v2190, %v2196
  %v2199 = vadd.f32 %v2191, %v2196
  %v2201 = vlaneseq
  %v2202 = vshrl.u32 %v2201, 7
  %v2203 = vsub.s32 0, %v2202
  %v2204 = vrot.slane %v532, %v2203
  %v2205 = vlaneseq
  %v2206 = vshrl.u32 %v2205, 7
  %v2207 = vsub.s32 1, %v2206
  %v2208 = vrot.slane %v532, %v2207
  %v2212 = vsel %vm566, %v2198, 0
  %v2215 = vsel %vm566, %v2199, 0
  %2217 = vmatprep.subr.mxu0 0.0
  %2218 = vmatpush1.msra.mxu0 0.0
  %2219 = vmatprep.subr.mxu0 0.0
  %2220 = vmatpush1.msra.mxu0 0.0
  %2221 = vmatprep.subr.mxu0 0.0
  %2222 = vmatpush1.msra.mxu0 0.0
  %2223 = vmatprep.subr.mxu0 0.0
  %2224 = vmatpush1.msra.mxu0 0.0
  %2225 = vmatprep.subr.mxu0 0.0
  %2226 = vmatpush1.msra.mxu0 0.0
  %2227 = vmatprep.subr.mxu0 0.0
  %2228 = vmatpush1.msra.mxu0 0.0
  %2229 = vmatprep.subr.mxu0 0.0
  %2230 = vmatpush1.msra.mxu0 0.0
  %2231 = vmatprep.subr.mxu0 0.0
  %2232 = vmatpush1.msra.mxu0 0.0
  %2233 = vmatprep.subr.mxu0 %v531
  %2234 = vmatpush1.msra.mxu0 %v530
  %2235 = vmatprep.subr.mxu0 %v529
  %2236 = vmatpush1.msra.mxu0 %v528
  %2237 = vmatprep.subr.mxu0 %v527
  %2238 = vmatpush1.msra.mxu0 %v526
  %2239 = vmatprep.subr.mxu0 %v525
  %2240 = vmatpush1.msra.mxu0 %v524
  %2241 = vmatprep.subr.mxu0 %v523
  %2242 = vmatpush1.msra.mxu0 %v522
  %2243 = vmatprep.subr.mxu0 %v521
  %2244 = vmatpush1.msra.mxu0 %v520
  %2245 = vmatprep.subr.mxu0 %v519
  %2246 = vmatpush1.msra.mxu0 %v518
  %2247 = vmatprep.subr.mxu0 %v517
  %2248 = vmatpush1.msra.mxu0 %v516
  %2249 = vmatprep.subr.mxu0 0.0
  %2250 = vmatpush2.msra.mxu0 0.0
  %2251 = vmatprep.subr.mxu0 0.0
  %2252 = vmatpush2.msra.mxu0 0.0
  %2253 = vmatprep.subr.mxu0 0.0
  %2254 = vmatpush2.msra.mxu0 0.0
  %2255 = vmatprep.subr.mxu0 0.0
  %2256 = vmatpush2.msra.mxu0 0.0
  %2257 = vmatprep.subr.mxu0 0.0
  %2258 = vmatpush2.msra.mxu0 0.0
  %2259 = vmatprep.subr.mxu0 0.0
  %2260 = vmatpush2.msra.mxu0 0.0
  %2261 = vmatprep.subr.mxu0 0.0
  %2262 = vmatpush2.msra.mxu0 0.0
  %2263 = vmatprep.subr.mxu0 0.0
  %2264 = vmatpush2.msra.mxu0 0.0
  %2265 = vmatprep.subr.mxu0 0.0
  %2266 = vmatpush2.msra.mxu0 0.0
  %2267 = vmatprep.subr.mxu0 0.0
  %2268 = vmatpush2.msra.mxu0 0.0
  %2269 = vmatprep.subr.mxu0 0.0
  %2270 = vmatpush2.msra.mxu0 0.0
  %2271 = vmatprep.subr.mxu0 0.0
  %2272 = vmatpush2.msra.mxu0 0.0
  %2273 = vmatprep.subr.mxu0 0.0
  %2274 = vmatpush2.msra.mxu0 0.0
  %2275 = vmatprep.subr.mxu0 0.0
  %2276 = vmatpush2.msra.mxu0 0.0
  %2277 = vmatprep.subr.mxu0 0.0
  %2278 = vmatpush2.msra.mxu0 0.0
  %2279 = vmatprep.subr.mxu0 0.0
  %2280 = vmatpush2.msra.mxu0 0.0
  %2281 = vmatprep.mubr.f32.mxu0 0.0
  %2282 = vmatmul.mubr.f32.gmra.mxu0 %v2212
  %v2283 = vpop.f32.mrf.mxu0
  %v2284 = vadd.f32 %v2204, %v2283
  %v2285 = vpop.f32.mrf.mxu0
  %v2286 = vadd.f32 %v2208, %v2285
  %2287 = vmatprep.mubr.f32.mxu0 0.0
  %2288 = vmatmul.mubr.f32.gmra.mxu0 %v2215
  %v2289 = vpop.f32.mrf.mxu0
  %v2290 = vadd.f32 %v2204, %v2289
  %v2291 = vpop.f32.mrf.mxu0
  %v2292 = vadd.f32 %v2208, %v2291
  %2293 = vdwg.mxu0
  %v2294 = vmul.f32 %v2284, 0.5
  %v2295 = vmul.f32 %v2286, 0.5
  %v2296 = vmul.f32 %v2290, 0.5
  %v2297 = vmul.f32 %v2292, 0.5
  %v2298 = vmul.f32 %v2284, 0.70710677
  %v2299 = vmul.f32 %v2286, 0.70710677
  %v2300 = vmul.f32 %v2290, 0.70710677
  %v2301 = vmul.f32 %v2292, 0.70710677
  %vm2302 = vcmp.ge.f32.partialorder %v2298, 0.0
  %vm2303 = vcmp.ge.f32.partialorder %v2299, 0.0
  %vm2304 = vcmp.ge.f32.partialorder %v2300, 0.0
  %vm2305 = vcmp.ge.f32.partialorder %v2301, 0.0
  %v2306 = vsel %vm2302, 1.0, -1.0
  %v2307 = vsel %vm2303, 1.0, -1.0
  %v2308 = vsel %vm2304, 1.0, -1.0
  %v2309 = vsel %vm2305, 1.0, -1.0
  %v2310 = vand.u32 2147483647, %v2298
  %v2311 = vand.u32 2147483647, %v2299
  %v2312 = vand.u32 2147483647, %v2300
  %v2313 = vand.u32 2147483647, %v2301
  %v2314 = vmul.f32 %v2310, 0.3275911
  %v2315 = vmul.f32 %v2311, 0.3275911
  %v2316 = vmul.f32 %v2312, 0.3275911
  %v2317 = vmul.f32 %v2313, 0.3275911
  %v2318 = vadd.f32 %v2314, 1.0
  %v2319 = vadd.f32 %v2315, 1.0
  %v2320 = vadd.f32 %v2316, 1.0
  %v2321 = vadd.f32 %v2317, 1.0
  %v2322 = vrcp.pop %v2318
  %v2323 = vmul.f32 1.0, %v2322
  %v2324 = vrcp.pop %v2319
  %v2325 = vmul.f32 1.0, %v2324
  %v2326 = vrcp.pop %v2320
  %v2327 = vmul.f32 1.0, %v2326
  %v2328 = vrcp.pop %v2321
  %v2329 = vmul.f32 1.0, %v2328
  %v2330 = vmul.f32 %v2323, 1.0614054
  %v2331 = vmul.f32 %v2325, 1.0614054
  %v2332 = vmul.f32 %v2327, 1.0614054
  %v2333 = vmul.f32 %v2329, 1.0614054
  %v2334 = vadd.f32 %v2330, -1.4531521
  %v2335 = vadd.f32 %v2331, -1.4531521
  %v2336 = vadd.f32 %v2332, -1.4531521
  %v2337 = vadd.f32 %v2333, -1.4531521
  %v2338 = vmul.f32 %v2334, %v2323
  %v2339 = vmul.f32 %v2335, %v2325
  %v2340 = vmul.f32 %v2336, %v2327
  %v2341 = vmul.f32 %v2337, %v2329
  %v2342 = vadd.f32 %v2338, 1.4214138
  %v2343 = vadd.f32 %v2339, 1.4214138
  %v2344 = vadd.f32 %v2340, 1.4214138
  %v2345 = vadd.f32 %v2341, 1.4214138
  %v2346 = vmul.f32 %v2342, %v2323
  %v2347 = vmul.f32 %v2343, %v2325
  %v2348 = vmul.f32 %v2344, %v2327
  %v2349 = vmul.f32 %v2345, %v2329
  %v2350 = vadd.f32 %v2346, -0.28449672
  %v2351 = vadd.f32 %v2347, -0.28449672
  %v2352 = vadd.f32 %v2348, -0.28449672
  %v2353 = vadd.f32 %v2349, -0.28449672
  %v2354 = vmul.f32 %v2350, %v2323
  %v2355 = vmul.f32 %v2351, %v2325
  %v2356 = vmul.f32 %v2352, %v2327
  %v2357 = vmul.f32 %v2353, %v2329
  %v2358 = vadd.f32 %v2354, 0.2548296
  %v2359 = vadd.f32 %v2355, 0.2548296
  %v2360 = vadd.f32 %v2356, 0.2548296
  %v2361 = vadd.f32 %v2357, 0.2548296
  %v2362 = vmul.f32 %v2358, %v2323
  %v2363 = vmul.f32 %v2359, %v2325
  %v2364 = vmul.f32 %v2360, %v2327
  %v2365 = vmul.f32 %v2361, %v2329
  %v2366 = vsub.f32 0.0, %v2310
  %v2367 = vsub.f32 0.0, %v2311
  %v2368 = vsub.f32 0.0, %v2312
  %v2369 = vsub.f32 0.0, %v2313
  %v2370 = vmul.f32 %v2366, %v2310
  %v2371 = vmul.f32 %v2367, %v2311
  %v2372 = vmul.f32 %v2368, %v2312
  %v2373 = vmul.f32 %v2369, %v2313
  %v2374 = vmul.f32 %v2370, 1.442695
  %v2375 = vpow.pop %v2374
  %v2376 = vmul.f32 %v2371, 1.442695
  %v2377 = vpow.pop %v2376
  %v2378 = vmul.f32 %v2372, 1.442695
  %v2379 = vpow.pop %v2378
  %v2380 = vmul.f32 %v2373, 1.442695
  %v2381 = vpow.pop %v2380
  %v2382 = vmul.f32 %v2362, %v2375
  %v2383 = vmul.f32 %v2363, %v2377
  %v2384 = vmul.f32 %v2364, %v2379
  %v2385 = vmul.f32 %v2365, %v2381
  %v2386 = vsub.f32 1.0, %v2382
  %v2387 = vsub.f32 1.0, %v2383
  %v2388 = vsub.f32 1.0, %v2384
  %v2389 = vsub.f32 1.0, %v2385
  %v2390 = vmul.f32 %v2306, %v2386
  %v2391 = vmul.f32 %v2307, %v2387
  %v2392 = vmul.f32 %v2308, %v2388
  %v2393 = vmul.f32 %v2309, %v2389
  %v2394 = vadd.f32 %v2390, 1.0
  %v2395 = vadd.f32 %v2391, 1.0
  %v2396 = vadd.f32 %v2392, 1.0
  %v2397 = vadd.f32 %v2393, 1.0
  %v2398 = vmul.f32 %v2294, %v2394
  %v2399 = vmul.f32 %v2295, %v2395
  %v2400 = vmul.f32 %v2296, %v2396
  %v2401 = vmul.f32 %v2297, %v2397
  %v2403 = vlaneseq
  %v2404 = vshrl.u32 %v2403, 7
  %v2405 = vsub.s32 0, %v2404
  %v2406 = vrot.slane %v565, %v2405
  %2408 = vmatprep.subr.mxu0 0.0
  %2409 = vmatpush1.msra.mxu0 %v548
  %2410 = vmatprep.subr.mxu0 0.0
  %2411 = vmatpush1.msra.mxu0 %v547
  %2412 = vmatprep.subr.mxu0 0.0
  %2413 = vmatpush1.msra.mxu0 %v546
  %2414 = vmatprep.subr.mxu0 0.0
  %2415 = vmatpush1.msra.mxu0 %v545
  %2416 = vmatprep.subr.mxu0 0.0
  %2417 = vmatpush1.msra.mxu0 %v544
  %2418 = vmatprep.subr.mxu0 0.0
  %2419 = vmatpush1.msra.mxu0 %v543
  %2420 = vmatprep.subr.mxu0 0.0
  %2421 = vmatpush1.msra.mxu0 %v542
  %2422 = vmatprep.subr.mxu0 0.0
  %2423 = vmatpush1.msra.mxu0 %v541
  %2424 = vmatprep.subr.mxu0 0.0
  %2425 = vmatpush1.msra.mxu0 %v540
  %2426 = vmatprep.subr.mxu0 0.0
  %2427 = vmatpush1.msra.mxu0 %v539
  %2428 = vmatprep.subr.mxu0 0.0
  %2429 = vmatpush1.msra.mxu0 %v538
  %2430 = vmatprep.subr.mxu0 0.0
  %2431 = vmatpush1.msra.mxu0 %v537
  %2432 = vmatprep.subr.mxu0 0.0
  %2433 = vmatpush1.msra.mxu0 %v536
  %2434 = vmatprep.subr.mxu0 0.0
  %2435 = vmatpush1.msra.mxu0 %v535
  %2436 = vmatprep.subr.mxu0 0.0
  %2437 = vmatpush1.msra.mxu0 %v534
  %2438 = vmatprep.subr.mxu0 0.0
  %2439 = vmatpush1.msra.mxu0 %v533
  %2440 = vmatprep.subr.mxu0 0.0
  %2441 = vmatpush2.msra.mxu0 %v564
  %2442 = vmatprep.subr.mxu0 0.0
  %2443 = vmatpush2.msra.mxu0 %v563
  %2444 = vmatprep.subr.mxu0 0.0
  %2445 = vmatpush2.msra.mxu0 %v562
  %2446 = vmatprep.subr.mxu0 0.0
  %2447 = vmatpush2.msra.mxu0 %v561
  %2448 = vmatprep.subr.mxu0 0.0
  %2449 = vmatpush2.msra.mxu0 %v560
  %2450 = vmatprep.subr.mxu0 0.0
  %2451 = vmatpush2.msra.mxu0 %v559
  %2452 = vmatprep.subr.mxu0 0.0
  %2453 = vmatpush2.msra.mxu0 %v558
  %2454 = vmatprep.subr.mxu0 0.0
  %2455 = vmatpush2.msra.mxu0 %v557
  %2456 = vmatprep.subr.mxu0 0.0
  %2457 = vmatpush2.msra.mxu0 %v556
  %2458 = vmatprep.subr.mxu0 0.0
  %2459 = vmatpush2.msra.mxu0 %v555
  %2460 = vmatprep.subr.mxu0 0.0
  %2461 = vmatpush2.msra.mxu0 %v554
  %2462 = vmatprep.subr.mxu0 0.0
  %2463 = vmatpush2.msra.mxu0 %v553
  %2464 = vmatprep.subr.mxu0 0.0
  %2465 = vmatpush2.msra.mxu0 %v552
  %2466 = vmatprep.subr.mxu0 0.0
  %2467 = vmatpush2.msra.mxu0 %v551
  %2468 = vmatprep.subr.mxu0 0.0
  %2469 = vmatpush2.msra.mxu0 %v550
  %2470 = vmatprep.subr.mxu0 0.0
  %2471 = vmatpush2.msra.mxu0 %v549
  %2472 = vmatprep.mubr.f32.mxu0 %v2399
  %2473 = vmatmul.mubr.f32.gmra.mxu0 %v2398
  %v2474 = vpop.f32.mrf.mxu0
  %v2475 = vadd.f32 %v2406, %v2474
  %v2476 = vpop.f32.mrf.mxu0
  %2477 = vmatprep.mubr.f32.mxu0 %v2401
  %2478 = vmatmul.mubr.f32.gmra.mxu0 %v2400
  %v2479 = vpop.f32.mrf.mxu0
  %v2480 = vadd.f32 %v2406, %v2479
  %v2481 = vpop.f32.mrf.mxu0
  %2482 = vdwg.mxu0
  %v2483 = vadd.f32 %v2156, %v2475
  %v2484 = vadd.f32 %v2157, %v2480
  %v2485 = vld [vmem:[%s35] sm:$0x1]
  %v2486 = vld [vmem:[%s37] sm:$0x1]
  %v2487 = vld [vmem:[%s39] sm:$0xff]
  %v2488 = vld [vmem:[%s39 + $0x8] sm:$0xff]
  %v2489 = vld [vmem:[%s39 + $0x10] sm:$0xff]
  %v2490 = vld [vmem:[%s39 + $0x18] sm:$0xff]
  %v2491 = vld [vmem:[%s39 + $0x20] sm:$0xff]
  %v2492 = vld [vmem:[%s39 + $0x28] sm:$0xff]
  %v2493 = vld [vmem:[%s39 + $0x30] sm:$0xff]
  %v2494 = vld [vmem:[%s39 + $0x38] sm:$0xff]
  %v2495 = vld [vmem:[%s39 + $0x40] sm:$0xff]
  %v2496 = vld [vmem:[%s39 + $0x48] sm:$0xff]
  %v2497 = vld [vmem:[%s39 + $0x50] sm:$0xff]
  %v2498 = vld [vmem:[%s39 + $0x58] sm:$0xff]
  %v2499 = vld [vmem:[%s39 + $0x60] sm:$0xff]
  %v2500 = vld [vmem:[%s39 + $0x68] sm:$0xff]
  %v2501 = vld [vmem:[%s39 + $0x70] sm:$0xff]
  %v2502 = vld [vmem:[%s39 + $0x78] sm:$0xff]
  %v2503 = vld [vmem:[%s41] sm:$0x3]
  %v2504 = vld [vmem:[%s43] sm:$0xff]
  %v2505 = vld [vmem:[%s43 + $0x8] sm:$0xff]
  %v2506 = vld [vmem:[%s43 + $0x10] sm:$0xff]
  %v2507 = vld [vmem:[%s43 + $0x18] sm:$0xff]
  %v2508 = vld [vmem:[%s43 + $0x20] sm:$0xff]
  %v2509 = vld [vmem:[%s43 + $0x28] sm:$0xff]
  %v2510 = vld [vmem:[%s43 + $0x30] sm:$0xff]
  %v2511 = vld [vmem:[%s43 + $0x38] sm:$0xff]
  %v2512 = vld [vmem:[%s45] sm:$0x1]
  %v2513 = vld [vmem:[%s47] sm:$0x1]
  %v2514 = vld [vmem:[%s49] sm:$0x1]
  %v2515 = vld [vmem:[%s51] sm:$0xff]
  %v2516 = vld [vmem:[%s51 + $0x8] sm:$0xff]
  %v2517 = vld [vmem:[%s51 + $0x10] sm:$0xff]
  %v2518 = vld [vmem:[%s51 + $0x18] sm:$0xff]
  %v2519 = vld [vmem:[%s51 + $0x20] sm:$0xff]
  %v2520 = vld [vmem:[%s51 + $0x28] sm:$0xff]
  %v2521 = vld [vmem:[%s51 + $0x30] sm:$0xff]
  %v2522 = vld [vmem:[%s51 + $0x38] sm:$0xff]
  %v2523 = vld [vmem:[%s51 + $0x40] sm:$0xff]
  %v2524 = vld [vmem:[%s51 + $0x48] sm:$0xff]
  %v2525 = vld [vmem:[%s51 + $0x50] sm:$0xff]
  %v2526 = vld [vmem:[%s51 + $0x58] sm:$0xff]
  %v2527 = vld [vmem:[%s51 + $0x60] sm:$0xff]
  %v2528 = vld [vmem:[%s51 + $0x68] sm:$0xff]
  %v2529 = vld [vmem:[%s51 + $0x70] sm:$0xff]
  %v2530 = vld [vmem:[%s51 + $0x78] sm:$0xff]
  %v2531 = vld [vmem:[%s53] sm:$0x3]
  %v2532 = vld [vmem:[%s55] sm:$0xff]
  %v2533 = vld [vmem:[%s55 + $0x8] sm:$0xff]
  %v2534 = vld [vmem:[%s55 + $0x10] sm:$0xff]
  %v2535 = vld [vmem:[%s55 + $0x18] sm:$0xff]
  %v2536 = vld [vmem:[%s55 + $0x20] sm:$0xff]
  %v2537 = vld [vmem:[%s55 + $0x28] sm:$0xff]
  %v2538 = vld [vmem:[%s55 + $0x30] sm:$0xff]
  %v2539 = vld [vmem:[%s55 + $0x38] sm:$0xff]
  %v2540 = vld [vmem:[%s55 + $0x40] sm:$0xff]
  %v2541 = vld [vmem:[%s55 + $0x48] sm:$0xff]
  %v2542 = vld [vmem:[%s55 + $0x50] sm:$0xff]
  %v2543 = vld [vmem:[%s55 + $0x58] sm:$0xff]
  %v2544 = vld [vmem:[%s55 + $0x60] sm:$0xff]
  %v2545 = vld [vmem:[%s55 + $0x68] sm:$0xff]
  %v2546 = vld [vmem:[%s55 + $0x70] sm:$0xff]
  %v2547 = vld [vmem:[%s55 + $0x78] sm:$0xff]
  %v2548 = vld [vmem:[%s55 + $0x80] sm:$0xff]
  %v2549 = vld [vmem:[%s55 + $0x88] sm:$0xff]
  %v2550 = vld [vmem:[%s55 + $0x90] sm:$0xff]
  %v2551 = vld [vmem:[%s55 + $0x98] sm:$0xff]
  %v2552 = vld [vmem:[%s55 + $0xa0] sm:$0xff]
  %v2553 = vld [vmem:[%s55 + $0xa8] sm:$0xff]
  %v2554 = vld [vmem:[%s55 + $0xb0] sm:$0xff]
  %v2555 = vld [vmem:[%s55 + $0xb8] sm:$0xff]
  %v2556 = vld [vmem:[%s55 + $0xc0] sm:$0xff]
  %v2557 = vld [vmem:[%s55 + $0xc8] sm:$0xff]
  %v2558 = vld [vmem:[%s55 + $0xd0] sm:$0xff]
  %v2559 = vld [vmem:[%s55 + $0xd8] sm:$0xff]
  %v2560 = vld [vmem:[%s55 + $0xe0] sm:$0xff]
  %v2561 = vld [vmem:[%s55 + $0xe8] sm:$0xff]
  %v2562 = vld [vmem:[%s55 + $0xf0] sm:$0xff]
  %v2563 = vld [vmem:[%s55 + $0xf8] sm:$0xff]
  %v2564 = vld [vmem:[%s57] sm:$0x1]
  %v2565 = vsel %vm566, %v2483, 0.0
  %2566 = vadd.xlane.f32.xlu0 %v2565
  %v2567 = vpop.xlane.xlu0 %2566
  %v2568 = vsel %vm566, %v2484, 0.0
  %2569 = vadd.xlane.f32.xlu0 %v2568
  %v2570 = vpop.xlane.xlu0 %2569
  %v2571 = vmul.f32 %v2567, %v573
  %v2572 = vmul.f32 %v2570, %v573
  %v2573 = vsub.f32 %v2483, %v2571
  %v2574 = vsub.f32 %v2484, %v2572
  %v2575 = vmul.f32 %v2573, %v2573
  %v2576 = vmul.f32 %v2574, %v2574
  %v2577 = vsel %vm566, %v2575, 0.0
  %2578 = vadd.xlane.f32.xlu0 %v2577
  %v2579 = vpop.xlane.xlu0 %2578
  %v2580 = vsel %vm566, %v2576, 0.0
  %2581 = vadd.xlane.f32.xlu0 %v2580
  %v2582 = vpop.xlane.xlu0 %2581
  %v2583 = vmul.f32 %v2579, %v573
  %v2584 = vmul.f32 %v2582, %v573
  %v2585 = vadd.f32 %v2583, 1e-06
  %v2586 = vadd.f32 %v2584, 1e-06
  %v2587 = vrsqrt.pop %v2585
  %v2588 = vrsqrt.pop %v2586
  %v2589 = vmul.f32 %v2573, %v2587
  %v2590 = vmul.f32 %v2574, %v2588
  %v2592 = vlaneseq
  %v2593 = vshrl.u32 %v2592, 7
  %v2594 = vsub.s32 0, %v2593
  %v2595 = vrot.slane %v2485, %v2594
  %v2597 = vmul.f32 %v2589, %v2595
  %v2598 = vmul.f32 %v2590, %v2595
  %v2600 = vlaneseq
  %v2601 = vshrl.u32 %v2600, 7
  %v2602 = vsub.s32 0, %v2601
  %v2603 = vrot.slane %v2486, %v2602
  %v2605 = vadd.f32 %v2597, %v2603
  %v2606 = vadd.f32 %v2598, %v2603
  %v2608 = vlaneseq
  %v2609 = vshrl.u32 %v2608, 7
  %v2610 = vsub.s32 0, %v2609
  %v2611 = vrot.slane %v2503, %v2610
  %v2612 = vlaneseq
  %v2613 = vshrl.u32 %v2612, 7
  %v2614 = vsub.s32 1, %v2613
  %v2615 = vrot.slane %v2503, %v2614
  %v2619 = vsel %vm566, %v2605, 0
  %v2622 = vsel %vm566, %v2606, 0
  %2624 = vmatprep.subr.mxu0 0.0
  %2625 = vmatpush1.msra.mxu0 0.0
  %2626 = vmatprep.subr.mxu0 0.0
  %2627 = vmatpush1.msra.mxu0 0.0
  %2628 = vmatprep.subr.mxu0 0.0
  %2629 = vmatpush1.msra.mxu0 0.0
  %2630 = vmatprep.subr.mxu0 0.0
  %2631 = vmatpush1.msra.mxu0 0.0
  %2632 = vmatprep.subr.mxu0 0.0
  %2633 = vmatpush1.msra.mxu0 0.0
  %2634 = vmatprep.subr.mxu0 0.0
  %2635 = vmatpush1.msra.mxu0 0.0
  %2636 = vmatprep.subr.mxu0 0.0
  %2637 = vmatpush1.msra.mxu0 0.0
  %2638 = vmatprep.subr.mxu0 0.0
  %2639 = vmatpush1.msra.mxu0 0.0
  %2640 = vmatprep.subr.mxu0 %v2502
  %2641 = vmatpush1.msra.mxu0 %v2501
  %2642 = vmatprep.subr.mxu0 %v2500
  %2643 = vmatpush1.msra.mxu0 %v2499
  %2644 = vmatprep.subr.mxu0 %v2498
  %2645 = vmatpush1.msra.mxu0 %v2497
  %2646 = vmatprep.subr.mxu0 %v2496
  %2647 = vmatpush1.msra.mxu0 %v2495
  %2648 = vmatprep.subr.mxu0 %v2494
  %2649 = vmatpush1.msra.mxu0 %v2493
  %2650 = vmatprep.subr.mxu0 %v2492
  %2651 = vmatpush1.msra.mxu0 %v2491
  %2652 = vmatprep.subr.mxu0 %v2490
  %2653 = vmatpush1.msra.mxu0 %v2489
  %2654 = vmatprep.subr.mxu0 %v2488
  %2655 = vmatpush1.msra.mxu0 %v2487
  %2656 = vmatprep.subr.mxu0 0.0
  %2657 = vmatpush2.msra.mxu0 0.0
  %2658 = vmatprep.subr.mxu0 0.0
  %2659 = vmatpush2.msra.mxu0 0.0
  %2660 = vmatprep.subr.mxu0 0.0
  %2661 = vmatpush2.msra.mxu0 0.0
  %2662 = vmatprep.subr.mxu0 0.0
  %2663 = vmatpush2.msra.mxu0 0.0
  %2664 = vmatprep.subr.mxu0 0.0
  %2665 = vmatpush2.msra.mxu0 0.0
  %2666 = vmatprep.subr.mxu0 0.0
  %2667 = vmatpush2.msra.mxu0 0.0
  %2668 = vmatprep.subr.mxu0 0.0
  %2669 = vmatpush2.msra.mxu0 0.0
  %2670 = vmatprep.subr.mxu0 0.0
  %2671 = vmatpush2.msra.mxu0 0.0
  %2672 = vmatprep.subr.mxu0 0.0
  %2673 = vmatpush2.msra.mxu0 0.0
  %2674 = vmatprep.subr.mxu0 0.0
  %2675 = vmatpush2.msra.mxu0 0.0
  %2676 = vmatprep.subr.mxu0 0.0
  %2677 = vmatpush2.msra.mxu0 0.0
  %2678 = vmatprep.subr.mxu0 0.0
  %2679 = vmatpush2.msra.mxu0 0.0
  %2680 = vmatprep.subr.mxu0 0.0
  %2681 = vmatpush2.msra.mxu0 0.0
  %2682 = vmatprep.subr.mxu0 0.0
  %2683 = vmatpush2.msra.mxu0 0.0
  %2684 = vmatprep.subr.mxu0 0.0
  %2685 = vmatpush2.msra.mxu0 0.0
  %2686 = vmatprep.subr.mxu0 0.0
  %2687 = vmatpush2.msra.mxu0 0.0
  %2688 = vmatprep.mubr.f32.mxu0 0.0
  %2689 = vmatmul.mubr.f32.gmra.mxu0 %v2619
  %v2690 = vpop.f32.mrf.mxu0
  %v2691 = vadd.f32 %v2611, %v2690
  %v2692 = vpop.f32.mrf.mxu0
  %v2693 = vadd.f32 %v2615, %v2692
  %2694 = vmatprep.mubr.f32.mxu0 0.0
  %2695 = vmatmul.mubr.f32.gmra.mxu0 %v2622
  %v2696 = vpop.f32.mrf.mxu0
  %v2697 = vadd.f32 %v2611, %v2696
  %v2698 = vpop.f32.mrf.mxu0
  %v2699 = vadd.f32 %v2615, %v2698
  %2700 = vdwg.mxu0
  %v2701 = vmul.f32 %v2691, 0.25
  %2703 = vrot.lane.b32.xlu0 %v2691, 64
  %v2704 = vpop.permute.xlu0 %2703
  %v2706 = vsel %vm708, %v2701, 0
  %v2708 = vsel %vm708, %v2704, 0
  %2710 = vmatprep.subr.mxu0 0.0
  %2711 = vmatpush1.xpose.msra.mxu0 0.0
  %2712 = vmatprep.subr.mxu0 0.0
  %2713 = vmatpush1.xpose.msra.mxu0 0.0
  %2714 = vmatprep.subr.mxu0 0.0
  %2715 = vmatpush1.xpose.msra.mxu0 0.0
  %2716 = vmatprep.subr.mxu0 0.0
  %2717 = vmatpush1.xpose.msra.mxu0 0.0
  %2718 = vmatprep.subr.mxu0 0.0
  %2719 = vmatpush1.xpose.msra.mxu0 0.0
  %2720 = vmatprep.subr.mxu0 0.0
  %2721 = vmatpush1.xpose.msra.mxu0 0.0
  %2722 = vmatprep.subr.mxu0 0.0
  %2723 = vmatpush1.xpose.msra.mxu0 0.0
  %2724 = vmatprep.subr.mxu0 0.0
  %2725 = vmatpush1.xpose.msra.mxu0 0.0
  %2726 = vmatprep.subr.mxu0 0.0
  %2727 = vmatpush1.xpose.msra.mxu0 0.0
  %2728 = vmatprep.subr.mxu0 0.0
  %2729 = vmatpush1.xpose.msra.mxu0 0.0
  %2730 = vmatprep.subr.mxu0 0.0
  %2731 = vmatpush1.xpose.msra.mxu0 0.0
  %2732 = vmatprep.subr.mxu0 0.0
  %2733 = vmatpush1.xpose.msra.mxu0 0.0
  %2734 = vmatprep.subr.mxu0 0.0
  %2735 = vmatpush1.xpose.msra.mxu0 0.0
  %2736 = vmatprep.subr.mxu0 0.0
  %2737 = vmatpush1.xpose.msra.mxu0 0.0
  %2738 = vmatprep.subr.mxu0 0.0
  %2739 = vmatpush1.xpose.msra.mxu0 0.0
  %2740 = vmatprep.subr.mxu0 0.0
  %2741 = vmatpush1.xpose.msra.mxu0 %v2708
  %2742 = vmatprep.subr.mxu0 0.0
  %2743 = vmatpush2.xpose.msra.mxu0 0.0
  %2744 = vmatprep.subr.mxu0 0.0
  %2745 = vmatpush2.xpose.msra.mxu0 0.0
  %2746 = vmatprep.subr.mxu0 0.0
  %2747 = vmatpush2.xpose.msra.mxu0 0.0
  %2748 = vmatprep.subr.mxu0 0.0
  %2749 = vmatpush2.xpose.msra.mxu0 0.0
  %2750 = vmatprep.subr.mxu0 0.0
  %2751 = vmatpush2.xpose.msra.mxu0 0.0
  %2752 = vmatprep.subr.mxu0 0.0
  %2753 = vmatpush2.xpose.msra.mxu0 0.0
  %2754 = vmatprep.subr.mxu0 0.0
  %2755 = vmatpush2.xpose.msra.mxu0 0.0
  %2756 = vmatprep.subr.mxu0 0.0
  %2757 = vmatpush2.xpose.msra.mxu0 0.0
  %2758 = vmatprep.subr.mxu0 0.0
  %2759 = vmatpush2.xpose.msra.mxu0 0.0
  %2760 = vmatprep.subr.mxu0 0.0
  %2761 = vmatpush2.xpose.msra.mxu0 0.0
  %2762 = vmatprep.subr.mxu0 0.0
  %2763 = vmatpush2.xpose.msra.mxu0 0.0
  %2764 = vmatprep.subr.mxu0 0.0
  %2765 = vmatpush2.xpose.msra.mxu0 0.0
  %2766 = vmatprep.subr.mxu0 0.0
  %2767 = vmatpush2.xpose.msra.mxu0 0.0
  %2768 = vmatprep.subr.mxu0 0.0
  %2769 = vmatpush2.xpose.msra.mxu0 0.0
  %2770 = vmatprep.subr.mxu0 0.0
  %2771 = vmatpush2.xpose.msra.mxu0 0.0
  %2772 = vmatprep.subr.mxu0 0.0
  %2773 = vmatpush2.xpose.msra.mxu0 0.0
  %2774 = vmatprep.mubr.f32.mxu0 0.0
  %2775 = vmatmul.mubr.f32.gmra.mxu0 %v2706
  %v2776 = vpop.f32.mrf.mxu0
  %v2777 = vadd.f32 0.0, %v2776
  %v2778 = vpop.f32.mrf.mxu0
  %2779 = vdwg.mxu0
  %v2780 = vsel %vm485, %v2777, -1e+30
  %v2781 = vsel %vm785, %v2780, -inf
  %2782 = vmax.xlane.f32.xlu0 %v2781
  %v2783 = vpop.xlane.xlu0 %2782
  %v2784 = vsub.f32 %v2780, %v2783
  %v2785 = vmul.f32 %v2784, 1.442695
  %v2786 = vpow.pop %v2785
  %v2787 = vsel %vm785, %v2786, 0.0
  %2788 = vadd.xlane.f32.xlu0 %v2787
  %v2789 = vpop.xlane.xlu0 %2788
  %v2790 = vrcp.pop %v2789
  %v2791 = vmul.f32 %v2786, %v2790
  %v2793 = vsel %vm785, %v2791, 0
  %2795 = vmatprep.subr.mxu0 0.0
  %2796 = vmatpush1.msra.mxu0 0.0
  %2797 = vmatprep.subr.mxu0 0.0
  %2798 = vmatpush1.msra.mxu0 0.0
  %2799 = vmatprep.subr.mxu0 0.0
  %2800 = vmatpush1.msra.mxu0 0.0
  %2801 = vmatprep.subr.mxu0 0.0
  %2802 = vmatpush1.msra.mxu0 0.0
  %2803 = vmatprep.subr.mxu0 0.0
  %2804 = vmatpush1.msra.mxu0 0.0
  %2805 = vmatprep.subr.mxu0 0.0
  %2806 = vmatpush1.msra.mxu0 0.0
  %2807 = vmatprep.subr.mxu0 0.0
  %2808 = vmatpush1.msra.mxu0 0.0
  %2809 = vmatprep.subr.mxu0 0.0
  %2810 = vmatpush1.msra.mxu0 0.0
  %2811 = vmatprep.subr.mxu0 0.0
  %2812 = vmatpush1.msra.mxu0 0.0
  %2813 = vmatprep.subr.mxu0 0.0
  %2814 = vmatpush1.msra.mxu0 0.0
  %2815 = vmatprep.subr.mxu0 0.0
  %2816 = vmatpush1.msra.mxu0 0.0
  %2817 = vmatprep.subr.mxu0 0.0
  %2818 = vmatpush1.msra.mxu0 0.0
  %2819 = vmatprep.subr.mxu0 0.0
  %2820 = vmatpush1.msra.mxu0 0.0
  %2821 = vmatprep.subr.mxu0 0.0
  %2822 = vmatpush1.msra.mxu0 0.0
  %2823 = vmatprep.subr.mxu0 0.0
  %2824 = vmatpush1.msra.mxu0 0.0
  %2825 = vmatprep.subr.mxu0 0.0
  %2826 = vmatpush1.msra.mxu0 %v2693
  %2827 = vmatprep.subr.mxu0 0.0
  %2828 = vmatpush2.msra.mxu0 0.0
  %2829 = vmatprep.subr.mxu0 0.0
  %2830 = vmatpush2.msra.mxu0 0.0
  %2831 = vmatprep.subr.mxu0 0.0
  %2832 = vmatpush2.msra.mxu0 0.0
  %2833 = vmatprep.subr.mxu0 0.0
  %2834 = vmatpush2.msra.mxu0 0.0
  %2835 = vmatprep.subr.mxu0 0.0
  %2836 = vmatpush2.msra.mxu0 0.0
  %2837 = vmatprep.subr.mxu0 0.0
  %2838 = vmatpush2.msra.mxu0 0.0
  %2839 = vmatprep.subr.mxu0 0.0
  %2840 = vmatpush2.msra.mxu0 0.0
  %2841 = vmatprep.subr.mxu0 0.0
  %2842 = vmatpush2.msra.mxu0 0.0
  %2843 = vmatprep.subr.mxu0 0.0
  %2844 = vmatpush2.msra.mxu0 0.0
  %2845 = vmatprep.subr.mxu0 0.0
  %2846 = vmatpush2.msra.mxu0 0.0
  %2847 = vmatprep.subr.mxu0 0.0
  %2848 = vmatpush2.msra.mxu0 0.0
  %2849 = vmatprep.subr.mxu0 0.0
  %2850 = vmatpush2.msra.mxu0 0.0
  %2851 = vmatprep.subr.mxu0 0.0
  %2852 = vmatpush2.msra.mxu0 0.0
  %2853 = vmatprep.subr.mxu0 0.0
  %2854 = vmatpush2.msra.mxu0 0.0
  %2855 = vmatprep.subr.mxu0 0.0
  %2856 = vmatpush2.msra.mxu0 0.0
  %2857 = vmatprep.subr.mxu0 0.0
  %2858 = vmatpush2.msra.mxu0 0.0
  %2859 = vmatprep.mubr.f32.mxu0 0.0
  %2860 = vmatmul.mubr.f32.gmra.mxu0 %v2793
  %v2861 = vpop.f32.mrf.mxu0
  %v2862 = vadd.f32 0.0, %v2861
  %v2863 = vpop.f32.mrf.mxu0
  %2864 = vdwg.mxu0
  %2865 = vst.msk [vmem:[#allocation3] sm:$0xff] %vm708, %v2862
  %2866 = vrot.lane.b32.xlu0 %v2701, 112
  %v2867 = vpop.permute.xlu0 %2866
  %2868 = vrot.lane.b32.xlu0 %v2691, 48
  %v2869 = vpop.permute.xlu0 %2868
  %v2870 = vsel %vm708, %v2867, 0
  %v2872 = vsel %vm708, %v2869, 0
  %2874 = vmatprep.subr.mxu0 0.0
  %2875 = vmatpush1.xpose.msra.mxu0 0.0
  %2876 = vmatprep.subr.mxu0 0.0
  %2877 = vmatpush1.xpose.msra.mxu0 0.0
  %2878 = vmatprep.subr.mxu0 0.0
  %2879 = vmatpush1.xpose.msra.mxu0 0.0
  %2880 = vmatprep.subr.mxu0 0.0
  %2881 = vmatpush1.xpose.msra.mxu0 0.0
  %2882 = vmatprep.subr.mxu0 0.0
  %2883 = vmatpush1.xpose.msra.mxu0 0.0
  %2884 = vmatprep.subr.mxu0 0.0
  %2885 = vmatpush1.xpose.msra.mxu0 0.0
  %2886 = vmatprep.subr.mxu0 0.0
  %2887 = vmatpush1.xpose.msra.mxu0 0.0
  %2888 = vmatprep.subr.mxu0 0.0
  %2889 = vmatpush1.xpose.msra.mxu0 0.0
  %2890 = vmatprep.subr.mxu0 0.0
  %2891 = vmatpush1.xpose.msra.mxu0 0.0
  %2892 = vmatprep.subr.mxu0 0.0
  %2893 = vmatpush1.xpose.msra.mxu0 0.0
  %2894 = vmatprep.subr.mxu0 0.0
  %2895 = vmatpush1.xpose.msra.mxu0 0.0
  %2896 = vmatprep.subr.mxu0 0.0
  %2897 = vmatpush1.xpose.msra.mxu0 0.0
  %2898 = vmatprep.subr.mxu0 0.0
  %2899 = vmatpush1.xpose.msra.mxu0 0.0
  %2900 = vmatprep.subr.mxu0 0.0
  %2901 = vmatpush1.xpose.msra.mxu0 0.0
  %2902 = vmatprep.subr.mxu0 0.0
  %2903 = vmatpush1.xpose.msra.mxu0 0.0
  %2904 = vmatprep.subr.mxu0 0.0
  %2905 = vmatpush1.xpose.msra.mxu0 %v2872
  %2906 = vmatprep.subr.mxu0 0.0
  %2907 = vmatpush2.xpose.msra.mxu0 0.0
  %2908 = vmatprep.subr.mxu0 0.0
  %2909 = vmatpush2.xpose.msra.mxu0 0.0
  %2910 = vmatprep.subr.mxu0 0.0
  %2911 = vmatpush2.xpose.msra.mxu0 0.0
  %2912 = vmatprep.subr.mxu0 0.0
  %2913 = vmatpush2.xpose.msra.mxu0 0.0
  %2914 = vmatprep.subr.mxu0 0.0
  %2915 = vmatpush2.xpose.msra.mxu0 0.0
  %2916 = vmatprep.subr.mxu0 0.0
  %2917 = vmatpush2.xpose.msra.mxu0 0.0
  %2918 = vmatprep.subr.mxu0 0.0
  %2919 = vmatpush2.xpose.msra.mxu0 0.0
  %2920 = vmatprep.subr.mxu0 0.0
  %2921 = vmatpush2.xpose.msra.mxu0 0.0
  %2922 = vmatprep.subr.mxu0 0.0
  %2923 = vmatpush2.xpose.msra.mxu0 0.0
  %2924 = vmatprep.subr.mxu0 0.0
  %2925 = vmatpush2.xpose.msra.mxu0 0.0
  %2926 = vmatprep.subr.mxu0 0.0
  %2927 = vmatpush2.xpose.msra.mxu0 0.0
  %2928 = vmatprep.subr.mxu0 0.0
  %2929 = vmatpush2.xpose.msra.mxu0 0.0
  %2930 = vmatprep.subr.mxu0 0.0
  %2931 = vmatpush2.xpose.msra.mxu0 0.0
  %2932 = vmatprep.subr.mxu0 0.0
  %2933 = vmatpush2.xpose.msra.mxu0 0.0
  %2934 = vmatprep.subr.mxu0 0.0
  %2935 = vmatpush2.xpose.msra.mxu0 0.0
  %2936 = vmatprep.subr.mxu0 0.0
  %2937 = vmatpush2.xpose.msra.mxu0 0.0
  %2938 = vmatprep.mubr.f32.mxu0 0.0
  %2939 = vmatmul.mubr.f32.gmra.mxu0 %v2870
  %v2940 = vpop.f32.mrf.mxu0
  %v2941 = vadd.f32 0.0, %v2940
  %v2942 = vpop.f32.mrf.mxu0
  %2943 = vdwg.mxu0
  %v2944 = vsel %vm485, %v2941, -1e+30
  %v2945 = vsel %vm785, %v2944, -inf
  %2946 = vmax.xlane.f32.xlu0 %v2945
  %v2947 = vpop.xlane.xlu0 %2946
  %v2948 = vsub.f32 %v2944, %v2947
  %v2949 = vmul.f32 %v2948, 1.442695
  %v2950 = vpow.pop %v2949
  %v2951 = vsel %vm785, %v2950, 0.0
  %2952 = vadd.xlane.f32.xlu0 %v2951
  %v2953 = vpop.xlane.xlu0 %2952
  %v2954 = vrcp.pop %v2953
  %v2955 = vmul.f32 %v2950, %v2954
  %2957 = vrot.lane.b32.xlu0 %v2693, 112
  %v2958 = vpop.permute.xlu0 %2957
  %v2961 = vsel %vm785, %v2955, 0
  %2963 = vmatprep.subr.mxu0 0.0
  %2964 = vmatpush1.msra.mxu0 0.0
  %2965 = vmatprep.subr.mxu0 0.0
  %2966 = vmatpush1.msra.mxu0 0.0
  %2967 = vmatprep.subr.mxu0 0.0
  %2968 = vmatpush1.msra.mxu0 0.0
  %2969 = vmatprep.subr.mxu0 0.0
  %2970 = vmatpush1.msra.mxu0 0.0
  %2971 = vmatprep.subr.mxu0 0.0
  %2972 = vmatpush1.msra.mxu0 0.0
  %2973 = vmatprep.subr.mxu0 0.0
  %2974 = vmatpush1.msra.mxu0 0.0
  %2975 = vmatprep.subr.mxu0 0.0
  %2976 = vmatpush1.msra.mxu0 0.0
  %2977 = vmatprep.subr.mxu0 0.0
  %2978 = vmatpush1.msra.mxu0 0.0
  %2979 = vmatprep.subr.mxu0 0.0
  %2980 = vmatpush1.msra.mxu0 0.0
  %2981 = vmatprep.subr.mxu0 0.0
  %2982 = vmatpush1.msra.mxu0 0.0
  %2983 = vmatprep.subr.mxu0 0.0
  %2984 = vmatpush1.msra.mxu0 0.0
  %2985 = vmatprep.subr.mxu0 0.0
  %2986 = vmatpush1.msra.mxu0 0.0
  %2987 = vmatprep.subr.mxu0 0.0
  %2988 = vmatpush1.msra.mxu0 0.0
  %2989 = vmatprep.subr.mxu0 0.0
  %2990 = vmatpush1.msra.mxu0 0.0
  %2991 = vmatprep.subr.mxu0 0.0
  %2992 = vmatpush1.msra.mxu0 0.0
  %2993 = vmatprep.subr.mxu0 0.0
  %2994 = vmatpush1.msra.mxu0 %v2958
  %2995 = vmatprep.subr.mxu0 0.0
  %2996 = vmatpush2.msra.mxu0 0.0
  %2997 = vmatprep.subr.mxu0 0.0
  %2998 = vmatpush2.msra.mxu0 0.0
  %2999 = vmatprep.subr.mxu0 0.0
  %3000 = vmatpush2.msra.mxu0 0.0
  %3001 = vmatprep.subr.mxu0 0.0
  %3002 = vmatpush2.msra.mxu0 0.0
  %3003 = vmatprep.subr.mxu0 0.0
  %3004 = vmatpush2.msra.mxu0 0.0
  %3005 = vmatprep.subr.mxu0 0.0
  %3006 = vmatpush2.msra.mxu0 0.0
  %3007 = vmatprep.subr.mxu0 0.0
  %3008 = vmatpush2.msra.mxu0 0.0
  %3009 = vmatprep.subr.mxu0 0.0
  %3010 = vmatpush2.msra.mxu0 0.0
  %3011 = vmatprep.subr.mxu0 0.0
  %3012 = vmatpush2.msra.mxu0 0.0
  %3013 = vmatprep.subr.mxu0 0.0
  %3014 = vmatpush2.msra.mxu0 0.0
  %3015 = vmatprep.subr.mxu0 0.0
  %3016 = vmatpush2.msra.mxu0 0.0
  %3017 = vmatprep.subr.mxu0 0.0
  %3018 = vmatpush2.msra.mxu0 0.0
  %3019 = vmatprep.subr.mxu0 0.0
  %3020 = vmatpush2.msra.mxu0 0.0
  %3021 = vmatprep.subr.mxu0 0.0
  %3022 = vmatpush2.msra.mxu0 0.0
  %3023 = vmatprep.subr.mxu0 0.0
  %3024 = vmatpush2.msra.mxu0 0.0
  %3025 = vmatprep.subr.mxu0 0.0
  %3026 = vmatpush2.msra.mxu0 0.0
  %3027 = vmatprep.mubr.f32.mxu0 0.0
  %3028 = vmatmul.mubr.f32.gmra.mxu0 %v2961
  %v3029 = vpop.f32.mrf.mxu0
  %v3030 = vadd.f32 0.0, %v3029
  %v3031 = vpop.f32.mrf.mxu0
  %3032 = vdwg.mxu0
  %3034 = vrot.lane.b32.xlu0 %v3030, 16
  %v3035 = vpop.permute.xlu0 %3034
  %3037 = vst.msk [vmem:[#allocation3] sm:$0xff] %vm1042, %v3035
  %3038 = vrot.lane.b32.xlu0 %v2701, 96
  %v3039 = vpop.permute.xlu0 %3038
  %3040 = vrot.lane.b32.xlu0 %v2691, 32
  %v3041 = vpop.permute.xlu0 %3040
  %v3042 = vsel %vm708, %v3039, 0
  %v3044 = vsel %vm708, %v3041, 0
  %3046 = vmatprep.subr.mxu0 0.0
  %3047 = vmatpush1.xpose.msra.mxu0 0.0
  %3048 = vmatprep.subr.mxu0 0.0
  %3049 = vmatpush1.xpose.msra.mxu0 0.0
  %3050 = vmatprep.subr.mxu0 0.0
  %3051 = vmatpush1.xpose.msra.mxu0 0.0
  %3052 = vmatprep.subr.mxu0 0.0
  %3053 = vmatpush1.xpose.msra.mxu0 0.0
  %3054 = vmatprep.subr.mxu0 0.0
  %3055 = vmatpush1.xpose.msra.mxu0 0.0
  %3056 = vmatprep.subr.mxu0 0.0
  %3057 = vmatpush1.xpose.msra.mxu0 0.0
  %3058 = vmatprep.subr.mxu0 0.0
  %3059 = vmatpush1.xpose.msra.mxu0 0.0
  %3060 = vmatprep.subr.mxu0 0.0
  %3061 = vmatpush1.xpose.msra.mxu0 0.0
  %3062 = vmatprep.subr.mxu0 0.0
  %3063 = vmatpush1.xpose.msra.mxu0 0.0
  %3064 = vmatprep.subr.mxu0 0.0
  %3065 = vmatpush1.xpose.msra.mxu0 0.0
  %3066 = vmatprep.subr.mxu0 0.0
  %3067 = vmatpush1.xpose.msra.mxu0 0.0
  %3068 = vmatprep.subr.mxu0 0.0
  %3069 = vmatpush1.xpose.msra.mxu0 0.0
  %3070 = vmatprep.subr.mxu0 0.0
  %3071 = vmatpush1.xpose.msra.mxu0 0.0
  %3072 = vmatprep.subr.mxu0 0.0
  %3073 = vmatpush1.xpose.msra.mxu0 0.0
  %3074 = vmatprep.subr.mxu0 0.0
  %3075 = vmatpush1.xpose.msra.mxu0 0.0
  %3076 = vmatprep.subr.mxu0 0.0
  %3077 = vmatpush1.xpose.msra.mxu0 %v3044
  %3078 = vmatprep.subr.mxu0 0.0
  %3079 = vmatpush2.xpose.msra.mxu0 0.0
  %3080 = vmatprep.subr.mxu0 0.0
  %3081 = vmatpush2.xpose.msra.mxu0 0.0
  %3082 = vmatprep.subr.mxu0 0.0
  %3083 = vmatpush2.xpose.msra.mxu0 0.0
  %3084 = vmatprep.subr.mxu0 0.0
  %3085 = vmatpush2.xpose.msra.mxu0 0.0
  %3086 = vmatprep.subr.mxu0 0.0
  %3087 = vmatpush2.xpose.msra.mxu0 0.0
  %3088 = vmatprep.subr.mxu0 0.0
  %3089 = vmatpush2.xpose.msra.mxu0 0.0
  %3090 = vmatprep.subr.mxu0 0.0
  %3091 = vmatpush2.xpose.msra.mxu0 0.0
  %3092 = vmatprep.subr.mxu0 0.0
  %3093 = vmatpush2.xpose.msra.mxu0 0.0
  %3094 = vmatprep.subr.mxu0 0.0
  %3095 = vmatpush2.xpose.msra.mxu0 0.0
  %3096 = vmatprep.subr.mxu0 0.0
  %3097 = vmatpush2.xpose.msra.mxu0 0.0
  %3098 = vmatprep.subr.mxu0 0.0
  %3099 = vmatpush2.xpose.msra.mxu0 0.0
  %3100 = vmatprep.subr.mxu0 0.0
  %3101 = vmatpush2.xpose.msra.mxu0 0.0
  %3102 = vmatprep.subr.mxu0 0.0
  %3103 = vmatpush2.xpose.msra.mxu0 0.0
  %3104 = vmatprep.subr.mxu0 0.0
  %3105 = vmatpush2.xpose.msra.mxu0 0.0
  %3106 = vmatprep.subr.mxu0 0.0
  %3107 = vmatpush2.xpose.msra.mxu0 0.0
  %3108 = vmatprep.subr.mxu0 0.0
  %3109 = vmatpush2.xpose.msra.mxu0 0.0
  %3110 = vmatprep.mubr.f32.mxu0 0.0
  %3111 = vmatmul.mubr.f32.gmra.mxu0 %v3042
  %v3112 = vpop.f32.mrf.mxu0
  %v3113 = vadd.f32 0.0, %v3112
  %v3114 = vpop.f32.mrf.mxu0
  %3115 = vdwg.mxu0
  %v3116 = vsel %vm485, %v3113, -1e+30
  %v3117 = vsel %vm785, %v3116, -inf
  %3118 = vmax.xlane.f32.xlu0 %v3117
  %v3119 = vpop.xlane.xlu0 %3118
  %v3120 = vsub.f32 %v3116, %v3119
  %v3121 = vmul.f32 %v3120, 1.442695
  %v3122 = vpow.pop %v3121
  %v3123 = vsel %vm785, %v3122, 0.0
  %3124 = vadd.xlane.f32.xlu0 %v3123
  %v3125 = vpop.xlane.xlu0 %3124
  %v3126 = vrcp.pop %v3125
  %v3127 = vmul.f32 %v3122, %v3126
  %3128 = vrot.lane.b32.xlu0 %v2693, 96
  %v3129 = vpop.permute.xlu0 %3128
  %v3132 = vsel %vm785, %v3127, 0
  %3134 = vmatprep.subr.mxu0 0.0
  %3135 = vmatpush1.msra.mxu0 0.0
  %3136 = vmatprep.subr.mxu0 0.0
  %3137 = vmatpush1.msra.mxu0 0.0
  %3138 = vmatprep.subr.mxu0 0.0
  %3139 = vmatpush1.msra.mxu0 0.0
  %3140 = vmatprep.subr.mxu0 0.0
  %3141 = vmatpush1.msra.mxu0 0.0
  %3142 = vmatprep.subr.mxu0 0.0
  %3143 = vmatpush1.msra.mxu0 0.0
  %3144 = vmatprep.subr.mxu0 0.0
  %3145 = vmatpush1.msra.mxu0 0.0
  %3146 = vmatprep.subr.mxu0 0.0
  %3147 = vmatpush1.msra.mxu0 0.0
  %3148 = vmatprep.subr.mxu0 0.0
  %3149 = vmatpush1.msra.mxu0 0.0
  %3150 = vmatprep.subr.mxu0 0.0
  %3151 = vmatpush1.msra.mxu0 0.0
  %3152 = vmatprep.subr.mxu0 0.0
  %3153 = vmatpush1.msra.mxu0 0.0
  %3154 = vmatprep.subr.mxu0 0.0
  %3155 = vmatpush1.msra.mxu0 0.0
  %3156 = vmatprep.subr.mxu0 0.0
  %3157 = vmatpush1.msra.mxu0 0.0
  %3158 = vmatprep.subr.mxu0 0.0
  %3159 = vmatpush1.msra.mxu0 0.0
  %3160 = vmatprep.subr.mxu0 0.0
  %3161 = vmatpush1.msra.mxu0 0.0
  %3162 = vmatprep.subr.mxu0 0.0
  %3163 = vmatpush1.msra.mxu0 0.0
  %3164 = vmatprep.subr.mxu0 0.0
  %3165 = vmatpush1.msra.mxu0 %v3129
  %3166 = vmatprep.subr.mxu0 0.0
  %3167 = vmatpush2.msra.mxu0 0.0
  %3168 = vmatprep.subr.mxu0 0.0
  %3169 = vmatpush2.msra.mxu0 0.0
  %3170 = vmatprep.subr.mxu0 0.0
  %3171 = vmatpush2.msra.mxu0 0.0
  %3172 = vmatprep.subr.mxu0 0.0
  %3173 = vmatpush2.msra.mxu0 0.0
  %3174 = vmatprep.subr.mxu0 0.0
  %3175 = vmatpush2.msra.mxu0 0.0
  %3176 = vmatprep.subr.mxu0 0.0
  %3177 = vmatpush2.msra.mxu0 0.0
  %3178 = vmatprep.subr.mxu0 0.0
  %3179 = vmatpush2.msra.mxu0 0.0
  %3180 = vmatprep.subr.mxu0 0.0
  %3181 = vmatpush2.msra.mxu0 0.0
  %3182 = vmatprep.subr.mxu0 0.0
  %3183 = vmatpush2.msra.mxu0 0.0
  %3184 = vmatprep.subr.mxu0 0.0
  %3185 = vmatpush2.msra.mxu0 0.0
  %3186 = vmatprep.subr.mxu0 0.0
  %3187 = vmatpush2.msra.mxu0 0.0
  %3188 = vmatprep.subr.mxu0 0.0
  %3189 = vmatpush2.msra.mxu0 0.0
  %3190 = vmatprep.subr.mxu0 0.0
  %3191 = vmatpush2.msra.mxu0 0.0
  %3192 = vmatprep.subr.mxu0 0.0
  %3193 = vmatpush2.msra.mxu0 0.0
  %3194 = vmatprep.subr.mxu0 0.0
  %3195 = vmatpush2.msra.mxu0 0.0
  %3196 = vmatprep.subr.mxu0 0.0
  %3197 = vmatpush2.msra.mxu0 0.0
  %3198 = vmatprep.mubr.f32.mxu0 0.0
  %3199 = vmatmul.mubr.f32.gmra.mxu0 %v3132
  %v3200 = vpop.f32.mrf.mxu0
  %v3201 = vadd.f32 0.0, %v3200
  %v3202 = vpop.f32.mrf.mxu0
  %3203 = vdwg.mxu0
  %3205 = vrot.lane.b32.xlu0 %v3201, 32
  %v3206 = vpop.permute.xlu0 %3205
  %3208 = vst.msk [vmem:[#allocation3] sm:$0xff] %vm1214, %v3206
  %3209 = vrot.lane.b32.xlu0 %v2701, 80
  %v3210 = vpop.permute.xlu0 %3209
  %3211 = vrot.lane.b32.xlu0 %v2691, 16
  %v3212 = vpop.permute.xlu0 %3211
  %v3213 = vsel %vm708, %v3210, 0
  %v3215 = vsel %vm708, %v3212, 0
  %3217 = vmatprep.subr.mxu0 0.0
  %3218 = vmatpush1.xpose.msra.mxu0 0.0
  %3219 = vmatprep.subr.mxu0 0.0
  %3220 = vmatpush1.xpose.msra.mxu0 0.0
  %3221 = vmatprep.subr.mxu0 0.0
  %3222 = vmatpush1.xpose.msra.mxu0 0.0
  %3223 = vmatprep.subr.mxu0 0.0
  %3224 = vmatpush1.xpose.msra.mxu0 0.0
  %3225 = vmatprep.subr.mxu0 0.0
  %3226 = vmatpush1.xpose.msra.mxu0 0.0
  %3227 = vmatprep.subr.mxu0 0.0
  %3228 = vmatpush1.xpose.msra.mxu0 0.0
  %3229 = vmatprep.subr.mxu0 0.0
  %3230 = vmatpush1.xpose.msra.mxu0 0.0
  %3231 = vmatprep.subr.mxu0 0.0
  %3232 = vmatpush1.xpose.msra.mxu0 0.0
  %3233 = vmatprep.subr.mxu0 0.0
  %3234 = vmatpush1.xpose.msra.mxu0 0.0
  %3235 = vmatprep.subr.mxu0 0.0
  %3236 = vmatpush1.xpose.msra.mxu0 0.0
  %3237 = vmatprep.subr.mxu0 0.0
  %3238 = vmatpush1.xpose.msra.mxu0 0.0
  %3239 = vmatprep.subr.mxu0 0.0
  %3240 = vmatpush1.xpose.msra.mxu0 0.0
  %3241 = vmatprep.subr.mxu0 0.0
  %3242 = vmatpush1.xpose.msra.mxu0 0.0
  %3243 = vmatprep.subr.mxu0 0.0
  %3244 = vmatpush1.xpose.msra.mxu0 0.0
  %3245 = vmatprep.subr.mxu0 0.0
  %3246 = vmatpush1.xpose.msra.mxu0 0.0
  %3247 = vmatprep.subr.mxu0 0.0
  %3248 = vmatpush1.xpose.msra.mxu0 %v3215
  %3249 = vmatprep.subr.mxu0 0.0
  %3250 = vmatpush2.xpose.msra.mxu0 0.0
  %3251 = vmatprep.subr.mxu0 0.0
  %3252 = vmatpush2.xpose.msra.mxu0 0.0
  %3253 = vmatprep.subr.mxu0 0.0
  %3254 = vmatpush2.xpose.msra.mxu0 0.0
  %3255 = vmatprep.subr.mxu0 0.0
  %3256 = vmatpush2.xpose.msra.mxu0 0.0
  %3257 = vmatprep.subr.mxu0 0.0
  %3258 = vmatpush2.xpose.msra.mxu0 0.0
  %3259 = vmatprep.subr.mxu0 0.0
  %3260 = vmatpush2.xpose.msra.mxu0 0.0
  %3261 = vmatprep.subr.mxu0 0.0
  %3262 = vmatpush2.xpose.msra.mxu0 0.0
  %3263 = vmatprep.subr.mxu0 0.0
  %3264 = vmatpush2.xpose.msra.mxu0 0.0
  %3265 = vmatprep.subr.mxu0 0.0
  %3266 = vmatpush2.xpose.msra.mxu0 0.0
  %3267 = vmatprep.subr.mxu0 0.0
  %3268 = vmatpush2.xpose.msra.mxu0 0.0
  %3269 = vmatprep.subr.mxu0 0.0
  %3270 = vmatpush2.xpose.msra.mxu0 0.0
  %3271 = vmatprep.subr.mxu0 0.0
  %3272 = vmatpush2.xpose.msra.mxu0 0.0
  %3273 = vmatprep.subr.mxu0 0.0
  %3274 = vmatpush2.xpose.msra.mxu0 0.0
  %3275 = vmatprep.subr.mxu0 0.0
  %3276 = vmatpush2.xpose.msra.mxu0 0.0
  %3277 = vmatprep.subr.mxu0 0.0
  %3278 = vmatpush2.xpose.msra.mxu0 0.0
  %3279 = vmatprep.subr.mxu0 0.0
  %3280 = vmatpush2.xpose.msra.mxu0 0.0
  %3281 = vmatprep.mubr.f32.mxu0 0.0
  %3282 = vmatmul.mubr.f32.gmra.mxu0 %v3213
  %v3283 = vpop.f32.mrf.mxu0
  %v3284 = vadd.f32 0.0, %v3283
  %v3285 = vpop.f32.mrf.mxu0
  %3286 = vdwg.mxu0
  %v3287 = vsel %vm485, %v3284, -1e+30
  %v3288 = vsel %vm785, %v3287, -inf
  %3289 = vmax.xlane.f32.xlu0 %v3288
  %v3290 = vpop.xlane.xlu0 %3289
  %v3291 = vsub.f32 %v3287, %v3290
  %v3292 = vmul.f32 %v3291, 1.442695
  %v3293 = vpow.pop %v3292
  %v3294 = vsel %vm785, %v3293, 0.0
  %3295 = vadd.xlane.f32.xlu0 %v3294
  %v3296 = vpop.xlane.xlu0 %3295
  %v3297 = vrcp.pop %v3296
  %v3298 = vmul.f32 %v3293, %v3297
  %3299 = vrot.lane.b32.xlu0 %v2693, 80
  %v3300 = vpop.permute.xlu0 %3299
  %v3303 = vsel %vm785, %v3298, 0
  %3305 = vmatprep.subr.mxu0 0.0
  %3306 = vmatpush1.msra.mxu0 0.0
  %3307 = vmatprep.subr.mxu0 0.0
  %3308 = vmatpush1.msra.mxu0 0.0
  %3309 = vmatprep.subr.mxu0 0.0
  %3310 = vmatpush1.msra.mxu0 0.0
  %3311 = vmatprep.subr.mxu0 0.0
  %3312 = vmatpush1.msra.mxu0 0.0
  %3313 = vmatprep.subr.mxu0 0.0
  %3314 = vmatpush1.msra.mxu0 0.0
  %3315 = vmatprep.subr.mxu0 0.0
  %3316 = vmatpush1.msra.mxu0 0.0
  %3317 = vmatprep.subr.mxu0 0.0
  %3318 = vmatpush1.msra.mxu0 0.0
  %3319 = vmatprep.subr.mxu0 0.0
  %3320 = vmatpush1.msra.mxu0 0.0
  %3321 = vmatprep.subr.mxu0 0.0
  %3322 = vmatpush1.msra.mxu0 0.0
  %3323 = vmatprep.subr.mxu0 0.0
  %3324 = vmatpush1.msra.mxu0 0.0
  %3325 = vmatprep.subr.mxu0 0.0
  %3326 = vmatpush1.msra.mxu0 0.0
  %3327 = vmatprep.subr.mxu0 0.0
  %3328 = vmatpush1.msra.mxu0 0.0
  %3329 = vmatprep.subr.mxu0 0.0
  %3330 = vmatpush1.msra.mxu0 0.0
  %3331 = vmatprep.subr.mxu0 0.0
  %3332 = vmatpush1.msra.mxu0 0.0
  %3333 = vmatprep.subr.mxu0 0.0
  %3334 = vmatpush1.msra.mxu0 0.0
  %3335 = vmatprep.subr.mxu0 0.0
  %3336 = vmatpush1.msra.mxu0 %v3300
  %3337 = vmatprep.subr.mxu0 0.0
  %3338 = vmatpush2.msra.mxu0 0.0
  %3339 = vmatprep.subr.mxu0 0.0
  %3340 = vmatpush2.msra.mxu0 0.0
  %3341 = vmatprep.subr.mxu0 0.0
  %3342 = vmatpush2.msra.mxu0 0.0
  %3343 = vmatprep.subr.mxu0 0.0
  %3344 = vmatpush2.msra.mxu0 0.0
  %3345 = vmatprep.subr.mxu0 0.0
  %3346 = vmatpush2.msra.mxu0 0.0
  %3347 = vmatprep.subr.mxu0 0.0
  %3348 = vmatpush2.msra.mxu0 0.0
  %3349 = vmatprep.subr.mxu0 0.0
  %3350 = vmatpush2.msra.mxu0 0.0
  %3351 = vmatprep.subr.mxu0 0.0
  %3352 = vmatpush2.msra.mxu0 0.0
  %3353 = vmatprep.subr.mxu0 0.0
  %3354 = vmatpush2.msra.mxu0 0.0
  %3355 = vmatprep.subr.mxu0 0.0
  %3356 = vmatpush2.msra.mxu0 0.0
  %3357 = vmatprep.subr.mxu0 0.0
  %3358 = vmatpush2.msra.mxu0 0.0
  %3359 = vmatprep.subr.mxu0 0.0
  %3360 = vmatpush2.msra.mxu0 0.0
  %3361 = vmatprep.subr.mxu0 0.0
  %3362 = vmatpush2.msra.mxu0 0.0
  %3363 = vmatprep.subr.mxu0 0.0
  %3364 = vmatpush2.msra.mxu0 0.0
  %3365 = vmatprep.subr.mxu0 0.0
  %3366 = vmatpush2.msra.mxu0 0.0
  %3367 = vmatprep.subr.mxu0 0.0
  %3368 = vmatpush2.msra.mxu0 0.0
  %3369 = vmatprep.mubr.f32.mxu0 0.0
  %3370 = vmatmul.mubr.f32.gmra.mxu0 %v3303
  %v3371 = vpop.f32.mrf.mxu0
  %v3372 = vadd.f32 0.0, %v3371
  %v3373 = vpop.f32.mrf.mxu0
  %3374 = vdwg.mxu0
  %3376 = vrot.lane.b32.xlu0 %v3372, 48
  %v3377 = vpop.permute.xlu0 %3376
  %3379 = vst.msk [vmem:[#allocation3] sm:$0xff] %vm1386, %v3377
  %v3380 = vmul.f32 %v2697, 0.25
  %3382 = vrot.lane.b32.xlu0 %v2697, 64
  %v3383 = vpop.permute.xlu0 %3382
  %v3385 = vsel %vm708, %v3380, 0
  %v3387 = vsel %vm708, %v3383, 0
  %3389 = vmatprep.subr.mxu0 0.0
  %3390 = vmatpush1.xpose.msra.mxu0 0.0
  %3391 = vmatprep.subr.mxu0 0.0
  %3392 = vmatpush1.xpose.msra.mxu0 0.0
  %3393 = vmatprep.subr.mxu0 0.0
  %3394 = vmatpush1.xpose.msra.mxu0 0.0
  %3395 = vmatprep.subr.mxu0 0.0
  %3396 = vmatpush1.xpose.msra.mxu0 0.0
  %3397 = vmatprep.subr.mxu0 0.0
  %3398 = vmatpush1.xpose.msra.mxu0 0.0
  %3399 = vmatprep.subr.mxu0 0.0
  %3400 = vmatpush1.xpose.msra.mxu0 0.0
  %3401 = vmatprep.subr.mxu0 0.0
  %3402 = vmatpush1.xpose.msra.mxu0 0.0
  %3403 = vmatprep.subr.mxu0 0.0
  %3404 = vmatpush1.xpose.msra.mxu0 0.0
  %3405 = vmatprep.subr.mxu0 0.0
  %3406 = vmatpush1.xpose.msra.mxu0 0.0
  %3407 = vmatprep.subr.mxu0 0.0
  %3408 = vmatpush1.xpose.msra.mxu0 0.0
  %3409 = vmatprep.subr.mxu0 0.0
  %3410 = vmatpush1.xpose.msra.mxu0 0.0
  %3411 = vmatprep.subr.mxu0 0.0
  %3412 = vmatpush1.xpose.msra.mxu0 0.0
  %3413 = vmatprep.subr.mxu0 0.0
  %3414 = vmatpush1.xpose.msra.mxu0 0.0
  %3415 = vmatprep.subr.mxu0 0.0
  %3416 = vmatpush1.xpose.msra.mxu0 0.0
  %3417 = vmatprep.subr.mxu0 0.0
  %3418 = vmatpush1.xpose.msra.mxu0 0.0
  %3419 = vmatprep.subr.mxu0 0.0
  %3420 = vmatpush1.xpose.msra.mxu0 %v3387
  %3421 = vmatprep.subr.mxu0 0.0
  %3422 = vmatpush2.xpose.msra.mxu0 0.0
  %3423 = vmatprep.subr.mxu0 0.0
  %3424 = vmatpush2.xpose.msra.mxu0 0.0
  %3425 = vmatprep.subr.mxu0 0.0
  %3426 = vmatpush2.xpose.msra.mxu0 0.0
  %3427 = vmatprep.subr.mxu0 0.0
  %3428 = vmatpush2.xpose.msra.mxu0 0.0
  %3429 = vmatprep.subr.mxu0 0.0
  %3430 = vmatpush2.xpose.msra.mxu0 0.0
  %3431 = vmatprep.subr.mxu0 0.0
  %3432 = vmatpush2.xpose.msra.mxu0 0.0
  %3433 = vmatprep.subr.mxu0 0.0
  %3434 = vmatpush2.xpose.msra.mxu0 0.0
  %3435 = vmatprep.subr.mxu0 0.0
  %3436 = vmatpush2.xpose.msra.mxu0 0.0
  %3437 = vmatprep.subr.mxu0 0.0
  %3438 = vmatpush2.xpose.msra.mxu0 0.0
  %3439 = vmatprep.subr.mxu0 0.0
  %3440 = vmatpush2.xpose.msra.mxu0 0.0
  %3441 = vmatprep.subr.mxu0 0.0
  %3442 = vmatpush2.xpose.msra.mxu0 0.0
  %3443 = vmatprep.subr.mxu0 0.0
  %3444 = vmatpush2.xpose.msra.mxu0 0.0
  %3445 = vmatprep.subr.mxu0 0.0
  %3446 = vmatpush2.xpose.msra.mxu0 0.0
  %3447 = vmatprep.subr.mxu0 0.0
  %3448 = vmatpush2.xpose.msra.mxu0 0.0
  %3449 = vmatprep.subr.mxu0 0.0
  %3450 = vmatpush2.xpose.msra.mxu0 0.0
  %3451 = vmatprep.subr.mxu0 0.0
  %3452 = vmatpush2.xpose.msra.mxu0 0.0
  %3453 = vmatprep.mubr.f32.mxu0 0.0
  %3454 = vmatmul.mubr.f32.gmra.mxu0 %v3385
  %v3455 = vpop.f32.mrf.mxu0
  %v3456 = vadd.f32 0.0, %v3455
  %v3457 = vpop.f32.mrf.mxu0
  %3458 = vdwg.mxu0
  %v3459 = vsel %vm485, %v3456, -1e+30
  %v3460 = vsel %vm785, %v3459, -inf
  %3461 = vmax.xlane.f32.xlu0 %v3460
  %v3462 = vpop.xlane.xlu0 %3461
  %v3463 = vsub.f32 %v3459, %v3462
  %v3464 = vmul.f32 %v3463, 1.442695
  %v3465 = vpow.pop %v3464
  %v3466 = vsel %vm785, %v3465, 0.0
  %3467 = vadd.xlane.f32.xlu0 %v3466
  %v3468 = vpop.xlane.xlu0 %3467
  %v3469 = vrcp.pop %v3468
  %v3470 = vmul.f32 %v3465, %v3469
  %v3472 = vsel %vm785, %v3470, 0
  %3474 = vmatprep.subr.mxu0 0.0
  %3475 = vmatpush1.msra.mxu0 0.0
  %3476 = vmatprep.subr.mxu0 0.0
  %3477 = vmatpush1.msra.mxu0 0.0
  %3478 = vmatprep.subr.mxu0 0.0
  %3479 = vmatpush1.msra.mxu0 0.0
  %3480 = vmatprep.subr.mxu0 0.0
  %3481 = vmatpush1.msra.mxu0 0.0
  %3482 = vmatprep.subr.mxu0 0.0
  %3483 = vmatpush1.msra.mxu0 0.0
  %3484 = vmatprep.subr.mxu0 0.0
  %3485 = vmatpush1.msra.mxu0 0.0
  %3486 = vmatprep.subr.mxu0 0.0
  %3487 = vmatpush1.msra.mxu0 0.0
  %3488 = vmatprep.subr.mxu0 0.0
  %3489 = vmatpush1.msra.mxu0 0.0
  %3490 = vmatprep.subr.mxu0 0.0
  %3491 = vmatpush1.msra.mxu0 0.0
  %3492 = vmatprep.subr.mxu0 0.0
  %3493 = vmatpush1.msra.mxu0 0.0
  %3494 = vmatprep.subr.mxu0 0.0
  %3495 = vmatpush1.msra.mxu0 0.0
  %3496 = vmatprep.subr.mxu0 0.0
  %3497 = vmatpush1.msra.mxu0 0.0
  %3498 = vmatprep.subr.mxu0 0.0
  %3499 = vmatpush1.msra.mxu0 0.0
  %3500 = vmatprep.subr.mxu0 0.0
  %3501 = vmatpush1.msra.mxu0 0.0
  %3502 = vmatprep.subr.mxu0 0.0
  %3503 = vmatpush1.msra.mxu0 0.0
  %3504 = vmatprep.subr.mxu0 0.0
  %3505 = vmatpush1.msra.mxu0 %v2699
  %3506 = vmatprep.subr.mxu0 0.0
  %3507 = vmatpush2.msra.mxu0 0.0
  %3508 = vmatprep.subr.mxu0 0.0
  %3509 = vmatpush2.msra.mxu0 0.0
  %3510 = vmatprep.subr.mxu0 0.0
  %3511 = vmatpush2.msra.mxu0 0.0
  %3512 = vmatprep.subr.mxu0 0.0
  %3513 = vmatpush2.msra.mxu0 0.0
  %3514 = vmatprep.subr.mxu0 0.0
  %3515 = vmatpush2.msra.mxu0 0.0
  %3516 = vmatprep.subr.mxu0 0.0
  %3517 = vmatpush2.msra.mxu0 0.0
  %3518 = vmatprep.subr.mxu0 0.0
  %3519 = vmatpush2.msra.mxu0 0.0
  %3520 = vmatprep.subr.mxu0 0.0
  %3521 = vmatpush2.msra.mxu0 0.0
  %3522 = vmatprep.subr.mxu0 0.0
  %3523 = vmatpush2.msra.mxu0 0.0
  %3524 = vmatprep.subr.mxu0 0.0
  %3525 = vmatpush2.msra.mxu0 0.0
  %3526 = vmatprep.subr.mxu0 0.0
  %3527 = vmatpush2.msra.mxu0 0.0
  %3528 = vmatprep.subr.mxu0 0.0
  %3529 = vmatpush2.msra.mxu0 0.0
  %3530 = vmatprep.subr.mxu0 0.0
  %3531 = vmatpush2.msra.mxu0 0.0
  %3532 = vmatprep.subr.mxu0 0.0
  %3533 = vmatpush2.msra.mxu0 0.0
  %3534 = vmatprep.subr.mxu0 0.0
  %3535 = vmatpush2.msra.mxu0 0.0
  %3536 = vmatprep.subr.mxu0 0.0
  %3537 = vmatpush2.msra.mxu0 0.0
  %3538 = vmatprep.mubr.f32.mxu0 0.0
  %3539 = vmatmul.mubr.f32.gmra.mxu0 %v3472
  %v3540 = vpop.f32.mrf.mxu0
  %v3541 = vadd.f32 0.0, %v3540
  %v3542 = vpop.f32.mrf.mxu0
  %3543 = vdwg.mxu0
  %3544 = vst.msk [vmem:[#allocation3 + $0x8] sm:$0xff] %vm708, %v3541
  %3545 = vrot.lane.b32.xlu0 %v3380, 112
  %v3546 = vpop.permute.xlu0 %3545
  %3547 = vrot.lane.b32.xlu0 %v2697, 48
  %v3548 = vpop.permute.xlu0 %3547
  %v3549 = vsel %vm708, %v3546, 0
  %v3551 = vsel %vm708, %v3548, 0
  %3553 = vmatprep.subr.mxu0 0.0
  %3554 = vmatpush1.xpose.msra.mxu0 0.0
  %3555 = vmatprep.subr.mxu0 0.0
  %3556 = vmatpush1.xpose.msra.mxu0 0.0
  %3557 = vmatprep.subr.mxu0 0.0
  %3558 = vmatpush1.xpose.msra.mxu0 0.0
  %3559 = vmatprep.subr.mxu0 0.0
  %3560 = vmatpush1.xpose.msra.mxu0 0.0
  %3561 = vmatprep.subr.mxu0 0.0
  %3562 = vmatpush1.xpose.msra.mxu0 0.0
  %3563 = vmatprep.subr.mxu0 0.0
  %3564 = vmatpush1.xpose.msra.mxu0 0.0
  %3565 = vmatprep.subr.mxu0 0.0
  %3566 = vmatpush1.xpose.msra.mxu0 0.0
  %3567 = vmatprep.subr.mxu0 0.0
  %3568 = vmatpush1.xpose.msra.mxu0 0.0
  %3569 = vmatprep.subr.mxu0 0.0
  %3570 = vmatpush1.xpose.msra.mxu0 0.0
  %3571 = vmatprep.subr.mxu0 0.0
  %3572 = vmatpush1.xpose.msra.mxu0 0.0
  %3573 = vmatprep.subr.mxu0 0.0
  %3574 = vmatpush1.xpose.msra.mxu0 0.0
  %3575 = vmatprep.subr.mxu0 0.0
  %3576 = vmatpush1.xpose.msra.mxu0 0.0
  %3577 = vmatprep.subr.mxu0 0.0
  %3578 = vmatpush1.xpose.msra.mxu0 0.0
  %3579 = vmatprep.subr.mxu0 0.0
  %3580 = vmatpush1.xpose.msra.mxu0 0.0
  %3581 = vmatprep.subr.mxu0 0.0
  %3582 = vmatpush1.xpose.msra.mxu0 0.0
  %3583 = vmatprep.subr.mxu0 0.0
  %3584 = vmatpush1.xpose.msra.mxu0 %v3551
  %3585 = vmatprep.subr.mxu0 0.0
  %3586 = vmatpush2.xpose.msra.mxu0 0.0
  %3587 = vmatprep.subr.mxu0 0.0
  %3588 = vmatpush2.xpose.msra.mxu0 0.0
  %3589 = vmatprep.subr.mxu0 0.0
  %3590 = vmatpush2.xpose.msra.mxu0 0.0
  %3591 = vmatprep.subr.mxu0 0.0
  %3592 = vmatpush2.xpose.msra.mxu0 0.0
  %3593 = vmatprep.subr.mxu0 0.0
  %3594 = vmatpush2.xpose.msra.mxu0 0.0
  %3595 = vmatprep.subr.mxu0 0.0
  %3596 = vmatpush2.xpose.msra.mxu0 0.0
  %3597 = vmatprep.subr.mxu0 0.0
  %3598 = vmatpush2.xpose.msra.mxu0 0.0
  %3599 = vmatprep.subr.mxu0 0.0
  %3600 = vmatpush2.xpose.msra.mxu0 0.0
  %3601 = vmatprep.subr.mxu0 0.0
  %3602 = vmatpush2.xpose.msra.mxu0 0.0
  %3603 = vmatprep.subr.mxu0 0.0
  %3604 = vmatpush2.xpose.msra.mxu0 0.0
  %3605 = vmatprep.subr.mxu0 0.0
  %3606 = vmatpush2.xpose.msra.mxu0 0.0
  %3607 = vmatprep.subr.mxu0 0.0
  %3608 = vmatpush2.xpose.msra.mxu0 0.0
  %3609 = vmatprep.subr.mxu0 0.0
  %3610 = vmatpush2.xpose.msra.mxu0 0.0
  %3611 = vmatprep.subr.mxu0 0.0
  %3612 = vmatpush2.xpose.msra.mxu0 0.0
  %3613 = vmatprep.subr.mxu0 0.0
  %3614 = vmatpush2.xpose.msra.mxu0 0.0
  %3615 = vmatprep.subr.mxu0 0.0
  %3616 = vmatpush2.xpose.msra.mxu0 0.0
  %3617 = vmatprep.mubr.f32.mxu0 0.0
  %3618 = vmatmul.mubr.f32.gmra.mxu0 %v3549
  %v3619 = vpop.f32.mrf.mxu0
  %v3620 = vadd.f32 0.0, %v3619
  %v3621 = vpop.f32.mrf.mxu0
  %3622 = vdwg.mxu0
  %v3623 = vsel %vm485, %v3620, -1e+30
  %v3624 = vsel %vm785, %v3623, -inf
  %3625 = vmax.xlane.f32.xlu0 %v3624
  %v3626 = vpop.xlane.xlu0 %3625
  %v3627 = vsub.f32 %v3623, %v3626
  %v3628 = vmul.f32 %v3627, 1.442695
  %v3629 = vpow.pop %v3628
  %v3630 = vsel %vm785, %v3629, 0.0
  %3631 = vadd.xlane.f32.xlu0 %v3630
  %v3632 = vpop.xlane.xlu0 %3631
  %v3633 = vrcp.pop %v3632
  %v3634 = vmul.f32 %v3629, %v3633
  %3636 = vrot.lane.b32.xlu0 %v2699, 112
  %v3637 = vpop.permute.xlu0 %3636
  %v3640 = vsel %vm785, %v3634, 0
  %3642 = vmatprep.subr.mxu0 0.0
  %3643 = vmatpush1.msra.mxu0 0.0
  %3644 = vmatprep.subr.mxu0 0.0
  %3645 = vmatpush1.msra.mxu0 0.0
  %3646 = vmatprep.subr.mxu0 0.0
  %3647 = vmatpush1.msra.mxu0 0.0
  %3648 = vmatprep.subr.mxu0 0.0
  %3649 = vmatpush1.msra.mxu0 0.0
  %3650 = vmatprep.subr.mxu0 0.0
  %3651 = vmatpush1.msra.mxu0 0.0
  %3652 = vmatprep.subr.mxu0 0.0
  %3653 = vmatpush1.msra.mxu0 0.0
  %3654 = vmatprep.subr.mxu0 0.0
  %3655 = vmatpush1.msra.mxu0 0.0
  %3656 = vmatprep.subr.mxu0 0.0
  %3657 = vmatpush1.msra.mxu0 0.0
  %3658 = vmatprep.subr.mxu0 0.0
  %3659 = vmatpush1.msra.mxu0 0.0
  %3660 = vmatprep.subr.mxu0 0.0
  %3661 = vmatpush1.msra.mxu0 0.0
  %3662 = vmatprep.subr.mxu0 0.0
  %3663 = vmatpush1.msra.mxu0 0.0
  %3664 = vmatprep.subr.mxu0 0.0
  %3665 = vmatpush1.msra.mxu0 0.0
  %3666 = vmatprep.subr.mxu0 0.0
  %3667 = vmatpush1.msra.mxu0 0.0
  %3668 = vmatprep.subr.mxu0 0.0
  %3669 = vmatpush1.msra.mxu0 0.0
  %3670 = vmatprep.subr.mxu0 0.0
  %3671 = vmatpush1.msra.mxu0 0.0
  %3672 = vmatprep.subr.mxu0 0.0
  %3673 = vmatpush1.msra.mxu0 %v3637
  %3674 = vmatprep.subr.mxu0 0.0
  %3675 = vmatpush2.msra.mxu0 0.0
  %3676 = vmatprep.subr.mxu0 0.0
  %3677 = vmatpush2.msra.mxu0 0.0
  %3678 = vmatprep.subr.mxu0 0.0
  %3679 = vmatpush2.msra.mxu0 0.0
  %3680 = vmatprep.subr.mxu0 0.0
  %3681 = vmatpush2.msra.mxu0 0.0
  %3682 = vmatprep.subr.mxu0 0.0
  %3683 = vmatpush2.msra.mxu0 0.0
  %3684 = vmatprep.subr.mxu0 0.0
  %3685 = vmatpush2.msra.mxu0 0.0
  %3686 = vmatprep.subr.mxu0 0.0
  %3687 = vmatpush2.msra.mxu0 0.0
  %3688 = vmatprep.subr.mxu0 0.0
  %3689 = vmatpush2.msra.mxu0 0.0
  %3690 = vmatprep.subr.mxu0 0.0
  %3691 = vmatpush2.msra.mxu0 0.0
  %3692 = vmatprep.subr.mxu0 0.0
  %3693 = vmatpush2.msra.mxu0 0.0
  %3694 = vmatprep.subr.mxu0 0.0
  %3695 = vmatpush2.msra.mxu0 0.0
  %3696 = vmatprep.subr.mxu0 0.0
  %3697 = vmatpush2.msra.mxu0 0.0
  %3698 = vmatprep.subr.mxu0 0.0
  %3699 = vmatpush2.msra.mxu0 0.0
  %3700 = vmatprep.subr.mxu0 0.0
  %3701 = vmatpush2.msra.mxu0 0.0
  %3702 = vmatprep.subr.mxu0 0.0
  %3703 = vmatpush2.msra.mxu0 0.0
  %3704 = vmatprep.subr.mxu0 0.0
  %3705 = vmatpush2.msra.mxu0 0.0
  %3706 = vmatprep.mubr.f32.mxu0 0.0
  %3707 = vmatmul.mubr.f32.gmra.mxu0 %v3640
  %v3708 = vpop.f32.mrf.mxu0
  %v3709 = vadd.f32 0.0, %v3708
  %v3710 = vpop.f32.mrf.mxu0
  %3711 = vdwg.mxu0
  %3713 = vrot.lane.b32.xlu0 %v3709, 16
  %v3714 = vpop.permute.xlu0 %3713
  %3716 = vst.msk [vmem:[#allocation3 + $0x8] sm:$0xff] %vm1042, %v3714
  %3717 = vrot.lane.b32.xlu0 %v3380, 96
  %v3718 = vpop.permute.xlu0 %3717
  %3719 = vrot.lane.b32.xlu0 %v2697, 32
  %v3720 = vpop.permute.xlu0 %3719
  %v3721 = vsel %vm708, %v3718, 0
  %v3723 = vsel %vm708, %v3720, 0
  %3725 = vmatprep.subr.mxu0 0.0
  %3726 = vmatpush1.xpose.msra.mxu0 0.0
  %3727 = vmatprep.subr.mxu0 0.0
  %3728 = vmatpush1.xpose.msra.mxu0 0.0
  %3729 = vmatprep.subr.mxu0 0.0
  %3730 = vmatpush1.xpose.msra.mxu0 0.0
  %3731 = vmatprep.subr.mxu0 0.0
  %3732 = vmatpush1.xpose.msra.mxu0 0.0
  %3733 = vmatprep.subr.mxu0 0.0
  %3734 = vmatpush1.xpose.msra.mxu0 0.0
  %3735 = vmatprep.subr.mxu0 0.0
  %3736 = vmatpush1.xpose.msra.mxu0 0.0
  %3737 = vmatprep.subr.mxu0 0.0
  %3738 = vmatpush1.xpose.msra.mxu0 0.0
  %3739 = vmatprep.subr.mxu0 0.0
  %3740 = vmatpush1.xpose.msra.mxu0 0.0
  %3741 = vmatprep.subr.mxu0 0.0
  %3742 = vmatpush1.xpose.msra.mxu0 0.0
  %3743 = vmatprep.subr.mxu0 0.0
  %3744 = vmatpush1.xpose.msra.mxu0 0.0
  %3745 = vmatprep.subr.mxu0 0.0
  %3746 = vmatpush1.xpose.msra.mxu0 0.0
  %3747 = vmatprep.subr.mxu0 0.0
  %3748 = vmatpush1.xpose.msra.mxu0 0.0
  %3749 = vmatprep.subr.mxu0 0.0
  %3750 = vmatpush1.xpose.msra.mxu0 0.0
  %3751 = vmatprep.subr.mxu0 0.0
  %3752 = vmatpush1.xpose.msra.mxu0 0.0
  %3753 = vmatprep.subr.mxu0 0.0
  %3754 = vmatpush1.xpose.msra.mxu0 0.0
  %3755 = vmatprep.subr.mxu0 0.0
  %3756 = vmatpush1.xpose.msra.mxu0 %v3723
  %3757 = vmatprep.subr.mxu0 0.0
  %3758 = vmatpush2.xpose.msra.mxu0 0.0
  %3759 = vmatprep.subr.mxu0 0.0
  %3760 = vmatpush2.xpose.msra.mxu0 0.0
  %3761 = vmatprep.subr.mxu0 0.0
  %3762 = vmatpush2.xpose.msra.mxu0 0.0
  %3763 = vmatprep.subr.mxu0 0.0
  %3764 = vmatpush2.xpose.msra.mxu0 0.0
  %3765 = vmatprep.subr.mxu0 0.0
  %3766 = vmatpush2.xpose.msra.mxu0 0.0
  %3767 = vmatprep.subr.mxu0 0.0
  %3768 = vmatpush2.xpose.msra.mxu0 0.0
  %3769 = vmatprep.subr.mxu0 0.0
  %3770 = vmatpush2.xpose.msra.mxu0 0.0
  %3771 = vmatprep.subr.mxu0 0.0
  %3772 = vmatpush2.xpose.msra.mxu0 0.0
  %3773 = vmatprep.subr.mxu0 0.0
  %3774 = vmatpush2.xpose.msra.mxu0 0.0
  %3775 = vmatprep.subr.mxu0 0.0
  %3776 = vmatpush2.xpose.msra.mxu0 0.0
  %3777 = vmatprep.subr.mxu0 0.0
  %3778 = vmatpush2.xpose.msra.mxu0 0.0
  %3779 = vmatprep.subr.mxu0 0.0
  %3780 = vmatpush2.xpose.msra.mxu0 0.0
  %3781 = vmatprep.subr.mxu0 0.0
  %3782 = vmatpush2.xpose.msra.mxu0 0.0
  %3783 = vmatprep.subr.mxu0 0.0
  %3784 = vmatpush2.xpose.msra.mxu0 0.0
  %3785 = vmatprep.subr.mxu0 0.0
  %3786 = vmatpush2.xpose.msra.mxu0 0.0
  %3787 = vmatprep.subr.mxu0 0.0
  %3788 = vmatpush2.xpose.msra.mxu0 0.0
  %3789 = vmatprep.mubr.f32.mxu0 0.0
  %3790 = vmatmul.mubr.f32.gmra.mxu0 %v3721
  %v3791 = vpop.f32.mrf.mxu0
  %v3792 = vadd.f32 0.0, %v3791
  %v3793 = vpop.f32.mrf.mxu0
  %3794 = vdwg.mxu0
  %v3795 = vsel %vm485, %v3792, -1e+30
  %v3796 = vsel %vm785, %v3795, -inf
  %3797 = vmax.xlane.f32.xlu0 %v3796
  %v3798 = vpop.xlane.xlu0 %3797
  %v3799 = vsub.f32 %v3795, %v3798
  %v3800 = vmul.f32 %v3799, 1.442695
  %v3801 = vpow.pop %v3800
  %v3802 = vsel %vm785, %v3801, 0.0
  %3803 = vadd.xlane.f32.xlu0 %v3802
  %v3804 = vpop.xlane.xlu0 %3803
  %v3805 = vrcp.pop %v3804
  %v3806 = vmul.f32 %v3801, %v3805
  %3807 = vrot.lane.b32.xlu0 %v2699, 96
  %v3808 = vpop.permute.xlu0 %3807
  %v3811 = vsel %vm785, %v3806, 0
  %3813 = vmatprep.subr.mxu0 0.0
  %3814 = vmatpush1.msra.mxu0 0.0
  %3815 = vmatprep.subr.mxu0 0.0
  %3816 = vmatpush1.msra.mxu0 0.0
  %3817 = vmatprep.subr.mxu0 0.0
  %3818 = vmatpush1.msra.mxu0 0.0
  %3819 = vmatprep.subr.mxu0 0.0
  %3820 = vmatpush1.msra.mxu0 0.0
  %3821 = vmatprep.subr.mxu0 0.0
  %3822 = vmatpush1.msra.mxu0 0.0
  %3823 = vmatprep.subr.mxu0 0.0
  %3824 = vmatpush1.msra.mxu0 0.0
  %3825 = vmatprep.subr.mxu0 0.0
  %3826 = vmatpush1.msra.mxu0 0.0
  %3827 = vmatprep.subr.mxu0 0.0
  %3828 = vmatpush1.msra.mxu0 0.0
  %3829 = vmatprep.subr.mxu0 0.0
  %3830 = vmatpush1.msra.mxu0 0.0
  %3831 = vmatprep.subr.mxu0 0.0
  %3832 = vmatpush1.msra.mxu0 0.0
  %3833 = vmatprep.subr.mxu0 0.0
  %3834 = vmatpush1.msra.mxu0 0.0
  %3835 = vmatprep.subr.mxu0 0.0
  %3836 = vmatpush1.msra.mxu0 0.0
  %3837 = vmatprep.subr.mxu0 0.0
  %3838 = vmatpush1.msra.mxu0 0.0
  %3839 = vmatprep.subr.mxu0 0.0
  %3840 = vmatpush1.msra.mxu0 0.0
  %3841 = vmatprep.subr.mxu0 0.0
  %3842 = vmatpush1.msra.mxu0 0.0
  %3843 = vmatprep.subr.mxu0 0.0
  %3844 = vmatpush1.msra.mxu0 %v3808
  %3845 = vmatprep.subr.mxu0 0.0
  %3846 = vmatpush2.msra.mxu0 0.0
  %3847 = vmatprep.subr.mxu0 0.0
  %3848 = vmatpush2.msra.mxu0 0.0
  %3849 = vmatprep.subr.mxu0 0.0
  %3850 = vmatpush2.msra.mxu0 0.0
  %3851 = vmatprep.subr.mxu0 0.0
  %3852 = vmatpush2.msra.mxu0 0.0
  %3853 = vmatprep.subr.mxu0 0.0
  %3854 = vmatpush2.msra.mxu0 0.0
  %3855 = vmatprep.subr.mxu0 0.0
  %3856 = vmatpush2.msra.mxu0 0.0
  %3857 = vmatprep.subr.mxu0 0.0
  %3858 = vmatpush2.msra.mxu0 0.0
  %3859 = vmatprep.subr.mxu0 0.0
  %3860 = vmatpush2.msra.mxu0 0.0
  %3861 = vmatprep.subr.mxu0 0.0
  %3862 = vmatpush2.msra.mxu0 0.0
  %3863 = vmatprep.subr.mxu0 0.0
  %3864 = vmatpush2.msra.mxu0 0.0
  %3865 = vmatprep.subr.mxu0 0.0
  %3866 = vmatpush2.msra.mxu0 0.0
  %3867 = vmatprep.subr.mxu0 0.0
  %3868 = vmatpush2.msra.mxu0 0.0
  %3869 = vmatprep.subr.mxu0 0.0
  %3870 = vmatpush2.msra.mxu0 0.0
  %3871 = vmatprep.subr.mxu0 0.0
  %3872 = vmatpush2.msra.mxu0 0.0
  %3873 = vmatprep.subr.mxu0 0.0
  %3874 = vmatpush2.msra.mxu0 0.0
  %3875 = vmatprep.subr.mxu0 0.0
  %3876 = vmatpush2.msra.mxu0 0.0
  %3877 = vmatprep.mubr.f32.mxu0 0.0
  %3878 = vmatmul.mubr.f32.gmra.mxu0 %v3811
  %v3879 = vpop.f32.mrf.mxu0
  %v3880 = vadd.f32 0.0, %v3879
  %v3881 = vpop.f32.mrf.mxu0
  %3882 = vdwg.mxu0
  %3884 = vrot.lane.b32.xlu0 %v3880, 32
  %v3885 = vpop.permute.xlu0 %3884
  %3887 = vst.msk [vmem:[#allocation3 + $0x8] sm:$0xff] %vm1214, %v3885
  %3888 = vrot.lane.b32.xlu0 %v3380, 80
  %v3889 = vpop.permute.xlu0 %3888
  %3890 = vrot.lane.b32.xlu0 %v2697, 16
  %v3891 = vpop.permute.xlu0 %3890
  %v3892 = vsel %vm708, %v3889, 0
  %v3894 = vsel %vm708, %v3891, 0
  %3896 = vmatprep.subr.mxu0 0.0
  %3897 = vmatpush1.xpose.msra.mxu0 0.0
  %3898 = vmatprep.subr.mxu0 0.0
  %3899 = vmatpush1.xpose.msra.mxu0 0.0
  %3900 = vmatprep.subr.mxu0 0.0
  %3901 = vmatpush1.xpose.msra.mxu0 0.0
  %3902 = vmatprep.subr.mxu0 0.0
  %3903 = vmatpush1.xpose.msra.mxu0 0.0
  %3904 = vmatprep.subr.mxu0 0.0
  %3905 = vmatpush1.xpose.msra.mxu0 0.0
  %3906 = vmatprep.subr.mxu0 0.0
  %3907 = vmatpush1.xpose.msra.mxu0 0.0
  %3908 = vmatprep.subr.mxu0 0.0
  %3909 = vmatpush1.xpose.msra.mxu0 0.0
  %3910 = vmatprep.subr.mxu0 0.0
  %3911 = vmatpush1.xpose.msra.mxu0 0.0
  %3912 = vmatprep.subr.mxu0 0.0
  %3913 = vmatpush1.xpose.msra.mxu0 0.0
  %3914 = vmatprep.subr.mxu0 0.0
  %3915 = vmatpush1.xpose.msra.mxu0 0.0
  %3916 = vmatprep.subr.mxu0 0.0
  %3917 = vmatpush1.xpose.msra.mxu0 0.0
  %3918 = vmatprep.subr.mxu0 0.0
  %3919 = vmatpush1.xpose.msra.mxu0 0.0
  %3920 = vmatprep.subr.mxu0 0.0
  %3921 = vmatpush1.xpose.msra.mxu0 0.0
  %3922 = vmatprep.subr.mxu0 0.0
  %3923 = vmatpush1.xpose.msra.mxu0 0.0
  %3924 = vmatprep.subr.mxu0 0.0
  %3925 = vmatpush1.xpose.msra.mxu0 0.0
  %3926 = vmatprep.subr.mxu0 0.0
  %3927 = vmatpush1.xpose.msra.mxu0 %v3894
  %3928 = vmatprep.subr.mxu0 0.0
  %3929 = vmatpush2.xpose.msra.mxu0 0.0
  %3930 = vmatprep.subr.mxu0 0.0
  %3931 = vmatpush2.xpose.msra.mxu0 0.0
  %3932 = vmatprep.subr.mxu0 0.0
  %3933 = vmatpush2.xpose.msra.mxu0 0.0
  %3934 = vmatprep.subr.mxu0 0.0
  %3935 = vmatpush2.xpose.msra.mxu0 0.0
  %3936 = vmatprep.subr.mxu0 0.0
  %3937 = vmatpush2.xpose.msra.mxu0 0.0
  %3938 = vmatprep.subr.mxu0 0.0
  %3939 = vmatpush2.xpose.msra.mxu0 0.0
  %3940 = vmatprep.subr.mxu0 0.0
  %3941 = vmatpush2.xpose.msra.mxu0 0.0
  %3942 = vmatprep.subr.mxu0 0.0
  %3943 = vmatpush2.xpose.msra.mxu0 0.0
  %3944 = vmatprep.subr.mxu0 0.0
  %3945 = vmatpush2.xpose.msra.mxu0 0.0
  %3946 = vmatprep.subr.mxu0 0.0
  %3947 = vmatpush2.xpose.msra.mxu0 0.0
  %3948 = vmatprep.subr.mxu0 0.0
  %3949 = vmatpush2.xpose.msra.mxu0 0.0
  %3950 = vmatprep.subr.mxu0 0.0
  %3951 = vmatpush2.xpose.msra.mxu0 0.0
  %3952 = vmatprep.subr.mxu0 0.0
  %3953 = vmatpush2.xpose.msra.mxu0 0.0
  %3954 = vmatprep.subr.mxu0 0.0
  %3955 = vmatpush2.xpose.msra.mxu0 0.0
  %3956 = vmatprep.subr.mxu0 0.0
  %3957 = vmatpush2.xpose.msra.mxu0 0.0
  %3958 = vmatprep.subr.mxu0 0.0
  %3959 = vmatpush2.xpose.msra.mxu0 0.0
  %3960 = vmatprep.mubr.f32.mxu0 0.0
  %3961 = vmatmul.mubr.f32.gmra.mxu0 %v3892
  %v3962 = vpop.f32.mrf.mxu0
  %v3963 = vadd.f32 0.0, %v3962
  %v3964 = vpop.f32.mrf.mxu0
  %3965 = vdwg.mxu0
  %v3966 = vsel %vm485, %v3963, -1e+30
  %v3967 = vsel %vm785, %v3966, -inf
  %3968 = vmax.xlane.f32.xlu0 %v3967
  %v3969 = vpop.xlane.xlu0 %3968
  %v3970 = vsub.f32 %v3966, %v3969
  %v3971 = vmul.f32 %v3970, 1.442695
  %v3972 = vpow.pop %v3971
  %v3973 = vsel %vm785, %v3972, 0.0
  %3974 = vadd.xlane.f32.xlu0 %v3973
  %v3975 = vpop.xlane.xlu0 %3974
  %v3976 = vrcp.pop %v3975
  %v3977 = vmul.f32 %v3972, %v3976
  %3978 = vrot.lane.b32.xlu0 %v2699, 80
  %v3979 = vpop.permute.xlu0 %3978
  %v3982 = vsel %vm785, %v3977, 0
  %3984 = vmatprep.subr.mxu0 0.0
  %3985 = vmatpush1.msra.mxu0 0.0
  %3986 = vmatprep.subr.mxu0 0.0
  %3987 = vmatpush1.msra.mxu0 0.0
  %3988 = vmatprep.subr.mxu0 0.0
  %3989 = vmatpush1.msra.mxu0 0.0
  %3990 = vmatprep.subr.mxu0 0.0
  %3991 = vmatpush1.msra.mxu0 0.0
  %3992 = vmatprep.subr.mxu0 0.0
  %3993 = vmatpush1.msra.mxu0 0.0
  %3994 = vmatprep.subr.mxu0 0.0
  %3995 = vmatpush1.msra.mxu0 0.0
  %3996 = vmatprep.subr.mxu0 0.0
  %3997 = vmatpush1.msra.mxu0 0.0
  %3998 = vmatprep.subr.mxu0 0.0
  %3999 = vmatpush1.msra.mxu0 0.0
  %4000 = vmatprep.subr.mxu0 0.0
  %4001 = vmatpush1.msra.mxu0 0.0
  %4002 = vmatprep.subr.mxu0 0.0
  %4003 = vmatpush1.msra.mxu0 0.0
  %4004 = vmatprep.subr.mxu0 0.0
  %4005 = vmatpush1.msra.mxu0 0.0
  %4006 = vmatprep.subr.mxu0 0.0
  %4007 = vmatpush1.msra.mxu0 0.0
  %4008 = vmatprep.subr.mxu0 0.0
  %4009 = vmatpush1.msra.mxu0 0.0
  %4010 = vmatprep.subr.mxu0 0.0
  %4011 = vmatpush1.msra.mxu0 0.0
  %4012 = vmatprep.subr.mxu0 0.0
  %4013 = vmatpush1.msra.mxu0 0.0
  %4014 = vmatprep.subr.mxu0 0.0
  %4015 = vmatpush1.msra.mxu0 %v3979
  %4016 = vmatprep.subr.mxu0 0.0
  %4017 = vmatpush2.msra.mxu0 0.0
  %4018 = vmatprep.subr.mxu0 0.0
  %4019 = vmatpush2.msra.mxu0 0.0
  %4020 = vmatprep.subr.mxu0 0.0
  %4021 = vmatpush2.msra.mxu0 0.0
  %4022 = vmatprep.subr.mxu0 0.0
  %4023 = vmatpush2.msra.mxu0 0.0
  %4024 = vmatprep.subr.mxu0 0.0
  %4025 = vmatpush2.msra.mxu0 0.0
  %4026 = vmatprep.subr.mxu0 0.0
  %4027 = vmatpush2.msra.mxu0 0.0
  %4028 = vmatprep.subr.mxu0 0.0
  %4029 = vmatpush2.msra.mxu0 0.0
  %4030 = vmatprep.subr.mxu0 0.0
  %4031 = vmatpush2.msra.mxu0 0.0
  %4032 = vmatprep.subr.mxu0 0.0
  %4033 = vmatpush2.msra.mxu0 0.0
  %4034 = vmatprep.subr.mxu0 0.0
  %4035 = vmatpush2.msra.mxu0 0.0
  %4036 = vmatprep.subr.mxu0 0.0
  %4037 = vmatpush2.msra.mxu0 0.0
  %4038 = vmatprep.subr.mxu0 0.0
  %4039 = vmatpush2.msra.mxu0 0.0
  %4040 = vmatprep.subr.mxu0 0.0
  %4041 = vmatpush2.msra.mxu0 0.0
  %4042 = vmatprep.subr.mxu0 0.0
  %4043 = vmatpush2.msra.mxu0 0.0
  %4044 = vmatprep.subr.mxu0 0.0
  %4045 = vmatpush2.msra.mxu0 0.0
  %4046 = vmatprep.subr.mxu0 0.0
  %4047 = vmatpush2.msra.mxu0 0.0
  %4048 = vmatprep.mubr.f32.mxu0 0.0
  %4049 = vmatmul.mubr.f32.gmra.mxu0 %v3982
  %v4050 = vpop.f32.mrf.mxu0
  %v4051 = vadd.f32 0.0, %v4050
  %v4052 = vpop.f32.mrf.mxu0
  %4053 = vdwg.mxu0
  %4055 = vrot.lane.b32.xlu0 %v4051, 48
  %v4056 = vpop.permute.xlu0 %4055
  %4058 = vst.msk [vmem:[#allocation3 + $0x8] sm:$0xff] %vm1386, %v4056
  %v4059 = vld [vmem:[#allocation3] sm:$0xff]
  %v4060 = vld [vmem:[#allocation3 + $0x8] sm:$0xff]
  %v4062 = vlaneseq
  %v4063 = vshrl.u32 %v4062, 7
  %v4064 = vsub.s32 0, %v4063
  %v4065 = vrot.slane %v2512, %v4064
  %v4068 = vsel %vm566, %v4059, 0
  %v4071 = vsel %vm566, %v4060, 0
  %4073 = vmatprep.subr.mxu0 0.0
  %4074 = vmatpush1.msra.mxu0 0.0
  %4075 = vmatprep.subr.mxu0 0.0
  %4076 = vmatpush1.msra.mxu0 0.0
  %4077 = vmatprep.subr.mxu0 0.0
  %4078 = vmatpush1.msra.mxu0 0.0
  %4079 = vmatprep.subr.mxu0 0.0
  %4080 = vmatpush1.msra.mxu0 0.0
  %4081 = vmatprep.subr.mxu0 0.0
  %4082 = vmatpush1.msra.mxu0 0.0
  %4083 = vmatprep.subr.mxu0 0.0
  %4084 = vmatpush1.msra.mxu0 0.0
  %4085 = vmatprep.subr.mxu0 0.0
  %4086 = vmatpush1.msra.mxu0 0.0
  %4087 = vmatprep.subr.mxu0 0.0
  %4088 = vmatpush1.msra.mxu0 0.0
  %4089 = vmatprep.subr.mxu0 0.0
  %4090 = vmatpush1.msra.mxu0 %v2511
  %4091 = vmatprep.subr.mxu0 0.0
  %4092 = vmatpush1.msra.mxu0 %v2510
  %4093 = vmatprep.subr.mxu0 0.0
  %4094 = vmatpush1.msra.mxu0 %v2509
  %4095 = vmatprep.subr.mxu0 0.0
  %4096 = vmatpush1.msra.mxu0 %v2508
  %4097 = vmatprep.subr.mxu0 0.0
  %4098 = vmatpush1.msra.mxu0 %v2507
  %4099 = vmatprep.subr.mxu0 0.0
  %4100 = vmatpush1.msra.mxu0 %v2506
  %4101 = vmatprep.subr.mxu0 0.0
  %4102 = vmatpush1.msra.mxu0 %v2505
  %4103 = vmatprep.subr.mxu0 0.0
  %4104 = vmatpush1.msra.mxu0 %v2504
  %4105 = vmatprep.subr.mxu0 0.0
  %4106 = vmatpush2.msra.mxu0 0.0
  %4107 = vmatprep.subr.mxu0 0.0
  %4108 = vmatpush2.msra.mxu0 0.0
  %4109 = vmatprep.subr.mxu0 0.0
  %4110 = vmatpush2.msra.mxu0 0.0
  %4111 = vmatprep.subr.mxu0 0.0
  %4112 = vmatpush2.msra.mxu0 0.0
  %4113 = vmatprep.subr.mxu0 0.0
  %4114 = vmatpush2.msra.mxu0 0.0
  %4115 = vmatprep.subr.mxu0 0.0
  %4116 = vmatpush2.msra.mxu0 0.0
  %4117 = vmatprep.subr.mxu0 0.0
  %4118 = vmatpush2.msra.mxu0 0.0
  %4119 = vmatprep.subr.mxu0 0.0
  %4120 = vmatpush2.msra.mxu0 0.0
  %4121 = vmatprep.subr.mxu0 0.0
  %4122 = vmatpush2.msra.mxu0 0.0
  %4123 = vmatprep.subr.mxu0 0.0
  %4124 = vmatpush2.msra.mxu0 0.0
  %4125 = vmatprep.subr.mxu0 0.0
  %4126 = vmatpush2.msra.mxu0 0.0
  %4127 = vmatprep.subr.mxu0 0.0
  %4128 = vmatpush2.msra.mxu0 0.0
  %4129 = vmatprep.subr.mxu0 0.0
  %4130 = vmatpush2.msra.mxu0 0.0
  %4131 = vmatprep.subr.mxu0 0.0
  %4132 = vmatpush2.msra.mxu0 0.0
  %4133 = vmatprep.subr.mxu0 0.0
  %4134 = vmatpush2.msra.mxu0 0.0
  %4135 = vmatprep.subr.mxu0 0.0
  %4136 = vmatpush2.msra.mxu0 0.0
  %4137 = vmatprep.mubr.f32.mxu0 0.0
  %4138 = vmatmul.mubr.f32.gmra.mxu0 %v4068
  %v4139 = vpop.f32.mrf.mxu0
  %v4140 = vadd.f32 %v4065, %v4139
  %v4141 = vpop.f32.mrf.mxu0
  %4142 = vmatprep.mubr.f32.mxu0 0.0
  %4143 = vmatmul.mubr.f32.gmra.mxu0 %v4071
  %v4144 = vpop.f32.mrf.mxu0
  %v4145 = vadd.f32 %v4065, %v4144
  %v4146 = vpop.f32.mrf.mxu0
  %4147 = vdwg.mxu0
  %v4148 = vadd.f32 %v2483, %v4140
  %v4149 = vadd.f32 %v2484, %v4145
  %v4150 = vsel %vm566, %v4148, 0.0
  %4151 = vadd.xlane.f32.xlu0 %v4150
  %v4152 = vpop.xlane.xlu0 %4151
  %v4153 = vsel %vm566, %v4149, 0.0
  %4154 = vadd.xlane.f32.xlu0 %v4153
  %v4155 = vpop.xlane.xlu0 %4154
  %v4156 = vmul.f32 %v4152, %v573
  %v4157 = vmul.f32 %v4155, %v573
  %v4158 = vsub.f32 %v4148, %v4156
  %v4159 = vsub.f32 %v4149, %v4157
  %v4160 = vmul.f32 %v4158, %v4158
  %v4161 = vmul.f32 %v4159, %v4159
  %v4162 = vsel %vm566, %v4160, 0.0
  %4163 = vadd.xlane.f32.xlu0 %v4162
  %v4164 = vpop.xlane.xlu0 %4163
  %v4165 = vsel %vm566, %v4161, 0.0
  %4166 = vadd.xlane.f32.xlu0 %v4165
  %v4167 = vpop.xlane.xlu0 %4166
  %v4168 = vmul.f32 %v4164, %v573
  %v4169 = vmul.f32 %v4167, %v573
  %v4170 = vadd.f32 %v4168, 1e-06
  %v4171 = vadd.f32 %v4169, 1e-06
  %v4172 = vrsqrt.pop %v4170
  %v4173 = vrsqrt.pop %v4171
  %v4174 = vmul.f32 %v4158, %v4172
  %v4175 = vmul.f32 %v4159, %v4173
  %v4177 = vlaneseq
  %v4178 = vshrl.u32 %v4177, 7
  %v4179 = vsub.s32 0, %v4178
  %v4180 = vrot.slane %v2513, %v4179
  %v4182 = vmul.f32 %v4174, %v4180
  %v4183 = vmul.f32 %v4175, %v4180
  %v4185 = vlaneseq
  %v4186 = vshrl.u32 %v4185, 7
  %v4187 = vsub.s32 0, %v4186
  %v4188 = vrot.slane %v2514, %v4187
  %v4190 = vadd.f32 %v4182, %v4188
  %v4191 = vadd.f32 %v4183, %v4188
  %v4193 = vlaneseq
  %v4194 = vshrl.u32 %v4193, 7
  %v4195 = vsub.s32 0, %v4194
  %v4196 = vrot.slane %v2531, %v4195
  %v4197 = vlaneseq
  %v4198 = vshrl.u32 %v4197, 7
  %v4199 = vsub.s32 1, %v4198
  %v4200 = vrot.slane %v2531, %v4199
  %v4204 = vsel %vm566, %v4190, 0
  %v4207 = vsel %vm566, %v4191, 0
  %4209 = vmatprep.subr.mxu0 0.0
  %4210 = vmatpush1.msra.mxu0 0.0
  %4211 = vmatprep.subr.mxu0 0.0
  %4212 = vmatpush1.msra.mxu0 0.0
  %4213 = vmatprep.subr.mxu0 0.0
  %4214 = vmatpush1.msra.mxu0 0.0
  %4215 = vmatprep.subr.mxu0 0.0
  %4216 = vmatpush1.msra.mxu0 0.0
  %4217 = vmatprep.subr.mxu0 0.0
  %4218 = vmatpush1.msra.mxu0 0.0
  %4219 = vmatprep.subr.mxu0 0.0
  %4220 = vmatpush1.msra.mxu0 0.0
  %4221 = vmatprep.subr.mxu0 0.0
  %4222 = vmatpush1.msra.mxu0 0.0
  %4223 = vmatprep.subr.mxu0 0.0
  %4224 = vmatpush1.msra.mxu0 0.0
  %4225 = vmatprep.subr.mxu0 %v2530
  %4226 = vmatpush1.msra.mxu0 %v2529
  %4227 = vmatprep.subr.mxu0 %v2528
  %4228 = vmatpush1.msra.mxu0 %v2527
  %4229 = vmatprep.subr.mxu0 %v2526
  %4230 = vmatpush1.msra.mxu0 %v2525
  %4231 = vmatprep.subr.mxu0 %v2524
  %4232 = vmatpush1.msra.mxu0 %v2523
  %4233 = vmatprep.subr.mxu0 %v2522
  %4234 = vmatpush1.msra.mxu0 %v2521
  %4235 = vmatprep.subr.mxu0 %v2520
  %4236 = vmatpush1.msra.mxu0 %v2519
  %4237 = vmatprep.subr.mxu0 %v2518
  %4238 = vmatpush1.msra.mxu0 %v2517
  %4239 = vmatprep.subr.mxu0 %v2516
  %4240 = vmatpush1.msra.mxu0 %v2515
  %4241 = vmatprep.subr.mxu0 0.0
  %4242 = vmatpush2.msra.mxu0 0.0
  %4243 = vmatprep.subr.mxu0 0.0
  %4244 = vmatpush2.msra.mxu0 0.0
  %4245 = vmatprep.subr.mxu0 0.0
  %4246 = vmatpush2.msra.mxu0 0.0
  %4247 = vmatprep.subr.mxu0 0.0
  %4248 = vmatpush2.msra.mxu0 0.0
  %4249 = vmatprep.subr.mxu0 0.0
  %4250 = vmatpush2.msra.mxu0 0.0
  %4251 = vmatprep.subr.mxu0 0.0
  %4252 = vmatpush2.msra.mxu0 0.0
  %4253 = vmatprep.subr.mxu0 0.0
  %4254 = vmatpush2.msra.mxu0 0.0
  %4255 = vmatprep.subr.mxu0 0.0
  %4256 = vmatpush2.msra.mxu0 0.0
  %4257 = vmatprep.subr.mxu0 0.0
  %4258 = vmatpush2.msra.mxu0 0.0
  %4259 = vmatprep.subr.mxu0 0.0
  %4260 = vmatpush2.msra.mxu0 0.0
  %4261 = vmatprep.subr.mxu0 0.0
  %4262 = vmatpush2.msra.mxu0 0.0
  %4263 = vmatprep.subr.mxu0 0.0
  %4264 = vmatpush2.msra.mxu0 0.0
  %4265 = vmatprep.subr.mxu0 0.0
  %4266 = vmatpush2.msra.mxu0 0.0
  %4267 = vmatprep.subr.mxu0 0.0
  %4268 = vmatpush2.msra.mxu0 0.0
  %4269 = vmatprep.subr.mxu0 0.0
  %4270 = vmatpush2.msra.mxu0 0.0
  %4271 = vmatprep.subr.mxu0 0.0
  %4272 = vmatpush2.msra.mxu0 0.0
  %4273 = vmatprep.mubr.f32.mxu0 0.0
  %4274 = vmatmul.mubr.f32.gmra.mxu0 %v4204
  %v4275 = vpop.f32.mrf.mxu0
  %v4276 = vadd.f32 %v4196, %v4275
  %v4277 = vpop.f32.mrf.mxu0
  %v4278 = vadd.f32 %v4200, %v4277
  %4279 = vmatprep.mubr.f32.mxu0 0.0
  %4280 = vmatmul.mubr.f32.gmra.mxu0 %v4207
  %v4281 = vpop.f32.mrf.mxu0
  %v4282 = vadd.f32 %v4196, %v4281
  %v4283 = vpop.f32.mrf.mxu0
  %v4284 = vadd.f32 %v4200, %v4283
  %4285 = vdwg.mxu0
  %v4286 = vmul.f32 %v4276, 0.5
  %v4287 = vmul.f32 %v4278, 0.5
  %v4288 = vmul.f32 %v4282, 0.5
  %v4289 = vmul.f32 %v4284, 0.5
  %v4290 = vmul.f32 %v4276, 0.70710677
  %v4291 = vmul.f32 %v4278, 0.70710677
  %v4292 = vmul.f32 %v4282, 0.70710677
  %v4293 = vmul.f32 %v4284, 0.70710677
  %vm4294 = vcmp.ge.f32.partialorder %v4290, 0.0
  %vm4295 = vcmp.ge.f32.partialorder %v4291, 0.0
  %vm4296 = vcmp.ge.f32.partialorder %v4292, 0.0
  %vm4297 = vcmp.ge.f32.partialorder %v4293, 0.0
  %v4298 = vsel %vm4294, 1.0, -1.0
  %v4299 = vsel %vm4295, 1.0, -1.0
  %v4300 = vsel %vm4296, 1.0, -1.0
  %v4301 = vsel %vm4297, 1.0, -1.0
  %v4302 = vand.u32 2147483647, %v4290
  %v4303 = vand.u32 2147483647, %v4291
  %v4304 = vand.u32 2147483647, %v4292
  %v4305 = vand.u32 2147483647, %v4293
  %v4306 = vmul.f32 %v4302, 0.3275911
  %v4307 = vmul.f32 %v4303, 0.3275911
  %v4308 = vmul.f32 %v4304, 0.3275911
  %v4309 = vmul.f32 %v4305, 0.3275911
  %v4310 = vadd.f32 %v4306, 1.0
  %v4311 = vadd.f32 %v4307, 1.0
  %v4312 = vadd.f32 %v4308, 1.0
  %v4313 = vadd.f32 %v4309, 1.0
  %v4314 = vrcp.pop %v4310
  %v4315 = vmul.f32 1.0, %v4314
  %v4316 = vrcp.pop %v4311
  %v4317 = vmul.f32 1.0, %v4316
  %v4318 = vrcp.pop %v4312
  %v4319 = vmul.f32 1.0, %v4318
  %v4320 = vrcp.pop %v4313
  %v4321 = vmul.f32 1.0, %v4320
  %v4322 = vmul.f32 %v4315, 1.0614054
  %v4323 = vmul.f32 %v4317, 1.0614054
  %v4324 = vmul.f32 %v4319, 1.0614054
  %v4325 = vmul.f32 %v4321, 1.0614054
  %v4326 = vadd.f32 %v4322, -1.4531521
  %v4327 = vadd.f32 %v4323, -1.4531521
  %v4328 = vadd.f32 %v4324, -1.4531521
  %v4329 = vadd.f32 %v4325, -1.4531521
  %v4330 = vmul.f32 %v4326, %v4315
  %v4331 = vmul.f32 %v4327, %v4317
  %v4332 = vmul.f32 %v4328, %v4319
  %v4333 = vmul.f32 %v4329, %v4321
  %v4334 = vadd.f32 %v4330, 1.4214138
  %v4335 = vadd.f32 %v4331, 1.4214138
  %v4336 = vadd.f32 %v4332, 1.4214138
  %v4337 = vadd.f32 %v4333, 1.4214138
  %v4338 = vmul.f32 %v4334, %v4315
  %v4339 = vmul.f32 %v4335, %v4317
  %v4340 = vmul.f32 %v4336, %v4319
  %v4341 = vmul.f32 %v4337, %v4321
  %v4342 = vadd.f32 %v4338, -0.28449672
  %v4343 = vadd.f32 %v4339, -0.28449672
  %v4344 = vadd.f32 %v4340, -0.28449672
  %v4345 = vadd.f32 %v4341, -0.28449672
  %v4346 = vmul.f32 %v4342, %v4315
  %v4347 = vmul.f32 %v4343, %v4317
  %v4348 = vmul.f32 %v4344, %v4319
  %v4349 = vmul.f32 %v4345, %v4321
  %v4350 = vadd.f32 %v4346, 0.2548296
  %v4351 = vadd.f32 %v4347, 0.2548296
  %v4352 = vadd.f32 %v4348, 0.2548296
  %v4353 = vadd.f32 %v4349, 0.2548296
  %v4354 = vmul.f32 %v4350, %v4315
  %v4355 = vmul.f32 %v4351, %v4317
  %v4356 = vmul.f32 %v4352, %v4319
  %v4357 = vmul.f32 %v4353, %v4321
  %v4358 = vsub.f32 0.0, %v4302
  %v4359 = vsub.f32 0.0, %v4303
  %v4360 = vsub.f32 0.0, %v4304
  %v4361 = vsub.f32 0.0, %v4305
  %v4362 = vmul.f32 %v4358, %v4302
  %v4363 = vmul.f32 %v4359, %v4303
  %v4364 = vmul.f32 %v4360, %v4304
  %v4365 = vmul.f32 %v4361, %v4305
  %v4366 = vmul.f32 %v4362, 1.442695
  %v4367 = vpow.pop %v4366
  %v4368 = vmul.f32 %v4363, 1.442695
  %v4369 = vpow.pop %v4368
  %v4370 = vmul.f32 %v4364, 1.442695
  %v4371 = vpow.pop %v4370
  %v4372 = vmul.f32 %v4365, 1.442695
  %v4373 = vpow.pop %v4372
  %v4374 = vmul.f32 %v4354, %v4367
  %v4375 = vmul.f32 %v4355, %v4369
  %v4376 = vmul.f32 %v4356, %v4371
  %v4377 = vmul.f32 %v4357, %v4373
  %v4378 = vsub.f32 1.0, %v4374
  %v4379 = vsub.f32 1.0, %v4375
  %v4380 = vsub.f32 1.0, %v4376
  %v4381 = vsub.f32 1.0, %v4377
  %v4382 = vmul.f32 %v4298, %v4378
  %v4383 = vmul.f32 %v4299, %v4379
  %v4384 = vmul.f32 %v4300, %v4380
  %v4385 = vmul.f32 %v4301, %v4381
  %v4386 = vadd.f32 %v4382, 1.0
  %v4387 = vadd.f32 %v4383, 1.0
  %v4388 = vadd.f32 %v4384, 1.0
  %v4389 = vadd.f32 %v4385, 1.0
  %v4390 = vmul.f32 %v4286, %v4386
  %v4391 = vmul.f32 %v4287, %v4387
  %v4392 = vmul.f32 %v4288, %v4388
  %v4393 = vmul.f32 %v4289, %v4389
  %v4395 = vlaneseq
  %v4396 = vshrl.u32 %v4395, 7
  %v4397 = vsub.s32 0, %v4396
  %v4398 = vrot.slane %v2564, %v4397
  %4400 = vmatprep.subr.mxu0 0.0
  %4401 = vmatpush1.msra.mxu0 %v2547
  %4402 = vmatprep.subr.mxu0 0.0
  %4403 = vmatpush1.msra.mxu0 %v2546
  %4404 = vmatprep.subr.mxu0 0.0
  %4405 = vmatpush1.msra.mxu0 %v2545
  %4406 = vmatprep.subr.mxu0 0.0
  %4407 = vmatpush1.msra.mxu0 %v2544
  %4408 = vmatprep.subr.mxu0 0.0
  %4409 = vmatpush1.msra.mxu0 %v2543
  %4410 = vmatprep.subr.mxu0 0.0
  %4411 = vmatpush1.msra.mxu0 %v2542
  %4412 = vmatprep.subr.mxu0 0.0
  %4413 = vmatpush1.msra.mxu0 %v2541
  %4414 = vmatprep.subr.mxu0 0.0
  %4415 = vmatpush1.msra.mxu0 %v2540
  %4416 = vmatprep.subr.mxu0 0.0
  %4417 = vmatpush1.msra.mxu0 %v2539
  %4418 = vmatprep.subr.mxu0 0.0
  %4419 = vmatpush1.msra.mxu0 %v2538
  %4420 = vmatprep.subr.mxu0 0.0
  %4421 = vmatpush1.msra.mxu0 %v2537
  %4422 = vmatprep.subr.mxu0 0.0
  %4423 = vmatpush1.msra.mxu0 %v2536
  %4424 = vmatprep.subr.mxu0 0.0
  %4425 = vmatpush1.msra.mxu0 %v2535
  %4426 = vmatprep.subr.mxu0 0.0
  %4427 = vmatpush1.msra.mxu0 %v2534
  %4428 = vmatprep.subr.mxu0 0.0
  %4429 = vmatpush1.msra.mxu0 %v2533
  %4430 = vmatprep.subr.mxu0 0.0
  %4431 = vmatpush1.msra.mxu0 %v2532
  %4432 = vmatprep.subr.mxu0 0.0
  %4433 = vmatpush2.msra.mxu0 %v2563
  %4434 = vmatprep.subr.mxu0 0.0
  %4435 = vmatpush2.msra.mxu0 %v2562
  %4436 = vmatprep.subr.mxu0 0.0
  %4437 = vmatpush2.msra.mxu0 %v2561
  %4438 = vmatprep.subr.mxu0 0.0
  %4439 = vmatpush2.msra.mxu0 %v2560
  %4440 = vmatprep.subr.mxu0 0.0
  %4441 = vmatpush2.msra.mxu0 %v2559
  %4442 = vmatprep.subr.mxu0 0.0
  %4443 = vmatpush2.msra.mxu0 %v2558
  %4444 = vmatprep.subr.mxu0 0.0
  %4445 = vmatpush2.msra.mxu0 %v2557
  %4446 = vmatprep.subr.mxu0 0.0
  %4447 = vmatpush2.msra.mxu0 %v2556
  %4448 = vmatprep.subr.mxu0 0.0
  %4449 = vmatpush2.msra.mxu0 %v2555
  %4450 = vmatprep.subr.mxu0 0.0
  %4451 = vmatpush2.msra.mxu0 %v2554
  %4452 = vmatprep.subr.mxu0 0.0
  %4453 = vmatpush2.msra.mxu0 %v2553
  %4454 = vmatprep.subr.mxu0 0.0
  %4455 = vmatpush2.msra.mxu0 %v2552
  %4456 = vmatprep.subr.mxu0 0.0
  %4457 = vmatpush2.msra.mxu0 %v2551
  %4458 = vmatprep.subr.mxu0 0.0
  %4459 = vmatpush2.msra.mxu0 %v2550
  %4460 = vmatprep.subr.mxu0 0.0
  %4461 = vmatpush2.msra.mxu0 %v2549
  %4462 = vmatprep.subr.mxu0 0.0
  %4463 = vmatpush2.msra.mxu0 %v2548
  %4464 = vmatprep.mubr.f32.mxu0 %v4391
  %4465 = vmatmul.mubr.f32.gmra.mxu0 %v4390
  %v4466 = vpop.f32.mrf.mxu0
  %v4467 = vadd.f32 %v4398, %v4466
  %v4468 = vpop.f32.mrf.mxu0
  %4469 = vmatprep.mubr.f32.mxu0 %v4393
  %4470 = vmatmul.mubr.f32.gmra.mxu0 %v4392
  %v4471 = vpop.f32.mrf.mxu0
  %v4472 = vadd.f32 %v4398, %v4471
  %v4473 = vpop.f32.mrf.mxu0
  %4474 = vdwg.mxu0
  %v4475 = vadd.f32 %v4148, %v4467
  %v4476 = vadd.f32 %v4149, %v4472
  %v4477 = vld [vmem:[%s59] sm:$0x1]
  %v4478 = vld [vmem:[%s61] sm:$0x1]
  %v4479 = vsel %vm566, %v4475, 0.0
  %4480 = vadd.xlane.f32.xlu0 %v4479
  %v4481 = vpop.xlane.xlu0 %4480
  %v4482 = vsel %vm566, %v4476, 0.0
  %4483 = vadd.xlane.f32.xlu0 %v4482
  %v4484 = vpop.xlane.xlu0 %4483
  %v4485 = vmul.f32 %v4481, %v573
  %v4486 = vmul.f32 %v4484, %v573
  %v4487 = vsub.f32 %v4475, %v4485
  %v4488 = vsub.f32 %v4476, %v4486
  %v4489 = vmul.f32 %v4487, %v4487
  %v4490 = vmul.f32 %v4488, %v4488
  %v4491 = vsel %vm566, %v4489, 0.0
  %4492 = vadd.xlane.f32.xlu0 %v4491
  %v4493 = vpop.xlane.xlu0 %4492
  %v4494 = vsel %vm566, %v4490, 0.0
  %4495 = vadd.xlane.f32.xlu0 %v4494
  %v4496 = vpop.xlane.xlu0 %4495
  %v4497 = vmul.f32 %v4493, %v573
  %v4498 = vmul.f32 %v4496, %v573
  %v4499 = vadd.f32 %v4497, 1e-06
  %v4500 = vadd.f32 %v4498, 1e-06
  %v4501 = vrsqrt.pop %v4499
  %v4502 = vrsqrt.pop %v4500
  %v4503 = vmul.f32 %v4487, %v4501
  %v4504 = vmul.f32 %v4488, %v4502
  %v4506 = vlaneseq
  %v4507 = vshrl.u32 %v4506, 7
  %v4508 = vsub.s32 0, %v4507
  %v4509 = vrot.slane %v4477, %v4508
  %v4511 = vmul.f32 %v4503, %v4509
  %v4512 = vmul.f32 %v4504, %v4509
  %v4514 = vlaneseq
  %v4515 = vshrl.u32 %v4514, 7
  %v4516 = vsub.s32 0, %v4515
  %v4517 = vrot.slane %v4478, %v4516
  %v4519 = vadd.f32 %v4511, %v4517
  %v4520 = vadd.f32 %v4512, %v4517
  %4521 = vst.msk [vmem:[%s67] sm:$0xff] %vm566, %v4519
  %4522 = vst.msk [vmem:[%s67 + $0x8] sm:$0xff] %vm566, %v4520
  %v4523 = vld [vmem:[%s63] sm:$0xff]
  %v4524 = vld [vmem:[%s63 + $0x8] sm:$0xff]
  %v4525 = vld [vmem:[%s63 + $0x10] sm:$0xff]
  %v4526 = vld [vmem:[%s63 + $0x18] sm:$0xff]
  %v4527 = vld [vmem:[%s63 + $0x20] sm:$0xff]
  %v4528 = vld [vmem:[%s63 + $0x28] sm:$0xff]
  %v4529 = vld [vmem:[%s63 + $0x30] sm:$0xff]
  %v4530 = vld [vmem:[%s63 + $0x38] sm:$0xff]
  %v4531 = vld [vmem:[%s65] sm:$0x1]
  %v4533 = vlaneseq
  %v4534 = vshrl.u32 %v4533, 7
  %v4535 = vsub.s32 0, %v4534
  %v4536 = vrot.slane %v4531, %v4535
  %v4539 = vsel %vm566, %v4519, 0
  %v4542 = vsel %vm566, %v4520, 0
  %4544 = vmatprep.subr.mxu0 0.0
  %4545 = vmatpush1.msra.mxu0 0.0
  %4546 = vmatprep.subr.mxu0 0.0
  %4547 = vmatpush1.msra.mxu0 0.0
  %4548 = vmatprep.subr.mxu0 0.0
  %4549 = vmatpush1.msra.mxu0 0.0
  %4550 = vmatprep.subr.mxu0 0.0
  %4551 = vmatpush1.msra.mxu0 0.0
  %4552 = vmatprep.subr.mxu0 0.0
  %4553 = vmatpush1.msra.mxu0 0.0
  %4554 = vmatprep.subr.mxu0 0.0
  %4555 = vmatpush1.msra.mxu0 0.0
  %4556 = vmatprep.subr.mxu0 0.0
  %4557 = vmatpush1.msra.mxu0 0.0
  %4558 = vmatprep.subr.mxu0 0.0
  %4559 = vmatpush1.msra.mxu0 0.0
  %4560 = vmatprep.subr.mxu0 0.0
  %4561 = vmatpush1.msra.mxu0 %v4530
  %4562 = vmatprep.subr.mxu0 0.0
  %4563 = vmatpush1.msra.mxu0 %v4529
  %4564 = vmatprep.subr.mxu0 0.0
  %4565 = vmatpush1.msra.mxu0 %v4528
  %4566 = vmatprep.subr.mxu0 0.0
  %4567 = vmatpush1.msra.mxu0 %v4527
  %4568 = vmatprep.subr.mxu0 0.0
  %4569 = vmatpush1.msra.mxu0 %v4526
  %4570 = vmatprep.subr.mxu0 0.0
  %4571 = vmatpush1.msra.mxu0 %v4525
  %4572 = vmatprep.subr.mxu0 0.0
  %4573 = vmatpush1.msra.mxu0 %v4524
  %4574 = vmatprep.subr.mxu0 0.0
  %4575 = vmatpush1.msra.mxu0 %v4523
  %4576 = vmatprep.subr.mxu0 0.0
  %4577 = vmatpush2.msra.mxu0 0.0
  %4578 = vmatprep.subr.mxu0 0.0
  %4579 = vmatpush2.msra.mxu0 0.0
  %4580 = vmatprep.subr.mxu0 0.0
  %4581 = vmatpush2.msra.mxu0 0.0
  %4582 = vmatprep.subr.mxu0 0.0
  %4583 = vmatpush2.msra.mxu0 0.0
  %4584 = vmatprep.subr.mxu0 0.0
  %4585 = vmatpush2.msra.mxu0 0.0
  %4586 = vmatprep.subr.mxu0 0.0
  %4587 = vmatpush2.msra.mxu0 0.0
  %4588 = vmatprep.subr.mxu0 0.0
  %4589 = vmatpush2.msra.mxu0 0.0
  %4590 = vmatprep.subr.mxu0 0.0
  %4591 = vmatpush2.msra.mxu0 0.0
  %4592 = vmatprep.subr.mxu0 0.0
  %4593 = vmatpush2.msra.mxu0 0.0
  %4594 = vmatprep.subr.mxu0 0.0
  %4595 = vmatpush2.msra.mxu0 0.0
  %4596 = vmatprep.subr.mxu0 0.0
  %4597 = vmatpush2.msra.mxu0 0.0
  %4598 = vmatprep.subr.mxu0 0.0
  %4599 = vmatpush2.msra.mxu0 0.0
  %4600 = vmatprep.subr.mxu0 0.0
  %4601 = vmatpush2.msra.mxu0 0.0
  %4602 = vmatprep.subr.mxu0 0.0
  %4603 = vmatpush2.msra.mxu0 0.0
  %4604 = vmatprep.subr.mxu0 0.0
  %4605 = vmatpush2.msra.mxu0 0.0
  %4606 = vmatprep.subr.mxu0 0.0
  %4607 = vmatpush2.msra.mxu0 0.0
  %4608 = vmatprep.mubr.f32.mxu0 0.0
  %4609 = vmatmul.mubr.f32.gmra.mxu0 %v4539
  %v4610 = vpop.f32.mrf.mxu0
  %v4611 = vadd.f32 %v4536, %v4610
  %v4612 = vpop.f32.mrf.mxu0
  %4613 = vmatprep.mubr.f32.mxu0 0.0
  %4614 = vmatmul.mubr.f32.gmra.mxu0 %v4542
  %v4615 = vpop.f32.mrf.mxu0
  %v4616 = vadd.f32 %v4536, %v4615
  %v4617 = vpop.f32.mrf.mxu0
  %4618 = vdwg.mxu0
  %4619 = vst [vmem:[%s69] sm:$0xff] %v4611
  %4620 = vst [vmem:[%s69 + $0x8] sm:$0xff] %v4616
  // Predicated region
  $region134: #{sinet_forward.1} parent=0 // pred_check
    _
  $region135: #{sinet_forward.1} parent=0 // pred_check_branch
    %4622 = sbr.rel (0) target = $region137
  $region136: #{sinet_forward.1} parent=0 // pred_region
    _
  $region137: #{sinet_forward.1} parent=0 // pred_fallthru
    _
  // Predicated region
  $region138: #{sinet_forward.1} parent=0 // pred_check
    _
  $region139: #{sinet_forward.1} parent=0 // pred_check_branch
    %4624 = sbr.rel (0) target = $region141
  $region140: #{sinet_forward.1} parent=0 // pred_region
    _
  $region141: #{sinet_forward.1} parent=0 // pred_fallthru
    _
  // Predicated region
  $region142: #{sinet_forward.1} parent=0 // pred_check
    _
  $region143: #{sinet_forward.1} parent=0 // pred_check_branch
    %4626 = sbr.rel (0) target = $region145
  $region144: #{sinet_forward.1} parent=0 // pred_region
    _
  $region145: #{sinet_forward.1} parent=0 // pred_fallthru
    _
  // Predicated region
  $region146: #{sinet_forward.1} parent=0 // pred_check
    _
  $region147: #{sinet_forward.1} parent=0 // pred_check_branch
    %4628 = sbr.rel (0) target = $region149
  $region148: #{sinet_forward.1} parent=0 // pred_region
    _
  $region149: #{sinet_forward.1} parent=0 // pred_fallthru
    _

</llo_original>
